<compile_context>
chip_gen: v6e
topology: v6e:2x2x1
jax: 0.10.0
libtpu: 0.0.40
codegen_flags: <defaults>
</compile_context>

<pallas_src>
import jax
import jax.numpy as jnp
import numpy as np
from jax.experimental import pallas as pl
from jax.experimental.pallas import tpu as pltpu

_BN_EPS = 1e-5


# ---------------------------------------------------------------------------
# In-kernel helpers (traced into the single fused kernel).
# ---------------------------------------------------------------------------
def _pad_hw1(x):
    """Zero-pad a (B, H, W, C) value by 1 on each spatial side, in registers."""
    B, H, W, C = x.shape
    zr = jnp.zeros((B, 1, W, C), x.dtype)
    x = jnp.concatenate([zr, x, zr], axis=1)
    zc = jnp.zeros((B, H + 2, 1, C), x.dtype)
    return jnp.concatenate([zc, x, zc], axis=2)


def _im2col3x3(x):
    """(B, H, W, C) -> (B*H*W, 9*C) patch matrix for a 3x3 / stride 1 / pad 1 conv."""
    B, H, W, C = x.shape
    xp = _pad_hw1(x)
    cols = [xp[:, dy:dy + H, dx:dx + W, :].reshape(B * H * W, C)
            for dy in range(3) for dx in range(3)]
    return jnp.concatenate(cols, axis=1)


def _connector(x, w1, gamma, beta, w2, b2):
    """Conv3x3(no bias) -> BN(train-mode batch stats) -> ReLU -> Conv3x3(+bias).

    x:  (B, H, W, Cin) f32       w1: (9*Cin, Cout) bf16     w2: (9*Cout, Cout) bf16
    gamma/beta/b2: (1, Cout) f32
    returns (Cout, B*H*W) f32  (lane-dense: last dim = B*H*W).
    """
    B, H, W, Cin = x.shape
    Cout = w1.shape[1]

    # conv1 as one im2col matmul (K = 9*Cin), bf16 operands, f32 accumulation
    p1 = _im2col3x3(x).astype(jnp.bfloat16)                       # (M, 9*Cin)
    y1 = jnp.dot(p1, w1, preferred_element_type=jnp.float32)       # (M, Cout)

    # train-mode BatchNorm over the whole batch block (M = B*H*W rows), stats in VMEM.
    # Two-pass centered variance (avoids E[x^2] - E[x]^2 cancellation).
    mean = y1.mean(axis=0, keepdims=True)                          # (1, Cout)
    yc = y1 - mean
    var = jnp.mean(yc * yc, axis=0, keepdims=True)                 # biased var (BN train)
    scale = gamma * jax.lax.rsqrt(var + _BN_EPS)
    z = jnp.maximum(yc * scale + beta, 0.0)                        # BN + ReLU, (M, Cout)

    # conv2 (+bias) as one im2col matmul
    p2 = _im2col3x3(z.reshape(B, H, W, Cout)).astype(jnp.bfloat16)  # (M, 9*Cout)
    out = jnp.dot(p2, w2, preferred_element_type=jnp.float32) + b2  # (M, Cout)

    # lane-dense output layout: channels on sublanes, B*H*W (=128) on lanes
    return out.T                                                   # (Cout, M)


def _hybrid_kernel(t_ref, s_ref,
                   w1t_ref, gt_ref, bt_ref, w2t_ref, b2t_ref,
                   w1s_ref, gs_ref, bs_ref, w2s_ref, b2s_ref,
                   t2s_ref, s2t_ref):
    # t2s connector: teacher feature map -> student-dim feature map
    t2s_ref[...] = _connector(t_ref[...], w1t_ref[...], gt_ref[...],
                              bt_ref[...], w2t_ref[...], b2t_ref[...])
    # s2t connector: student patch-token map -> teacher-dim feature map
    s2t_ref[...] = _connector(s_ref[...], w1s_ref[...], gs_ref[...],
                              bs_ref[...], w2s_ref[...], b2s_ref[...])


# ---------------------------------------------------------------------------
# Hybrid feature exchange (forward_train hot section after the connect points).
#   t_feat  : teacher feature at teacher_connect_index, (B, Ct, h, w)  [NCHW]
#   x_tokens: student tokens at student_connect_index,  (B, 1+h*w, Ds)
# Returns (s2t_feat, t2s_feat) exactly as in forward_train.
# ---------------------------------------------------------------------------
def hybrid_exchange(t_feat, x_tokens, t2s_params, s2t_params, h, w):
    b = t_feat.shape[0]
    ct = t_feat.shape[1]
    ds = x_tokens.shape[2]
    m = b * h * w

    s_token = x_tokens[:, 0]                                   # (B, Ds)
    s_feat = x_tokens[:, 1:]                                   # (B, h*w, Ds)

    # Kernel-friendly NHWC inputs (tiny layout plumbing only):
    #   teacher map: NCHW -> NHWC
    #   student tokens: (B, h*w, Ds) == NHWC view of permute([0,2,1]).reshape([b,-1,h,w])
    t_nhwc = jnp.transpose(t_feat, (0, 2, 3, 1)).astype(jnp.float32)   # (B, h, w, Ct)
    s_nhwc = s_feat.reshape(b, h, w, ds).astype(jnp.float32)           # (B, h, w, Ds)

    vmem = pl.BlockSpec(memory_space=pltpu.MemorySpace.VMEM)
    t2s_cm, s2t_cm = pl.pallas_call(
        _hybrid_kernel,
        out_shape=(jax.ShapeDtypeStruct((ds, m), jnp.float32),   # t2s, channel-major
                   jax.ShapeDtypeStruct((ct, m), jnp.float32)),  # s2t, channel-major
        in_specs=[vmem] * 12,
        out_specs=(vmem, vmem),
    )(t_nhwc, s_nhwc,
      t2s_params["w1"], t2s_params["gamma2"], t2s_params["beta2"],
      t2s_params["w2"], t2s_params["b2_2"],
      s2t_params["w1"], s2t_params["gamma2"], s2t_params["beta2"],
      s2t_params["w2"], s2t_params["b2_2"])

    # s2t(s_feat...) : (Ct, B*h*w) -> (B, Ct, h, w)
    s2t_feat = jnp.transpose(s2t_cm.reshape(ct, b, h, w), (1, 0, 2, 3))

    # cat([s_token[:,:,None], t2s(t_feat).reshape([b,-1,h*w])], dim=2).permute([0,2,1])
    t2s_tok = jnp.transpose(t2s_cm.reshape(ds, b, h * w), (1, 2, 0))   # (B, h*w, Ds)
    t2s_feat = jnp.concatenate([s_token[:, None, :], t2s_tok], axis=1)  # (B, 1+h*w, Ds)
    return s2t_feat, t2s_feat


# ---------------------------------------------------------------------------
# Pure-JAX f32 reference (correctness check of the Pallas path).
# ---------------------------------------------------------------------------
def apply_connector_ref(x_nchw, params):
    dn = ("NCHW", "OIHW", "NCHW")
    x = x_nchw.astype(jnp.float32)
    y1 = jax.lax.conv_general_dilated(x, params["w1_oihw"], (1, 1), "SAME",
                                      dimension_numbers=dn)
    mean = y1.mean(axis=(0, 2, 3))
    var = y1.var(axis=(0, 2, 3))
    y = (y1 - mean[None, :, None, None]) / jnp.sqrt(var + _BN_EPS)[None, :, None, None]
    y = y * params["gamma"][None, :, None, None] + params["beta"][None, :, None, None]
    y = jnp.maximum(y, 0.0)
    y2 = jax.lax.conv_general_dilated(y, params["w2_oihw"], (1, 1), "SAME",
                                      dimension_numbers=dn)
    return y2 + params["b2"][None, :, None, None]


def hybrid_exchange_ref(t_feat, x_tokens, t2s_params, s2t_params, h, w):
    b = t_feat.shape[0]
    s_token = x_tokens[:, 0]
    s_feat = x_tokens[:, 1:]
    s_feat_map = jnp.transpose(s_feat, (0, 2, 1)).reshape(b, -1, h, w)
    s2t_feat = apply_connector_ref(s_feat_map, s2t_params)
    t2s_map = apply_connector_ref(t_feat, t2s_params)
    t2s_flat = t2s_map.reshape(b, -1, h * w)
    t2s_tokens = jnp.concatenate([s_token[:, :, None], t2s_flat], axis=2)
    return s2t_feat, jnp.transpose(t2s_tokens, (0, 2, 1))


# ---------------------------------------------------------------------------
# Deterministic parameter construction (matches init_connect_module_list shapes).
# ---------------------------------------------------------------------------
def init_connector_params(key, cin, cout):
    k1, k2, k3 = jax.random.split(key, 3)
    w1 = jax.random.normal(k1, (cout, cin, 3, 3), jnp.float32) * 0.1    # OIHW (torch)
    w2 = jax.random.normal(k2, (cout, cout, 3, 3), jnp.float32) * 0.1   # OIHW (torch)
    b2 = jax.random.normal(k3, (cout,), jnp.float32) * 0.1
    gamma = jnp.ones((cout,), jnp.float32)
    beta = jnp.zeros((cout,), jnp.float32)
    return dict(
        # f32 originals for the pure-JAX reference
        w1_oihw=w1, w2_oihw=w2, b2=b2, gamma=gamma, beta=beta,
        # im2col weight matrices, bf16 MXU operands (row index = k*Cin + c, k = dy*3+dx)
        w1=jnp.transpose(w1, (2, 3, 1, 0)).reshape(9 * cin, cout).astype(jnp.bfloat16),
        w2=jnp.transpose(w2, (2, 3, 1, 0)).reshape(9 * cout, cout).astype(jnp.bfloat16),
        # per-channel BN / bias params as (1, C) f32 rows
        gamma2=gamma[None, :], beta2=beta[None, :], b2_2=b2[None, :],
    )


if __name__ == "__main__":
    key = jax.random.PRNGKey(0)
    k_t, k_x, k_t2s, k_s2t = jax.random.split(key, 4)

    B = 2
    teacher_channels = 16   # Ct
    student_channels = 32   # Ds (ViT embed dim at the connect point)
    h = w = 8               # spatial size of teacher feature / student patch grid
                            # (B*h*w = 128 -> one full MXU/lane-dense block)

    # teacher feature at teacher_connect_index (NCHW, as produced by a CNN stage)
    t_feat = jax.random.normal(k_t, (B, teacher_channels, h, w), jnp.float32)
    # student tokens at student_connect_index: cls token + h*w patch tokens
    x_tokens = jax.random.normal(k_x, (B, 1 + h * w, student_channels), jnp.float32)

    # t2s: Conv(Ct->Ds) BN ReLU Conv(Ds->Ds) ;  s2t: Conv(Ds->Ct) BN ReLU Conv(Ct->Ct)
    t2s_params = init_connector_params(k_t2s, teacher_channels, student_channels)
    s2t_params = init_connector_params(k_s2t, student_channels, teacher_channels)

    s2t_feat, t2s_feat = hybrid_exchange(t_feat, x_tokens, t2s_params, s2t_params, h, w)
    s2t_feat = jax.block_until_ready(s2t_feat)
    t2s_feat = jax.block_until_ready(t2s_feat)

    # correctness check against a pure-JAX f32 reference (Pallas path uses bf16 MXU
    # operands with f32 accumulation, hence the modest tolerance)
    s2t_ref, t2s_ref = hybrid_exchange_ref(t_feat, x_tokens, t2s_params, s2t_params, h, w)
    np.testing.assert_allclose(np.asarray(s2t_feat), np.asarray(s2t_ref), rtol=5e-2, atol=5e-2)
    np.testing.assert_allclose(np.asarray(t2s_feat), np.asarray(t2s_ref), rtol=5e-2, atol=5e-2)

    assert s2t_feat.shape == (B, teacher_channels, h, w)
    assert t2s_feat.shape == (B, 1 + h * w, student_channels)
    print("KERNEL_OK")
</pallas_src>

<mosaic_0001>
module attributes {stable_mosaic.version = 11 : i64} {
  func.func @_hybrid_kernel(%arg0: memref<2x8x8x16xf32, #tpu.memory_space<vmem>>, %arg1: memref<2x8x8x32xf32, #tpu.memory_space<vmem>>, %arg2: memref<144x32xbf16, #tpu.memory_space<vmem>>, %arg3: memref<1x32xf32, #tpu.memory_space<vmem>>, %arg4: memref<1x32xf32, #tpu.memory_space<vmem>>, %arg5: memref<288x32xbf16, #tpu.memory_space<vmem>>, %arg6: memref<1x32xf32, #tpu.memory_space<vmem>>, %arg7: memref<288x16xbf16, #tpu.memory_space<vmem>>, %arg8: memref<1x16xf32, #tpu.memory_space<vmem>>, %arg9: memref<1x16xf32, #tpu.memory_space<vmem>>, %arg10: memref<144x16xbf16, #tpu.memory_space<vmem>>, %arg11: memref<1x16xf32, #tpu.memory_space<vmem>>, %arg12: memref<32x128xf32, #tpu.memory_space<vmem>>, %arg13: memref<16x128xf32, #tpu.memory_space<vmem>>) attributes {dimension_semantics = [], scalar_prefetch = 0 : i64, scratch_operands = 0 : i64, tpu.core_type = #tpu.core_type<tc>} {
    %c0 = arith.constant 0 : index
    %c0_0 = arith.constant 0 : index
    %c0_1 = arith.constant 0 : index
    %c0_2 = arith.constant 0 : index
    %0 = vector.load %arg0[%c0, %c0_0, %c0_1, %c0_2] : memref<2x8x8x16xf32, #tpu.memory_space<vmem>>, vector<2x8x8x16xf32>
    %c0_3 = arith.constant 0 : index
    %c0_4 = arith.constant 0 : index
    %1 = vector.load %arg2[%c0_3, %c0_4] : memref<144x32xbf16, #tpu.memory_space<vmem>>, vector<144x32xbf16>
    %c0_5 = arith.constant 0 : index
    %c0_6 = arith.constant 0 : index
    %2 = vector.load %arg3[%c0_5, %c0_6] : memref<1x32xf32, #tpu.memory_space<vmem>>, vector<1x32xf32>
    %c0_7 = arith.constant 0 : index
    %c0_8 = arith.constant 0 : index
    %3 = vector.load %arg4[%c0_7, %c0_8] : memref<1x32xf32, #tpu.memory_space<vmem>>, vector<1x32xf32>
    %c0_9 = arith.constant 0 : index
    %c0_10 = arith.constant 0 : index
    %4 = vector.load %arg5[%c0_9, %c0_10] : memref<288x32xbf16, #tpu.memory_space<vmem>>, vector<288x32xbf16>
    %c0_11 = arith.constant 0 : index
    %c0_12 = arith.constant 0 : index
    %5 = vector.load %arg6[%c0_11, %c0_12] : memref<1x32xf32, #tpu.memory_space<vmem>>, vector<1x32xf32>
    %cst = arith.constant 0.000000e+00 : f32
    %6 = vector.broadcast %cst : f32 to vector<2x1x8x16xf32>
    %7 = tpu.concatenate %6, %0, %6 in 1 : vector<2x1x8x16xf32>, vector<2x8x8x16xf32>, vector<2x1x8x16xf32> -> vector<2x10x8x16xf32>
    %cst_13 = arith.constant 0.000000e+00 : f32
    %8 = vector.broadcast %cst_13 : f32 to vector<2x10x1x16xf32>
    %9 = tpu.concatenate %8, %7, %8 in 2 : vector<2x10x1x16xf32>, vector<2x10x8x16xf32>, vector<2x10x1x16xf32> -> vector<2x10x10x16xf32>
    %10 = vector.extract_strided_slice %9 {offsets = [0, 0, 0, 0], sizes = [2, 8, 8, 16], strides = [1, 1, 1, 1]} : vector<2x10x10x16xf32> to vector<2x8x8x16xf32>
    %11 = vector.shape_cast %10 : vector<2x8x8x16xf32> to vector<128x16xf32>
    %12 = vector.extract_strided_slice %9 {offsets = [0, 0, 1, 0], sizes = [2, 8, 8, 16], strides = [1, 1, 1, 1]} : vector<2x10x10x16xf32> to vector<2x8x8x16xf32>
    %13 = vector.shape_cast %12 : vector<2x8x8x16xf32> to vector<128x16xf32>
    %14 = vector.extract_strided_slice %9 {offsets = [0, 0, 2, 0], sizes = [2, 8, 8, 16], strides = [1, 1, 1, 1]} : vector<2x10x10x16xf32> to vector<2x8x8x16xf32>
    %15 = vector.shape_cast %14 : vector<2x8x8x16xf32> to vector<128x16xf32>
    %16 = vector.extract_strided_slice %9 {offsets = [0, 1, 0, 0], sizes = [2, 8, 8, 16], strides = [1, 1, 1, 1]} : vector<2x10x10x16xf32> to vector<2x8x8x16xf32>
    %17 = vector.shape_cast %16 : vector<2x8x8x16xf32> to vector<128x16xf32>
    %18 = vector.extract_strided_slice %9 {offsets = [0, 1, 1, 0], sizes = [2, 8, 8, 16], strides = [1, 1, 1, 1]} : vector<2x10x10x16xf32> to vector<2x8x8x16xf32>
    %19 = vector.shape_cast %18 : vector<2x8x8x16xf32> to vector<128x16xf32>
    %20 = vector.extract_strided_slice %9 {offsets = [0, 1, 2, 0], sizes = [2, 8, 8, 16], strides = [1, 1, 1, 1]} : vector<2x10x10x16xf32> to vector<2x8x8x16xf32>
    %21 = vector.shape_cast %20 : vector<2x8x8x16xf32> to vector<128x16xf32>
    %22 = vector.extract_strided_slice %9 {offsets = [0, 2, 0, 0], sizes = [2, 8, 8, 16], strides = [1, 1, 1, 1]} : vector<2x10x10x16xf32> to vector<2x8x8x16xf32>
    %23 = vector.shape_cast %22 : vector<2x8x8x16xf32> to vector<128x16xf32>
    %24 = vector.extract_strided_slice %9 {offsets = [0, 2, 1, 0], sizes = [2, 8, 8, 16], strides = [1, 1, 1, 1]} : vector<2x10x10x16xf32> to vector<2x8x8x16xf32>
    %25 = vector.shape_cast %24 : vector<2x8x8x16xf32> to vector<128x16xf32>
    %26 = vector.extract_strided_slice %9 {offsets = [0, 2, 2, 0], sizes = [2, 8, 8, 16], strides = [1, 1, 1, 1]} : vector<2x10x10x16xf32> to vector<2x8x8x16xf32>
    %27 = vector.shape_cast %26 : vector<2x8x8x16xf32> to vector<128x16xf32>
    %28 = tpu.concatenate %11, %13, %15, %17, %19, %21, %23, %25, %27 in 1 : vector<128x16xf32>, vector<128x16xf32>, vector<128x16xf32>, vector<128x16xf32>, vector<128x16xf32>, vector<128x16xf32>, vector<128x16xf32>, vector<128x16xf32>, vector<128x16xf32> -> vector<128x144xf32>
    %29 = arith.truncf %28 : vector<128x144xf32> to vector<128x144xbf16>
    %cst_14 = arith.constant dense<0.000000e+00> : vector<128x32xf32>
    %30 = tpu.matmul %29, %1, %cst_14 {dimension_numbers = #tpu.dot_dimension_numbers<[1], [0], [0], [1], [0, 0, 1, 1], [], []>} : vector<128x144xbf16>, vector<144x32xbf16>, vector<128x32xf32> -> vector<128x32xf32>
    %cst_15 = arith.constant dense<0.000000e+00> : vector<32xf32>
    %31 = vector.multi_reduction <add>, %30, %cst_15 [0] : vector<128x32xf32> to vector<32xf32>
    %32 = vector.shape_cast %31 : vector<32xf32> to vector<1x32xf32>
    %cst_16 = arith.constant 1.280000e+02 : f32
    %33 = vector.broadcast %cst_16 : f32 to vector<1x32xf32>
    %34 = arith.divf %32, %33 : vector<1x32xf32>
    %35 = vector.broadcast %34 : vector<1x32xf32> to vector<128x32xf32>
    %36 = arith.subf %30, %35 : vector<128x32xf32>
    %37 = arith.mulf %36, %36 : vector<128x32xf32>
    %cst_17 = arith.constant dense<0.000000e+00> : vector<32xf32>
    %38 = vector.multi_reduction <add>, %37, %cst_17 [0] : vector<128x32xf32> to vector<32xf32>
    %39 = vector.shape_cast %38 : vector<32xf32> to vector<1x32xf32>
    %cst_18 = arith.constant 1.280000e+02 : f32
    %40 = vector.broadcast %cst_18 : f32 to vector<1x32xf32>
    %41 = arith.divf %39, %40 : vector<1x32xf32>
    %cst_19 = arith.constant 9.99999974E-6 : f32
    %42 = vector.broadcast %cst_19 : f32 to vector<1x32xf32>
    %43 = arith.addf %41, %42 : vector<1x32xf32>
    %44 = math.rsqrt %43 : vector<1x32xf32>
    %45 = arith.mulf %2, %44 : vector<1x32xf32>
    %46 = vector.broadcast %45 : vector<1x32xf32> to vector<128x32xf32>
    %47 = arith.mulf %36, %46 : vector<128x32xf32>
    %48 = vector.broadcast %3 : vector<1x32xf32> to vector<128x32xf32>
    %49 = arith.addf %47, %48 : vector<128x32xf32>
    %cst_20 = arith.constant 0.000000e+00 : f32
    %50 = vector.broadcast %cst_20 : f32 to vector<128x32xf32>
    %51 = arith.maximumf %49, %50 : vector<128x32xf32>
    %52 = vector.shape_cast %51 : vector<128x32xf32> to vector<2x8x8x32xf32>
    %cst_21 = arith.constant 0.000000e+00 : f32
    %53 = vector.broadcast %cst_21 : f32 to vector<2x1x8x32xf32>
    %54 = tpu.concatenate %53, %52, %53 in 1 : vector<2x1x8x32xf32>, vector<2x8x8x32xf32>, vector<2x1x8x32xf32> -> vector<2x10x8x32xf32>
    %cst_22 = arith.constant 0.000000e+00 : f32
    %55 = vector.broadcast %cst_22 : f32 to vector<2x10x1x32xf32>
    %56 = tpu.concatenate %55, %54, %55 in 2 : vector<2x10x1x32xf32>, vector<2x10x8x32xf32>, vector<2x10x1x32xf32> -> vector<2x10x10x32xf32>
    %57 = vector.extract_strided_slice %56 {offsets = [0, 0, 0, 0], sizes = [2, 8, 8, 32], strides = [1, 1, 1, 1]} : vector<2x10x10x32xf32> to vector<2x8x8x32xf32>
    %58 = vector.shape_cast %57 : vector<2x8x8x32xf32> to vector<128x32xf32>
    %59 = vector.extract_strided_slice %56 {offsets = [0, 0, 1, 0], sizes = [2, 8, 8, 32], strides = [1, 1, 1, 1]} : vector<2x10x10x32xf32> to vector<2x8x8x32xf32>
    %60 = vector.shape_cast %59 : vector<2x8x8x32xf32> to vector<128x32xf32>
    %61 = vector.extract_strided_slice %56 {offsets = [0, 0, 2, 0], sizes = [2, 8, 8, 32], strides = [1, 1, 1, 1]} : vector<2x10x10x32xf32> to vector<2x8x8x32xf32>
    %62 = vector.shape_cast %61 : vector<2x8x8x32xf32> to vector<128x32xf32>
    %63 = vector.extract_strided_slice %56 {offsets = [0, 1, 0, 0], sizes = [2, 8, 8, 32], strides = [1, 1, 1, 1]} : vector<2x10x10x32xf32> to vector<2x8x8x32xf32>
    %64 = vector.shape_cast %63 : vector<2x8x8x32xf32> to vector<128x32xf32>
    %65 = vector.extract_strided_slice %56 {offsets = [0, 1, 1, 0], sizes = [2, 8, 8, 32], strides = [1, 1, 1, 1]} : vector<2x10x10x32xf32> to vector<2x8x8x32xf32>
    %66 = vector.shape_cast %65 : vector<2x8x8x32xf32> to vector<128x32xf32>
    %67 = vector.extract_strided_slice %56 {offsets = [0, 1, 2, 0], sizes = [2, 8, 8, 32], strides = [1, 1, 1, 1]} : vector<2x10x10x32xf32> to vector<2x8x8x32xf32>
    %68 = vector.shape_cast %67 : vector<2x8x8x32xf32> to vector<128x32xf32>
    %69 = vector.extract_strided_slice %56 {offsets = [0, 2, 0, 0], sizes = [2, 8, 8, 32], strides = [1, 1, 1, 1]} : vector<2x10x10x32xf32> to vector<2x8x8x32xf32>
    %70 = vector.shape_cast %69 : vector<2x8x8x32xf32> to vector<128x32xf32>
    %71 = vector.extract_strided_slice %56 {offsets = [0, 2, 1, 0], sizes = [2, 8, 8, 32], strides = [1, 1, 1, 1]} : vector<2x10x10x32xf32> to vector<2x8x8x32xf32>
    %72 = vector.shape_cast %71 : vector<2x8x8x32xf32> to vector<128x32xf32>
    %73 = vector.extract_strided_slice %56 {offsets = [0, 2, 2, 0], sizes = [2, 8, 8, 32], strides = [1, 1, 1, 1]} : vector<2x10x10x32xf32> to vector<2x8x8x32xf32>
    %74 = vector.shape_cast %73 : vector<2x8x8x32xf32> to vector<128x32xf32>
    %75 = tpu.concatenate %58, %60, %62, %64, %66, %68, %70, %72, %74 in 1 : vector<128x32xf32>, vector<128x32xf32>, vector<128x32xf32>, vector<128x32xf32>, vector<128x32xf32>, vector<128x32xf32>, vector<128x32xf32>, vector<128x32xf32>, vector<128x32xf32> -> vector<128x288xf32>
    %76 = arith.truncf %75 : vector<128x288xf32> to vector<128x288xbf16>
    %cst_23 = arith.constant dense<0.000000e+00> : vector<128x32xf32>
    %77 = tpu.matmul %76, %4, %cst_23 {dimension_numbers = #tpu.dot_dimension_numbers<[1], [0], [0], [1], [0, 0, 1, 1], [], []>} : vector<128x288xbf16>, vector<288x32xbf16>, vector<128x32xf32> -> vector<128x32xf32>
    %78 = vector.broadcast %5 : vector<1x32xf32> to vector<128x32xf32>
    %79 = arith.addf %77, %78 : vector<128x32xf32>
    %80 = tpu.transpose %79, [1, 0] : vector<128x32xf32> -> vector<32x128xf32>
    %c0_24 = arith.constant 0 : index
    %c0_25 = arith.constant 0 : index
    %81 = vector.load %arg12[%c0_24, %c0_25] : memref<32x128xf32, #tpu.memory_space<vmem>>, vector<32x128xf32>
    tpu.vector_store %arg12[%c0_24, %c0_25], %80 {strides = array<i32>} : memref<32x128xf32, #tpu.memory_space<vmem>>, vector<32x128xf32>,
    %c0_26 = arith.constant 0 : index
    %c0_27 = arith.constant 0 : index
    %c0_28 = arith.constant 0 : index
    %c0_29 = arith.constant 0 : index
    %82 = vector.load %arg1[%c0_26, %c0_27, %c0_28, %c0_29] : memref<2x8x8x32xf32, #tpu.memory_space<vmem>>, vector<2x8x8x32xf32>
    %c0_30 = arith.constant 0 : index
    %c0_31 = arith.constant 0 : index
    %83 = vector.load %arg7[%c0_30, %c0_31] : memref<288x16xbf16, #tpu.memory_space<vmem>>, vector<288x16xbf16>
    %c0_32 = arith.constant 0 : index
    %c0_33 = arith.constant 0 : index
    %84 = vector.load %arg8[%c0_32, %c0_33] : memref<1x16xf32, #tpu.memory_space<vmem>>, vector<1x16xf32>
    %c0_34 = arith.constant 0 : index
    %c0_35 = arith.constant 0 : index
    %85 = vector.load %arg9[%c0_34, %c0_35] : memref<1x16xf32, #tpu.memory_space<vmem>>, vector<1x16xf32>
    %c0_36 = arith.constant 0 : index
    %c0_37 = arith.constant 0 : index
    %86 = vector.load %arg10[%c0_36, %c0_37] : memref<144x16xbf16, #tpu.memory_space<vmem>>, vector<144x16xbf16>
    %c0_38 = arith.constant 0 : index
    %c0_39 = arith.constant 0 : index
    %87 = vector.load %arg11[%c0_38, %c0_39] : memref<1x16xf32, #tpu.memory_space<vmem>>, vector<1x16xf32>
    %cst_40 = arith.constant 0.000000e+00 : f32
    %88 = vector.broadcast %cst_40 : f32 to vector<2x1x8x32xf32>
    %89 = tpu.concatenate %88, %82, %88 in 1 : vector<2x1x8x32xf32>, vector<2x8x8x32xf32>, vector<2x1x8x32xf32> -> vector<2x10x8x32xf32>
    %cst_41 = arith.constant 0.000000e+00 : f32
    %90 = vector.broadcast %cst_41 : f32 to vector<2x10x1x32xf32>
    %91 = tpu.concatenate %90, %89, %90 in 2 : vector<2x10x1x32xf32>, vector<2x10x8x32xf32>, vector<2x10x1x32xf32> -> vector<2x10x10x32xf32>
    %92 = vector.extract_strided_slice %91 {offsets = [0, 0, 0, 0], sizes = [2, 8, 8, 32], strides = [1, 1, 1, 1]} : vector<2x10x10x32xf32> to vector<2x8x8x32xf32>
    %93 = vector.shape_cast %92 : vector<2x8x8x32xf32> to vector<128x32xf32>
    %94 = vector.extract_strided_slice %91 {offsets = [0, 0, 1, 0], sizes = [2, 8, 8, 32], strides = [1, 1, 1, 1]} : vector<2x10x10x32xf32> to vector<2x8x8x32xf32>
    %95 = vector.shape_cast %94 : vector<2x8x8x32xf32> to vector<128x32xf32>
    %96 = vector.extract_strided_slice %91 {offsets = [0, 0, 2, 0], sizes = [2, 8, 8, 32], strides = [1, 1, 1, 1]} : vector<2x10x10x32xf32> to vector<2x8x8x32xf32>
    %97 = vector.shape_cast %96 : vector<2x8x8x32xf32> to vector<128x32xf32>
    %98 = vector.extract_strided_slice %91 {offsets = [0, 1, 0, 0], sizes = [2, 8, 8, 32], strides = [1, 1, 1, 1]} : vector<2x10x10x32xf32> to vector<2x8x8x32xf32>
    %99 = vector.shape_cast %98 : vector<2x8x8x32xf32> to vector<128x32xf32>
    %100 = vector.extract_strided_slice %91 {offsets = [0, 1, 1, 0], sizes = [2, 8, 8, 32], strides = [1, 1, 1, 1]} : vector<2x10x10x32xf32> to vector<2x8x8x32xf32>
    %101 = vector.shape_cast %100 : vector<2x8x8x32xf32> to vector<128x32xf32>
    %102 = vector.extract_strided_slice %91 {offsets = [0, 1, 2, 0], sizes = [2, 8, 8, 32], strides = [1, 1, 1, 1]} : vector<2x10x10x32xf32> to vector<2x8x8x32xf32>
    %103 = vector.shape_cast %102 : vector<2x8x8x32xf32> to vector<128x32xf32>
    %104 = vector.extract_strided_slice %91 {offsets = [0, 2, 0, 0], sizes = [2, 8, 8, 32], strides = [1, 1, 1, 1]} : vector<2x10x10x32xf32> to vector<2x8x8x32xf32>
    %105 = vector.shape_cast %104 : vector<2x8x8x32xf32> to vector<128x32xf32>
    %106 = vector.extract_strided_slice %91 {offsets = [0, 2, 1, 0], sizes = [2, 8, 8, 32], strides = [1, 1, 1, 1]} : vector<2x10x10x32xf32> to vector<2x8x8x32xf32>
    %107 = vector.shape_cast %106 : vector<2x8x8x32xf32> to vector<128x32xf32>
    %108 = vector.extract_strided_slice %91 {offsets = [0, 2, 2, 0], sizes = [2, 8, 8, 32], strides = [1, 1, 1, 1]} : vector<2x10x10x32xf32> to vector<2x8x8x32xf32>
    %109 = vector.shape_cast %108 : vector<2x8x8x32xf32> to vector<128x32xf32>
    %110 = tpu.concatenate %93, %95, %97, %99, %101, %103, %105, %107, %109 in 1 : vector<128x32xf32>, vector<128x32xf32>, vector<128x32xf32>, vector<128x32xf32>, vector<128x32xf32>, vector<128x32xf32>, vector<128x32xf32>, vector<128x32xf32>, vector<128x32xf32> -> vector<128x288xf32>
    %111 = arith.truncf %110 : vector<128x288xf32> to vector<128x288xbf16>
    %cst_42 = arith.constant dense<0.000000e+00> : vector<128x16xf32>
    %112 = tpu.matmul %111, %83, %cst_42 {dimension_numbers = #tpu.dot_dimension_numbers<[1], [0], [0], [1], [0, 0, 1, 1], [], []>} : vector<128x288xbf16>, vector<288x16xbf16>, vector<128x16xf32> -> vector<128x16xf32>
    %cst_43 = arith.constant dense<0.000000e+00> : vector<16xf32>
    %113 = vector.multi_reduction <add>, %112, %cst_43 [0] : vector<128x16xf32> to vector<16xf32>
    %114 = vector.shape_cast %113 : vector<16xf32> to vector<1x16xf32>
    %cst_44 = arith.constant 1.280000e+02 : f32
    %115 = vector.broadcast %cst_44 : f32 to vector<1x16xf32>
    %116 = arith.divf %114, %115 : vector<1x16xf32>
    %117 = vector.broadcast %116 : vector<1x16xf32> to vector<128x16xf32>
    %118 = arith.subf %112, %117 : vector<128x16xf32>
    %119 = arith.mulf %118, %118 : vector<128x16xf32>
    %cst_45 = arith.constant dense<0.000000e+00> : vector<16xf32>
    %120 = vector.multi_reduction <add>, %119, %cst_45 [0] : vector<128x16xf32> to vector<16xf32>
    %121 = vector.shape_cast %120 : vector<16xf32> to vector<1x16xf32>
    %cst_46 = arith.constant 1.280000e+02 : f32
    %122 = vector.broadcast %cst_46 : f32 to vector<1x16xf32>
    %123 = arith.divf %121, %122 : vector<1x16xf32>
    %cst_47 = arith.constant 9.99999974E-6 : f32
    %124 = vector.broadcast %cst_47 : f32 to vector<1x16xf32>
    %125 = arith.addf %123, %124 : vector<1x16xf32>
    %126 = math.rsqrt %125 : vector<1x16xf32>
    %127 = arith.mulf %84, %126 : vector<1x16xf32>
    %128 = vector.broadcast %127 : vector<1x16xf32> to vector<128x16xf32>
    %129 = arith.mulf %118, %128 : vector<128x16xf32>
    %130 = vector.broadcast %85 : vector<1x16xf32> to vector<128x16xf32>
    %131 = arith.addf %129, %130 : vector<128x16xf32>
    %cst_48 = arith.constant 0.000000e+00 : f32
    %132 = vector.broadcast %cst_48 : f32 to vector<128x16xf32>
    %133 = arith.maximumf %131, %132 : vector<128x16xf32>
    %134 = vector.shape_cast %133 : vector<128x16xf32> to vector<2x8x8x16xf32>
    %cst_49 = arith.constant 0.000000e+00 : f32
    %135 = vector.broadcast %cst_49 : f32 to vector<2x1x8x16xf32>
    %136 = tpu.concatenate %135, %134, %135 in 1 : vector<2x1x8x16xf32>, vector<2x8x8x16xf32>, vector<2x1x8x16xf32> -> vector<2x10x8x16xf32>
    %cst_50 = arith.constant 0.000000e+00 : f32
    %137 = vector.broadcast %cst_50 : f32 to vector<2x10x1x16xf32>
    %138 = tpu.concatenate %137, %136, %137 in 2 : vector<2x10x1x16xf32>, vector<2x10x8x16xf32>, vector<2x10x1x16xf32> -> vector<2x10x10x16xf32>
    %139 = vector.extract_strided_slice %138 {offsets = [0, 0, 0, 0], sizes = [2, 8, 8, 16], strides = [1, 1, 1, 1]} : vector<2x10x10x16xf32> to vector<2x8x8x16xf32>
    %140 = vector.shape_cast %139 : vector<2x8x8x16xf32> to vector<128x16xf32>
    %141 = vector.extract_strided_slice %138 {offsets = [0, 0, 1, 0], sizes = [2, 8, 8, 16], strides = [1, 1, 1, 1]} : vector<2x10x10x16xf32> to vector<2x8x8x16xf32>
    %142 = vector.shape_cast %141 : vector<2x8x8x16xf32> to vector<128x16xf32>
    %143 = vector.extract_strided_slice %138 {offsets = [0, 0, 2, 0], sizes = [2, 8, 8, 16], strides = [1, 1, 1, 1]} : vector<2x10x10x16xf32> to vector<2x8x8x16xf32>
    %144 = vector.shape_cast %143 : vector<2x8x8x16xf32> to vector<128x16xf32>
    %145 = vector.extract_strided_slice %138 {offsets = [0, 1, 0, 0], sizes = [2, 8, 8, 16], strides = [1, 1, 1, 1]} : vector<2x10x10x16xf32> to vector<2x8x8x16xf32>
    %146 = vector.shape_cast %145 : vector<2x8x8x16xf32> to vector<128x16xf32>
    %147 = vector.extract_strided_slice %138 {offsets = [0, 1, 1, 0], sizes = [2, 8, 8, 16], strides = [1, 1, 1, 1]} : vector<2x10x10x16xf32> to vector<2x8x8x16xf32>
    %148 = vector.shape_cast %147 : vector<2x8x8x16xf32> to vector<128x16xf32>
    %149 = vector.extract_strided_slice %138 {offsets = [0, 1, 2, 0], sizes = [2, 8, 8, 16], strides = [1, 1, 1, 1]} : vector<2x10x10x16xf32> to vector<2x8x8x16xf32>
    %150 = vector.shape_cast %149 : vector<2x8x8x16xf32> to vector<128x16xf32>
    %151 = vector.extract_strided_slice %138 {offsets = [0, 2, 0, 0], sizes = [2, 8, 8, 16], strides = [1, 1, 1, 1]} : vector<2x10x10x16xf32> to vector<2x8x8x16xf32>
    %152 = vector.shape_cast %151 : vector<2x8x8x16xf32> to vector<128x16xf32>
    %153 = vector.extract_strided_slice %138 {offsets = [0, 2, 1, 0], sizes = [2, 8, 8, 16], strides = [1, 1, 1, 1]} : vector<2x10x10x16xf32> to vector<2x8x8x16xf32>
    %154 = vector.shape_cast %153 : vector<2x8x8x16xf32> to vector<128x16xf32>
    %155 = vector.extract_strided_slice %138 {offsets = [0, 2, 2, 0], sizes = [2, 8, 8, 16], strides = [1, 1, 1, 1]} : vector<2x10x10x16xf32> to vector<2x8x8x16xf32>
    %156 = vector.shape_cast %155 : vector<2x8x8x16xf32> to vector<128x16xf32>
    %157 = tpu.concatenate %140, %142, %144, %146, %148, %150, %152, %154, %156 in 1 : vector<128x16xf32>, vector<128x16xf32>, vector<128x16xf32>, vector<128x16xf32>, vector<128x16xf32>, vector<128x16xf32>, vector<128x16xf32>, vector<128x16xf32>, vector<128x16xf32> -> vector<128x144xf32>
    %158 = arith.truncf %157 : vector<128x144xf32> to vector<128x144xbf16>
    %cst_51 = arith.constant dense<0.000000e+00> : vector<128x16xf32>
    %159 = tpu.matmul %158, %86, %cst_51 {dimension_numbers = #tpu.dot_dimension_numbers<[1], [0], [0], [1], [0, 0, 1, 1], [], []>} : vector<128x144xbf16>, vector<144x16xbf16>, vector<128x16xf32> -> vector<128x16xf32>
    %160 = vector.broadcast %87 : vector<1x16xf32> to vector<128x16xf32>
    %161 = arith.addf %159, %160 : vector<128x16xf32>
    %162 = tpu.transpose %161, [1, 0] : vector<128x16xf32> -> vector<16x128xf32>
    %c0_52 = arith.constant 0 : index
    %c0_53 = arith.constant 0 : index
    %163 = vector.load %arg13[%c0_52, %c0_53] : memref<16x128xf32, #tpu.memory_space<vmem>>, vector<16x128xf32>
    tpu.vector_store %arg13[%c0_52, %c0_53], %162 {strides = array<i32>} : memref<16x128xf32, #tpu.memory_space<vmem>>, vector<16x128xf32>,
    return
  }
}

</mosaic_0001>

<llo_original>
// kernel: tpu_custom_call.1
$region0: #{tpu_custom_call.1}
  #allocation0 [shape = 'u32[]', space=smem, size = 0x4, offset = 0x4, fixed_abs, tag = 'smem constant byte address 0x4 - core index']
  #allocation1 [shape = 'u32[144,128]{1,0:T(1,128)}', space=vmem, size = 0x12000, scoped, tag = 'internal scratch']
  %s0 = inlined_call_operand.vmem [shape: f32[2,8,8,16], index: 0, kind: input, shape index: {}]
  %s1 = inlined_call_operand.vmem [shape: f32[2,8,8,32], index: 1, kind: input, shape index: {}]
  %s2 = inlined_call_operand.vmem [shape: bf16[144,32], index: 2, kind: input, shape index: {}]
  %s3 = inlined_call_operand.vmem [shape: f32[1,32], index: 3, kind: input, shape index: {}]
  %s4 = inlined_call_operand.vmem [shape: f32[1,32], index: 4, kind: input, shape index: {}]
  %s5 = inlined_call_operand.vmem [shape: bf16[288,32], index: 5, kind: input, shape index: {}]
  %s6 = inlined_call_operand.vmem [shape: f32[1,32], index: 6, kind: input, shape index: {}]
  %s7 = inlined_call_operand.vmem [shape: bf16[288,16], index: 7, kind: input, shape index: {}]
  %s8 = inlined_call_operand.vmem [shape: f32[1,16], index: 8, kind: input, shape index: {}]
  %s9 = inlined_call_operand.vmem [shape: f32[1,16], index: 9, kind: input, shape index: {}]
  %s10 = inlined_call_operand.vmem [shape: bf16[144,16], index: 10, kind: input, shape index: {}]
  %s11 = inlined_call_operand.vmem [shape: f32[1,16], index: 11, kind: input, shape index: {}]
  %s12 = inlined_call_operand.hbm [shape: f32[32,128], index: 12, kind: output, shape index: {0}]
  %s13 = inlined_call_operand.hbm [shape: f32[16,128], index: 13, kind: output, shape index: {1}]
  %14 = xla_tuple %s12, %s13
  %s15 = sld [smem:[#allocation0]]
  $region66: #{tpu_custom_call.1} parent=0
    _
  %s17 = ssub.s32 1, %s15
  %s18 = scalar_select 0, %s17, %s15
  $region1: #{tpu_custom_call.1} parent=0
    #allocation2 [shape = 'u8[16384]{0}', space=vmem, size = 0x4000, scoped, tag = 'output window, operand 0, single buffered']
    #allocation3 [shape = 's32[1]{0}', space=sflag, size = 0x4, scoped, tag = 'scoped memory for tpu_custom_call.1']
    #allocation4 [shape = 'u8[8192]{0}', space=vmem, size = 0x2000, scoped, tag = 'output window, operand 1, single buffered']
    #allocation5 [shape = 's32[1]{0}', space=sflag, size = 0x4, scoped, tag = 'scoped memory for tpu_custom_call.1']
    %19 = vsyncpa [#allocation3], 0
    %20 = vsyncpa [#allocation5], 0
    // Predicated region
    $region2: #{tpu_custom_call.1} parent=1 // pred_check
      _
    $region3: #{tpu_custom_call.1} parent=1 // pred_check_branch
      %22 = sbr.rel (0) target = $region5
    $region4: #{tpu_custom_call.1} parent=1 // pred_region
      _
    $region5: #{tpu_custom_call.1} parent=1 // pred_fallthru
      _
    // Predicated region
    $region6: #{tpu_custom_call.1} parent=1 // pred_check
      _
    $region7: #{tpu_custom_call.1} parent=1 // pred_check_branch
      %24 = sbr.rel (0) target = $region9
    $region8: #{tpu_custom_call.1} parent=1 // pred_region
      _
    $region9: #{tpu_custom_call.1} parent=1 // pred_fallthru
      _
    // Predicated region
    $region10: #{tpu_custom_call.1} parent=1 // pred_check
      _
    $region11: #{tpu_custom_call.1} parent=1 // pred_check_branch
      %26 = sbr.rel (0) target = $region13
    $region12: #{tpu_custom_call.1} parent=1 // pred_region
      _
    $region13: #{tpu_custom_call.1} parent=1 // pred_fallthru
      _
    // Predicated region
    $region14: #{tpu_custom_call.1} parent=1 // pred_check
      _
    $region15: #{tpu_custom_call.1} parent=1 // pred_check_branch
      %28 = sbr.rel (0) target = $region17
    $region16: #{tpu_custom_call.1} parent=1 // pred_region
      _
    $region17: #{tpu_custom_call.1} parent=1 // pred_fallthru
      _
    // Predicated region
    $region18: #{tpu_custom_call.1} parent=1 // pred_check
      _
    $region19: #{tpu_custom_call.1} parent=1 // pred_check_branch
      %30 = sbr.rel (0) target = $region21
    $region20: #{tpu_custom_call.1} parent=1 // pred_region
      _
    $region21: #{tpu_custom_call.1} parent=1 // pred_fallthru
      _
    // Predicated region
    $region22: #{tpu_custom_call.1} parent=1 // pred_check
      _
    $region23: #{tpu_custom_call.1} parent=1 // pred_check_branch
      %32 = sbr.rel (0) target = $region25
    $region24: #{tpu_custom_call.1} parent=1 // pred_region
      _
    $region25: #{tpu_custom_call.1} parent=1 // pred_fallthru
      _
    // Predicated region
    $region26: #{tpu_custom_call.1} parent=1 // pred_check
      _
    $region27: #{tpu_custom_call.1} parent=1 // pred_check_branch
      %34 = sbr.rel (0) target = $region29
    $region28: #{tpu_custom_call.1} parent=1 // pred_region
      _
    $region29: #{tpu_custom_call.1} parent=1 // pred_fallthru
      _
    // Predicated region
    $region30: #{tpu_custom_call.1} parent=1 // pred_check
      _
    $region31: #{tpu_custom_call.1} parent=1 // pred_check_branch
      %36 = sbr.rel (0) target = $region33
    $region32: #{tpu_custom_call.1} parent=1 // pred_region
      _
    $region33: #{tpu_custom_call.1} parent=1 // pred_fallthru
      _
    // Predicated region
    $region34: #{tpu_custom_call.1} parent=1 // pred_check
      _
    $region35: #{tpu_custom_call.1} parent=1 // pred_check_branch
      %38 = sbr.rel (0) target = $region37
    $region36: #{tpu_custom_call.1} parent=1 // pred_region
      _
    $region37: #{tpu_custom_call.1} parent=1 // pred_fallthru
      _
    // Predicated region
    $region38: #{tpu_custom_call.1} parent=1 // pred_check
      _
    $region39: #{tpu_custom_call.1} parent=1 // pred_check_branch
      %40 = sbr.rel (0) target = $region41
    $region40: #{tpu_custom_call.1} parent=1 // pred_region
      _
    $region41: #{tpu_custom_call.1} parent=1 // pred_fallthru
      _
    // Predicated region
    $region42: #{tpu_custom_call.1} parent=1 // pred_check
      _
    $region43: #{tpu_custom_call.1} parent=1 // pred_check_branch
      %42 = sbr.rel (0) target = $region45
    $region44: #{tpu_custom_call.1} parent=1 // pred_region
      _
    $region45: #{tpu_custom_call.1} parent=1 // pred_fallthru
      _
    // Predicated region
    $region46: #{tpu_custom_call.1} parent=1 // pred_check
      _
    $region47: #{tpu_custom_call.1} parent=1 // pred_check_branch
      %44 = sbr.rel (0) target = $region49
    $region48: #{tpu_custom_call.1} parent=1 // pred_region
      _
    $region49: #{tpu_custom_call.1} parent=1 // pred_fallthru
      _
    %v46 = vld [vmem:[%s0] sm:$0xff]
    %v47 = vld [vmem:[%s0 + $0x8] sm:$0xff]
    %v48 = vld [vmem:[%s0 + $0x10] sm:$0xff]
    %v49 = vld [vmem:[%s0 + $0x18] sm:$0xff]
    %v50 = vld [vmem:[%s0 + $0x20] sm:$0xff]
    %v51 = vld [vmem:[%s0 + $0x28] sm:$0xff]
    %v52 = vld [vmem:[%s0 + $0x30] sm:$0xff]
    %v53 = vld [vmem:[%s0 + $0x38] sm:$0xff]
    %v54 = vld [vmem:[%s0 + $0x40] sm:$0xff]
    %v55 = vld [vmem:[%s0 + $0x48] sm:$0xff]
    %v56 = vld [vmem:[%s0 + $0x50] sm:$0xff]
    %v57 = vld [vmem:[%s0 + $0x58] sm:$0xff]
    %v58 = vld [vmem:[%s0 + $0x60] sm:$0xff]
    %v59 = vld [vmem:[%s0 + $0x68] sm:$0xff]
    %v60 = vld [vmem:[%s0 + $0x70] sm:$0xff]
    %v61 = vld [vmem:[%s0 + $0x78] sm:$0xff]
    %v62 = vld [vmem:[%s2] sm:$0xf]
    %v63 = vld [vmem:[%s2 + $0x4] sm:$0xf]
    %v64 = vld [vmem:[%s2 + $0x8] sm:$0xf]
    %v65 = vld [vmem:[%s2 + $0xc] sm:$0xf]
    %v66 = vld [vmem:[%s2 + $0x10] sm:$0xf]
    %v67 = vld [vmem:[%s2 + $0x14] sm:$0xf]
    %v68 = vld [vmem:[%s2 + $0x18] sm:$0xf]
    %v69 = vld [vmem:[%s2 + $0x1c] sm:$0xf]
    %v70 = vld [vmem:[%s2 + $0x20] sm:$0xf]
    %v71 = vld [vmem:[%s2 + $0x24] sm:$0xf]
    %v72 = vld [vmem:[%s2 + $0x28] sm:$0xf]
    %v73 = vld [vmem:[%s2 + $0x2c] sm:$0xf]
    %v74 = vld [vmem:[%s2 + $0x30] sm:$0xf]
    %v75 = vld [vmem:[%s2 + $0x34] sm:$0xf]
    %v76 = vld [vmem:[%s2 + $0x38] sm:$0xf]
    %v77 = vld [vmem:[%s2 + $0x3c] sm:$0xf]
    %v78 = vld [vmem:[%s2 + $0x40] sm:$0xf]
    %v79 = vld [vmem:[%s2 + $0x44] sm:$0xf]
    %v80 = vld [vmem:[%s3] sm:$0x1]
    %v81 = vld [vmem:[%s4] sm:$0x1]
    %v82 = vld [vmem:[%s5] sm:$0xf]
    %v83 = vld [vmem:[%s5 + $0x4] sm:$0xf]
    %v84 = vld [vmem:[%s5 + $0x8] sm:$0xf]
    %v85 = vld [vmem:[%s5 + $0xc] sm:$0xf]
    %v86 = vld [vmem:[%s5 + $0x10] sm:$0xf]
    %v87 = vld [vmem:[%s5 + $0x14] sm:$0xf]
    %v88 = vld [vmem:[%s5 + $0x18] sm:$0xf]
    %v89 = vld [vmem:[%s5 + $0x1c] sm:$0xf]
    %v90 = vld [vmem:[%s5 + $0x20] sm:$0xf]
    %v91 = vld [vmem:[%s5 + $0x24] sm:$0xf]
    %v92 = vld [vmem:[%s5 + $0x28] sm:$0xf]
    %v93 = vld [vmem:[%s5 + $0x2c] sm:$0xf]
    %v94 = vld [vmem:[%s5 + $0x30] sm:$0xf]
    %v95 = vld [vmem:[%s5 + $0x34] sm:$0xf]
    %v96 = vld [vmem:[%s5 + $0x38] sm:$0xf]
    %v97 = vld [vmem:[%s5 + $0x3c] sm:$0xf]
    %v98 = vld [vmem:[%s5 + $0x40] sm:$0xf]
    %v99 = vld [vmem:[%s5 + $0x44] sm:$0xf]
    %v100 = vld [vmem:[%s5 + $0x48] sm:$0xf]
    %v101 = vld [vmem:[%s5 + $0x4c] sm:$0xf]
    %v102 = vld [vmem:[%s5 + $0x50] sm:$0xf]
    %v103 = vld [vmem:[%s5 + $0x54] sm:$0xf]
    %v104 = vld [vmem:[%s5 + $0x58] sm:$0xf]
    %v105 = vld [vmem:[%s5 + $0x5c] sm:$0xf]
    %v106 = vld [vmem:[%s5 + $0x60] sm:$0xf]
    %v107 = vld [vmem:[%s5 + $0x64] sm:$0xf]
    %v108 = vld [vmem:[%s5 + $0x68] sm:$0xf]
    %v109 = vld [vmem:[%s5 + $0x6c] sm:$0xf]
    %v110 = vld [vmem:[%s5 + $0x70] sm:$0xf]
    %v111 = vld [vmem:[%s5 + $0x74] sm:$0xf]
    %v112 = vld [vmem:[%s5 + $0x78] sm:$0xf]
    %v113 = vld [vmem:[%s5 + $0x7c] sm:$0xf]
    %v114 = vld [vmem:[%s5 + $0x80] sm:$0xf]
    %v115 = vld [vmem:[%s5 + $0x84] sm:$0xf]
    %v116 = vld [vmem:[%s5 + $0x88] sm:$0xf]
    %v117 = vld [vmem:[%s5 + $0x8c] sm:$0xf]
    %v118 = vld [vmem:[%s6] sm:$0x1]
    %v136 = vrot.slane 0.0, 7
    %v137 = vrot.slane %v46, 7
    %v138 = vrot.slane %v47, 7
    %v139 = vrot.slane %v48, 7
    %v140 = vrot.slane %v49, 7
    %v141 = vrot.slane %v50, 7
    %v142 = vrot.slane %v51, 7
    %v143 = vrot.slane %v52, 7
    %v144 = vrot.slane %v53, 7
    %v145 = vrot.slane %v54, 7
    %v146 = vrot.slane %v55, 7
    %v147 = vrot.slane %v56, 7
    %v148 = vrot.slane %v57, 7
    %v149 = vrot.slane %v58, 7
    %v150 = vrot.slane %v59, 7
    %v151 = vrot.slane %v60, 7
    %v152 = vrot.slane %v61, 7
    %vm170 = vcmask 1040384
    %v171 = vsel %vm170, 0.0, %v136
    %v172 = vsel %vm170, 0.0, %v137
    %v173 = vsel %vm170, 0.0, %v138
    %v174 = vsel %vm170, 0.0, %v139
    %v175 = vsel %vm170, 0.0, %v140
    %v176 = vsel %vm170, 0.0, %v141
    %v177 = vsel %vm170, 0.0, %v142
    %v178 = vsel %vm170, 0.0, %v143
    %v179 = vsel %vm170, 0.0, %v144
    %v180 = vsel %vm170, 0.0, %v145
    %v181 = vsel %vm170, 0.0, %v146
    %v182 = vsel %vm170, 0.0, %v147
    %v183 = vsel %vm170, 0.0, %v148
    %v184 = vsel %vm170, 0.0, %v149
    %v185 = vsel %vm170, 0.0, %v150
    %v186 = vsel %vm170, 0.0, %v151
    %v187 = vsel %vm170, 0.0, %v152
    %v188 = vsel %vm170, %v136, 0.0
    %v189 = vsel %vm170, %v137, 0.0
    %v190 = vsel %vm170, %v138, 0.0
    %v191 = vsel %vm170, %v139, 0.0
    %v192 = vsel %vm170, %v140, 0.0
    %v193 = vsel %vm170, %v141, 0.0
    %v194 = vsel %vm170, %v142, 0.0
    %v195 = vsel %vm170, %v143, 0.0
    %v196 = vsel %vm170, %v144, 0.0
    %v197 = vsel %vm170, %v145, 0.0
    %v198 = vsel %vm170, %v146, 0.0
    %v199 = vsel %vm170, %v147, 0.0
    %v200 = vsel %vm170, %v148, 0.0
    %v201 = vsel %vm170, %v149, 0.0
    %v202 = vsel %vm170, %v150, 0.0
    %v203 = vsel %vm170, %v151, 0.0
    %v204 = vsel %vm170, %v152, 0.0
    %vm235 = vcmask 1046528
    %v236 = vrot.slane %v171, 1
    %v237 = vrot.slane %v188, 1
    %v238 = vsel %vm235, %v236, %v237
    %v239 = vrot.slane %v172, 1
    %v240 = vrot.slane %v189, 1
    %v241 = vsel %vm235, %v239, %v240
    %v242 = vrot.slane %v173, 1
    %v243 = vrot.slane %v190, 1
    %v244 = vsel %vm235, %v242, %v243
    %v245 = vrot.slane %v174, 1
    %v246 = vrot.slane %v191, 1
    %v247 = vsel %vm235, %v245, %v246
    %v248 = vrot.slane %v175, 1
    %v249 = vrot.slane %v192, 1
    %v250 = vsel %vm235, %v248, %v249
    %v251 = vrot.slane %v176, 1
    %v252 = vrot.slane %v193, 1
    %v253 = vsel %vm235, %v251, %v252
    %v254 = vrot.slane %v177, 1
    %v255 = vrot.slane %v194, 1
    %v256 = vsel %vm235, %v254, %v255
    %v257 = vrot.slane %v178, 1
    %v258 = vrot.slane %v195, 1
    %v259 = vsel %vm235, %v257, %v258
    %v260 = vrot.slane %v180, 1
    %v261 = vrot.slane %v197, 1
    %v262 = vsel %vm235, %v260, %v261
    %v263 = vrot.slane %v181, 1
    %v264 = vrot.slane %v198, 1
    %v265 = vsel %vm235, %v263, %v264
    %v266 = vrot.slane %v182, 1
    %v267 = vrot.slane %v199, 1
    %v268 = vsel %vm235, %v266, %v267
    %v269 = vrot.slane %v183, 1
    %v270 = vrot.slane %v200, 1
    %v271 = vsel %vm235, %v269, %v270
    %v272 = vrot.slane %v184, 1
    %v273 = vrot.slane %v201, 1
    %v274 = vsel %vm235, %v272, %v273
    %v275 = vrot.slane %v185, 1
    %v276 = vrot.slane %v202, 1
    %v277 = vsel %vm235, %v275, %v276
    %v278 = vrot.slane %v186, 1
    %v279 = vrot.slane %v203, 1
    %v280 = vsel %vm235, %v278, %v279
    %vm281 = vcmask 1045504
    %v282 = vrot.slane %v171, 2
    %v283 = vrot.slane %v188, 2
    %v284 = vsel %vm281, %v282, %v283
    %v285 = vrot.slane %v172, 2
    %v286 = vrot.slane %v189, 2
    %v287 = vsel %vm281, %v285, %v286
    %v288 = vrot.slane %v173, 2
    %v289 = vrot.slane %v190, 2
    %v290 = vsel %vm281, %v288, %v289
    %v291 = vrot.slane %v174, 2
    %v292 = vrot.slane %v191, 2
    %v293 = vsel %vm281, %v291, %v292
    %v294 = vrot.slane %v175, 2
    %v295 = vrot.slane %v192, 2
    %v296 = vsel %vm281, %v294, %v295
    %v297 = vrot.slane %v176, 2
    %v298 = vrot.slane %v193, 2
    %v299 = vsel %vm281, %v297, %v298
    %v300 = vrot.slane %v177, 2
    %v301 = vrot.slane %v194, 2
    %v302 = vsel %vm281, %v300, %v301
    %v303 = vrot.slane %v178, 2
    %v304 = vrot.slane %v195, 2
    %v305 = vsel %vm281, %v303, %v304
    %v306 = vrot.slane %v180, 2
    %v307 = vrot.slane %v197, 2
    %v308 = vsel %vm281, %v306, %v307
    %v309 = vrot.slane %v181, 2
    %v310 = vrot.slane %v198, 2
    %v311 = vsel %vm281, %v309, %v310
    %v312 = vrot.slane %v182, 2
    %v313 = vrot.slane %v199, 2
    %v314 = vsel %vm281, %v312, %v313
    %v315 = vrot.slane %v183, 2
    %v316 = vrot.slane %v200, 2
    %v317 = vsel %vm281, %v315, %v316
    %v318 = vrot.slane %v184, 2
    %v319 = vrot.slane %v201, 2
    %v320 = vsel %vm281, %v318, %v319
    %v321 = vrot.slane %v185, 2
    %v322 = vrot.slane %v202, 2
    %v323 = vsel %vm281, %v321, %v322
    %v324 = vrot.slane %v186, 2
    %v325 = vrot.slane %v203, 2
    %v326 = vsel %vm281, %v324, %v325
    %v331 = vrot.slane %v179, 1
    %v332 = vrot.slane %v196, 1
    %v333 = vsel %vm235, %v331, %v332
    %v334 = vrot.slane %v187, 1
    %v335 = vrot.slane %v204, 1
    %v336 = vsel %vm235, %v334, %v335
    %v337 = vrot.slane %v179, 2
    %v338 = vrot.slane %v196, 2
    %v339 = vsel %vm281, %v337, %v338
    %v340 = vrot.slane %v187, 2
    %v341 = vrot.slane %v204, 2
    %v342 = vsel %vm281, %v340, %v341
    %358 = vrot.lane.b32.xlu0 %v238, 16
    %v359 = vpop.permute.xlu0 %358
    %360 = vrot.lane.b32.xlu0 %v241, 16
    %v361 = vpop.permute.xlu0 %360
    %362 = vrot.lane.b32.xlu0 %v244, 16
    %v363 = vpop.permute.xlu0 %362
    %364 = vrot.lane.b32.xlu0 %v247, 16
    %v365 = vpop.permute.xlu0 %364
    %366 = vrot.lane.b32.xlu0 %v250, 16
    %v367 = vpop.permute.xlu0 %366
    %368 = vrot.lane.b32.xlu0 %v253, 16
    %v369 = vpop.permute.xlu0 %368
    %370 = vrot.lane.b32.xlu0 %v256, 16
    %v371 = vpop.permute.xlu0 %370
    %372 = vrot.lane.b32.xlu0 %v259, 16
    %v373 = vpop.permute.xlu0 %372
    %374 = vrot.lane.b32.xlu0 %v262, 16
    %v375 = vpop.permute.xlu0 %374
    %376 = vrot.lane.b32.xlu0 %v265, 16
    %v377 = vpop.permute.xlu0 %376
    %378 = vrot.lane.b32.xlu0 %v268, 16
    %v379 = vpop.permute.xlu0 %378
    %380 = vrot.lane.b32.xlu0 %v271, 16
    %v381 = vpop.permute.xlu0 %380
    %382 = vrot.lane.b32.xlu0 %v274, 16
    %v383 = vpop.permute.xlu0 %382
    %384 = vrot.lane.b32.xlu0 %v277, 16
    %v385 = vpop.permute.xlu0 %384
    %386 = vrot.lane.b32.xlu0 %v280, 16
    %v387 = vpop.permute.xlu0 %386
    %403 = vrot.lane.b32.xlu0 %v284, 32
    %v404 = vpop.permute.xlu0 %403
    %405 = vrot.lane.b32.xlu0 %v287, 32
    %v406 = vpop.permute.xlu0 %405
    %407 = vrot.lane.b32.xlu0 %v290, 32
    %v408 = vpop.permute.xlu0 %407
    %409 = vrot.lane.b32.xlu0 %v293, 32
    %v410 = vpop.permute.xlu0 %409
    %411 = vrot.lane.b32.xlu0 %v296, 32
    %v412 = vpop.permute.xlu0 %411
    %413 = vrot.lane.b32.xlu0 %v299, 32
    %v414 = vpop.permute.xlu0 %413
    %415 = vrot.lane.b32.xlu0 %v302, 32
    %v416 = vpop.permute.xlu0 %415
    %417 = vrot.lane.b32.xlu0 %v305, 32
    %v418 = vpop.permute.xlu0 %417
    %419 = vrot.lane.b32.xlu0 %v308, 32
    %v420 = vpop.permute.xlu0 %419
    %421 = vrot.lane.b32.xlu0 %v311, 32
    %v422 = vpop.permute.xlu0 %421
    %423 = vrot.lane.b32.xlu0 %v314, 32
    %v424 = vpop.permute.xlu0 %423
    %425 = vrot.lane.b32.xlu0 %v317, 32
    %v426 = vpop.permute.xlu0 %425
    %427 = vrot.lane.b32.xlu0 %v320, 32
    %v428 = vpop.permute.xlu0 %427
    %429 = vrot.lane.b32.xlu0 %v323, 32
    %v430 = vpop.permute.xlu0 %429
    %431 = vrot.lane.b32.xlu0 %v326, 32
    %v432 = vpop.permute.xlu0 %431
    %448 = vrot.lane.b32.xlu0 %v172, 48
    %v449 = vpop.permute.xlu0 %448
    %450 = vrot.lane.b32.xlu0 %v173, 48
    %v451 = vpop.permute.xlu0 %450
    %452 = vrot.lane.b32.xlu0 %v174, 48
    %v453 = vpop.permute.xlu0 %452
    %454 = vrot.lane.b32.xlu0 %v175, 48
    %v455 = vpop.permute.xlu0 %454
    %456 = vrot.lane.b32.xlu0 %v176, 48
    %v457 = vpop.permute.xlu0 %456
    %458 = vrot.lane.b32.xlu0 %v177, 48
    %v459 = vpop.permute.xlu0 %458
    %460 = vrot.lane.b32.xlu0 %v178, 48
    %v461 = vpop.permute.xlu0 %460
    %462 = vrot.lane.b32.xlu0 %v179, 48
    %v463 = vpop.permute.xlu0 %462
    %464 = vrot.lane.b32.xlu0 %v180, 48
    %v465 = vpop.permute.xlu0 %464
    %466 = vrot.lane.b32.xlu0 %v181, 48
    %v467 = vpop.permute.xlu0 %466
    %468 = vrot.lane.b32.xlu0 %v182, 48
    %v469 = vpop.permute.xlu0 %468
    %470 = vrot.lane.b32.xlu0 %v183, 48
    %v471 = vpop.permute.xlu0 %470
    %472 = vrot.lane.b32.xlu0 %v184, 48
    %v473 = vpop.permute.xlu0 %472
    %474 = vrot.lane.b32.xlu0 %v185, 48
    %v475 = vpop.permute.xlu0 %474
    %476 = vrot.lane.b32.xlu0 %v186, 48
    %v477 = vpop.permute.xlu0 %476
    %478 = vrot.lane.b32.xlu0 %v187, 48
    %v479 = vpop.permute.xlu0 %478
    %496 = vrot.lane.b32.xlu0 %v241, 64
    %v497 = vpop.permute.xlu0 %496
    %498 = vrot.lane.b32.xlu0 %v244, 64
    %v499 = vpop.permute.xlu0 %498
    %500 = vrot.lane.b32.xlu0 %v247, 64
    %v501 = vpop.permute.xlu0 %500
    %502 = vrot.lane.b32.xlu0 %v250, 64
    %v503 = vpop.permute.xlu0 %502
    %504 = vrot.lane.b32.xlu0 %v253, 64
    %v505 = vpop.permute.xlu0 %504
    %506 = vrot.lane.b32.xlu0 %v256, 64
    %v507 = vpop.permute.xlu0 %506
    %508 = vrot.lane.b32.xlu0 %v259, 64
    %v509 = vpop.permute.xlu0 %508
    %510 = vrot.lane.b32.xlu0 %v333, 64
    %v511 = vpop.permute.xlu0 %510
    %512 = vrot.lane.b32.xlu0 %v262, 64
    %v513 = vpop.permute.xlu0 %512
    %514 = vrot.lane.b32.xlu0 %v265, 64
    %v515 = vpop.permute.xlu0 %514
    %516 = vrot.lane.b32.xlu0 %v268, 64
    %v517 = vpop.permute.xlu0 %516
    %518 = vrot.lane.b32.xlu0 %v271, 64
    %v519 = vpop.permute.xlu0 %518
    %520 = vrot.lane.b32.xlu0 %v274, 64
    %v521 = vpop.permute.xlu0 %520
    %522 = vrot.lane.b32.xlu0 %v277, 64
    %v523 = vpop.permute.xlu0 %522
    %524 = vrot.lane.b32.xlu0 %v280, 64
    %v525 = vpop.permute.xlu0 %524
    %526 = vrot.lane.b32.xlu0 %v336, 64
    %v527 = vpop.permute.xlu0 %526
    %544 = vrot.lane.b32.xlu0 %v287, 80
    %v545 = vpop.permute.xlu0 %544
    %546 = vrot.lane.b32.xlu0 %v290, 80
    %v547 = vpop.permute.xlu0 %546
    %548 = vrot.lane.b32.xlu0 %v293, 80
    %v549 = vpop.permute.xlu0 %548
    %550 = vrot.lane.b32.xlu0 %v296, 80
    %v551 = vpop.permute.xlu0 %550
    %552 = vrot.lane.b32.xlu0 %v299, 80
    %v553 = vpop.permute.xlu0 %552
    %554 = vrot.lane.b32.xlu0 %v302, 80
    %v555 = vpop.permute.xlu0 %554
    %556 = vrot.lane.b32.xlu0 %v305, 80
    %v557 = vpop.permute.xlu0 %556
    %558 = vrot.lane.b32.xlu0 %v339, 80
    %v559 = vpop.permute.xlu0 %558
    %560 = vrot.lane.b32.xlu0 %v308, 80
    %v561 = vpop.permute.xlu0 %560
    %562 = vrot.lane.b32.xlu0 %v311, 80
    %v563 = vpop.permute.xlu0 %562
    %564 = vrot.lane.b32.xlu0 %v314, 80
    %v565 = vpop.permute.xlu0 %564
    %566 = vrot.lane.b32.xlu0 %v317, 80
    %v567 = vpop.permute.xlu0 %566
    %568 = vrot.lane.b32.xlu0 %v320, 80
    %v569 = vpop.permute.xlu0 %568
    %570 = vrot.lane.b32.xlu0 %v323, 80
    %v571 = vpop.permute.xlu0 %570
    %572 = vrot.lane.b32.xlu0 %v326, 80
    %v573 = vpop.permute.xlu0 %572
    %574 = vrot.lane.b32.xlu0 %v342, 80
    %v575 = vpop.permute.xlu0 %574
    %592 = vrot.lane.b32.xlu0 %v173, 96
    %v593 = vpop.permute.xlu0 %592
    %594 = vrot.lane.b32.xlu0 %v174, 96
    %v595 = vpop.permute.xlu0 %594
    %596 = vrot.lane.b32.xlu0 %v175, 96
    %v597 = vpop.permute.xlu0 %596
    %598 = vrot.lane.b32.xlu0 %v176, 96
    %v599 = vpop.permute.xlu0 %598
    %600 = vrot.lane.b32.xlu0 %v177, 96
    %v601 = vpop.permute.xlu0 %600
    %602 = vrot.lane.b32.xlu0 %v178, 96
    %v603 = vpop.permute.xlu0 %602
    %604 = vrot.lane.b32.xlu0 %v179, 96
    %v605 = vpop.permute.xlu0 %604
    %606 = vrot.lane.b32.xlu0 %v171, 96
    %v607 = vpop.permute.xlu0 %606
    %608 = vrot.lane.b32.xlu0 %v181, 96
    %v609 = vpop.permute.xlu0 %608
    %610 = vrot.lane.b32.xlu0 %v182, 96
    %v611 = vpop.permute.xlu0 %610
    %612 = vrot.lane.b32.xlu0 %v183, 96
    %v613 = vpop.permute.xlu0 %612
    %614 = vrot.lane.b32.xlu0 %v184, 96
    %v615 = vpop.permute.xlu0 %614
    %616 = vrot.lane.b32.xlu0 %v185, 96
    %v617 = vpop.permute.xlu0 %616
    %618 = vrot.lane.b32.xlu0 %v186, 96
    %v619 = vpop.permute.xlu0 %618
    %620 = vrot.lane.b32.xlu0 %v187, 96
    %v621 = vpop.permute.xlu0 %620
    %637 = vrot.lane.b32.xlu0 %v244, 112
    %v638 = vpop.permute.xlu0 %637
    %639 = vrot.lane.b32.xlu0 %v247, 112
    %v640 = vpop.permute.xlu0 %639
    %641 = vrot.lane.b32.xlu0 %v250, 112
    %v642 = vpop.permute.xlu0 %641
    %643 = vrot.lane.b32.xlu0 %v253, 112
    %v644 = vpop.permute.xlu0 %643
    %645 = vrot.lane.b32.xlu0 %v256, 112
    %v646 = vpop.permute.xlu0 %645
    %647 = vrot.lane.b32.xlu0 %v259, 112
    %v648 = vpop.permute.xlu0 %647
    %649 = vrot.lane.b32.xlu0 %v333, 112
    %v650 = vpop.permute.xlu0 %649
    %651 = vrot.lane.b32.xlu0 %v238, 112
    %v652 = vpop.permute.xlu0 %651
    %653 = vrot.lane.b32.xlu0 %v265, 112
    %v654 = vpop.permute.xlu0 %653
    %655 = vrot.lane.b32.xlu0 %v268, 112
    %v656 = vpop.permute.xlu0 %655
    %657 = vrot.lane.b32.xlu0 %v271, 112
    %v658 = vpop.permute.xlu0 %657
    %659 = vrot.lane.b32.xlu0 %v274, 112
    %v660 = vpop.permute.xlu0 %659
    %661 = vrot.lane.b32.xlu0 %v277, 112
    %v662 = vpop.permute.xlu0 %661
    %663 = vrot.lane.b32.xlu0 %v280, 112
    %v664 = vpop.permute.xlu0 %663
    %665 = vrot.lane.b32.xlu0 %v336, 112
    %v666 = vpop.permute.xlu0 %665
    %vm682 = vcmask 130048
    %v683 = vsel %vm682, %v171, %v359
    %v684 = vsel %vm682, %v172, %v361
    %v685 = vsel %vm682, %v173, %v363
    %v686 = vsel %vm682, %v174, %v365
    %v687 = vsel %vm682, %v175, %v367
    %v688 = vsel %vm682, %v176, %v369
    %v689 = vsel %vm682, %v177, %v371
    %v690 = vsel %vm682, %v178, %v373
    %v691 = vsel %vm682, %v180, %v375
    %v692 = vsel %vm682, %v181, %v377
    %v693 = vsel %vm682, %v182, %v379
    %v694 = vsel %vm682, %v183, %v381
    %v695 = vsel %vm682, %v184, %v383
    %v696 = vsel %vm682, %v185, %v385
    %v697 = vsel %vm682, %v186, %v387
    %vm698 = vcmask 261120
    %v699 = vsel %vm698, %v683, %v404
    %v700 = vsel %vm698, %v684, %v406
    %v701 = vsel %vm698, %v685, %v408
    %v702 = vsel %vm698, %v686, %v410
    %v703 = vsel %vm698, %v687, %v412
    %v704 = vsel %vm698, %v688, %v414
    %v705 = vsel %vm698, %v689, %v416
    %v706 = vsel %vm698, %v690, %v418
    %v707 = vsel %vm698, %v691, %v420
    %v708 = vsel %vm698, %v692, %v422
    %v709 = vsel %vm698, %v693, %v424
    %v710 = vsel %vm698, %v694, %v426
    %v711 = vsel %vm698, %v695, %v428
    %v712 = vsel %vm698, %v696, %v430
    %v713 = vsel %vm698, %v697, %v432
    %vm714 = vcmask 392192
    %v715 = vsel %vm714, %v699, %v449
    %v716 = vsel %vm714, %v700, %v451
    %v717 = vsel %vm714, %v701, %v453
    %v718 = vsel %vm714, %v702, %v455
    %v719 = vsel %vm714, %v703, %v457
    %v720 = vsel %vm714, %v704, %v459
    %v721 = vsel %vm714, %v705, %v461
    %v722 = vsel %vm714, %v706, %v463
    %v723 = vsel %vm714, %v699, %v465
    %v724 = vsel %vm714, %v707, %v467
    %v725 = vsel %vm714, %v708, %v469
    %v726 = vsel %vm714, %v709, %v471
    %v727 = vsel %vm714, %v710, %v473
    %v728 = vsel %vm714, %v711, %v475
    %v729 = vsel %vm714, %v712, %v477
    %v730 = vsel %vm714, %v713, %v479
    %vm731 = vcmask 523264
    %v732 = vsel %vm731, %v715, %v497
    %v733 = vsel %vm731, %v716, %v499
    %v734 = vsel %vm731, %v717, %v501
    %v735 = vsel %vm731, %v718, %v503
    %v736 = vsel %vm731, %v719, %v505
    %v737 = vsel %vm731, %v720, %v507
    %v738 = vsel %vm731, %v721, %v509
    %v739 = vsel %vm731, %v722, %v511
    %v740 = vsel %vm731, %v723, %v513
    %v741 = vsel %vm731, %v724, %v515
    %v742 = vsel %vm731, %v725, %v517
    %v743 = vsel %vm731, %v726, %v519
    %v744 = vsel %vm731, %v727, %v521
    %v745 = vsel %vm731, %v728, %v523
    %v746 = vsel %vm731, %v729, %v525
    %v747 = vsel %vm731, %v730, %v527
    %vm748 = vcmask 654336
    %v749 = vsel %vm748, %v732, %v545
    %v750 = vsel %vm748, %v733, %v547
    %v751 = vsel %vm748, %v734, %v549
    %v752 = vsel %vm748, %v735, %v551
    %v753 = vsel %vm748, %v736, %v553
    %v754 = vsel %vm748, %v737, %v555
    %v755 = vsel %vm748, %v738, %v557
    %v756 = vsel %vm748, %v739, %v559
    %v757 = vsel %vm748, %v740, %v561
    %v758 = vsel %vm748, %v741, %v563
    %v759 = vsel %vm748, %v742, %v565
    %v760 = vsel %vm748, %v743, %v567
    %v761 = vsel %vm748, %v744, %v569
    %v762 = vsel %vm748, %v745, %v571
    %v763 = vsel %vm748, %v746, %v573
    %v764 = vsel %vm748, %v747, %v575
    %vm765 = vcmask 785408
    %v766 = vsel %vm765, %v749, %v593
    %v767 = vsel %vm765, %v750, %v595
    %v768 = vsel %vm765, %v751, %v597
    %v769 = vsel %vm765, %v752, %v599
    %v770 = vsel %vm765, %v753, %v601
    %v771 = vsel %vm765, %v754, %v603
    %v772 = vsel %vm765, %v755, %v605
    %v773 = vsel %vm765, %v756, %v607
    %v774 = vsel %vm765, %v757, %v609
    %v775 = vsel %vm765, %v758, %v611
    %v776 = vsel %vm765, %v759, %v613
    %v777 = vsel %vm765, %v760, %v615
    %v778 = vsel %vm765, %v761, %v617
    %v779 = vsel %vm765, %v762, %v619
    %v780 = vsel %vm765, %v763, %v621
    %v781 = vsel %vm765, %v764, %v607
    %vm782 = vcmask 916480
    %v783 = vsel %vm782, %v766, %v638
    %v784 = vsel %vm782, %v767, %v640
    %v785 = vsel %vm782, %v768, %v642
    %v786 = vsel %vm782, %v769, %v644
    %v787 = vsel %vm782, %v770, %v646
    %v788 = vsel %vm782, %v771, %v648
    %v789 = vsel %vm782, %v772, %v650
    %v790 = vsel %vm782, %v773, %v652
    %v791 = vsel %vm782, %v774, %v654
    %v792 = vsel %vm782, %v775, %v656
    %v793 = vsel %vm782, %v776, %v658
    %v794 = vsel %vm782, %v777, %v660
    %v795 = vsel %vm782, %v778, %v662
    %v796 = vsel %vm782, %v779, %v664
    %v797 = vsel %vm782, %v780, %v666
    %v798 = vsel %vm782, %v781, %v652
    %v799 = vpack.c.bf16 %v784, %v783
    %v800 = vpack.c.bf16 %v293, %v290
    %v801 = vpack.c.bf16 %v786, %v785
    %v802 = vpack.c.bf16 %v299, %v296
    %v803 = vpack.c.bf16 %v788, %v787
    %v804 = vpack.c.bf16 %v305, %v302
    %v805 = vpack.c.bf16 %v790, %v789
    %v806 = vpack.c.bf16 %v284, %v339
    %v807 = vpack.c.bf16 %v792, %v791
    %v808 = vpack.c.bf16 %v314, %v311
    %v809 = vpack.c.bf16 %v794, %v793
    %v810 = vpack.c.bf16 %v320, %v317
    %v811 = vpack.c.bf16 %v796, %v795
    %v812 = vpack.c.bf16 %v326, %v323
    %v813 = vpack.c.bf16 %v798, %v797
    %v814 = vpack.c.bf16 %v284, %v342
    %v833 = vunpack.c.l.b16 %v62
    %v834 = vunpack.c.l.b16 %v63
    %v835 = vunpack.c.l.b16 %v64
    %v836 = vunpack.c.l.b16 %v65
    %v837 = vunpack.c.l.b16 %v66
    %v838 = vunpack.c.l.b16 %v67
    %v839 = vunpack.c.l.b16 %v68
    %v840 = vunpack.c.l.b16 %v69
    %v841 = vunpack.c.l.b16 %v70
    %v842 = vunpack.c.l.b16 %v71
    %v843 = vunpack.c.l.b16 %v72
    %v844 = vunpack.c.l.b16 %v73
    %v845 = vunpack.c.l.b16 %v74
    %v846 = vunpack.c.l.b16 %v75
    %v847 = vunpack.c.l.b16 %v76
    %v848 = vunpack.c.l.b16 %v77
    %v849 = vunpack.c.l.b16 %v78
    %v850 = vunpack.c.l.b16 %v79
    %v851 = vpack.c.b16 %v834, %v833
    %v852 = vpack.c.b16 %v836, %v835
    %v853 = vpack.c.b16 %v838, %v837
    %v854 = vpack.c.b16 %v840, %v839
    %v855 = vpack.c.b16 %v842, %v841
    %v856 = vpack.c.b16 %v844, %v843
    %v857 = vpack.c.b16 %v846, %v845
    %v858 = vpack.c.b16 %v848, %v847
    %v859 = vpack.c.b16 %v850, %v849
    %v870 = vsel %vm682, %v800, 0
    %v873 = vsel %vm682, %v802, 0
    %v876 = vsel %vm682, %v804, 0
    %v879 = vsel %vm682, %v806, 0
    %v882 = vsel %vm682, %v808, 0
    %v885 = vsel %vm682, %v810, 0
    %v888 = vsel %vm682, %v812, 0
    %v891 = vsel %vm682, %v814, 0
    %893 = vmatprep.subr.bf16.mxu0 0
    %894 = vmatpush1.bf16.msra.mxu0 %v858
    %895 = vmatprep.subr.bf16.mxu0 0
    %896 = vmatpush1.bf16.msra.mxu0 %v857
    %897 = vmatprep.subr.bf16.mxu0 0
    %898 = vmatpush1.bf16.msra.mxu0 %v856
    %899 = vmatprep.subr.bf16.mxu0 0
    %900 = vmatpush1.bf16.msra.mxu0 %v855
    %901 = vmatprep.subr.bf16.mxu0 0
    %902 = vmatpush1.bf16.msra.mxu0 %v854
    %903 = vmatprep.subr.bf16.mxu0 0
    %904 = vmatpush1.bf16.msra.mxu0 %v853
    %905 = vmatprep.subr.bf16.mxu0 0
    %906 = vmatpush1.bf16.msra.mxu0 %v852
    %907 = vmatprep.subr.bf16.mxu0 0
    %908 = vmatpush1.bf16.msra.mxu0 %v851
    %909 = vmatprep.subr.bf16.mxu0 0
    %910 = vmatpush2.bf16.msra.mxu0 0
    %911 = vmatprep.subr.bf16.mxu0 0
    %912 = vmatpush2.bf16.msra.mxu0 0
    %913 = vmatprep.subr.bf16.mxu0 0
    %914 = vmatpush2.bf16.msra.mxu0 0
    %915 = vmatprep.subr.bf16.mxu0 0
    %916 = vmatpush2.bf16.msra.mxu0 0
    %917 = vmatprep.subr.bf16.mxu0 0
    %918 = vmatpush2.bf16.msra.mxu0 0
    %919 = vmatprep.subr.bf16.mxu0 0
    %920 = vmatpush2.bf16.msra.mxu0 0
    %921 = vmatprep.subr.bf16.mxu0 0
    %922 = vmatpush2.bf16.msra.mxu0 0
    %923 = vmatprep.subr.bf16.mxu0 0
    %924 = vmatpush2.bf16.msra.mxu0 %v859
    %925 = vmatprep.mubr.bf16.mxu0 %v870
    %926 = vmatmul.mubr.bf16.gmra.mxu0 %v799
    %v927 = vpop.f32.mrf.mxu0
    %v928 = vadd.f32 0.0, %v927
    %v929 = vpop.f32.mrf.mxu0
    %v930 = vpop.f32.mrf.mxu0
    %v931 = vadd.f32 0.0, %v930
    %v932 = vpop.f32.mrf.mxu0
    %933 = vmatprep.mubr.bf16.mxu0 %v873
    %934 = vmatmul.mubr.bf16.gmra.mxu0 %v801
    %v935 = vpop.f32.mrf.mxu0
    %v936 = vadd.f32 0.0, %v935
    %v937 = vpop.f32.mrf.mxu0
    %v938 = vpop.f32.mrf.mxu0
    %v939 = vadd.f32 0.0, %v938
    %v940 = vpop.f32.mrf.mxu0
    %941 = vmatprep.mubr.bf16.mxu0 %v876
    %942 = vmatmul.mubr.bf16.gmra.mxu0 %v803
    %v943 = vpop.f32.mrf.mxu0
    %v944 = vadd.f32 0.0, %v943
    %v945 = vpop.f32.mrf.mxu0
    %v946 = vpop.f32.mrf.mxu0
    %v947 = vadd.f32 0.0, %v946
    %v948 = vpop.f32.mrf.mxu0
    %949 = vmatprep.mubr.bf16.mxu0 %v879
    %950 = vmatmul.mubr.bf16.gmra.mxu0 %v805
    %v951 = vpop.f32.mrf.mxu0
    %v952 = vadd.f32 0.0, %v951
    %v953 = vpop.f32.mrf.mxu0
    %v954 = vpop.f32.mrf.mxu0
    %v955 = vadd.f32 0.0, %v954
    %v956 = vpop.f32.mrf.mxu0
    %957 = vmatprep.mubr.bf16.mxu0 %v882
    %958 = vmatmul.mubr.bf16.gmra.mxu0 %v807
    %v959 = vpop.f32.mrf.mxu0
    %v960 = vadd.f32 0.0, %v959
    %v961 = vpop.f32.mrf.mxu0
    %v962 = vpop.f32.mrf.mxu0
    %v963 = vadd.f32 0.0, %v962
    %v964 = vpop.f32.mrf.mxu0
    %965 = vmatprep.mubr.bf16.mxu0 %v885
    %966 = vmatmul.mubr.bf16.gmra.mxu0 %v809
    %v967 = vpop.f32.mrf.mxu0
    %v968 = vadd.f32 0.0, %v967
    %v969 = vpop.f32.mrf.mxu0
    %v970 = vpop.f32.mrf.mxu0
    %v971 = vadd.f32 0.0, %v970
    %v972 = vpop.f32.mrf.mxu0
    %973 = vmatprep.mubr.bf16.mxu0 %v888
    %974 = vmatmul.mubr.bf16.gmra.mxu0 %v811
    %v975 = vpop.f32.mrf.mxu0
    %v976 = vadd.f32 0.0, %v975
    %v977 = vpop.f32.mrf.mxu0
    %v978 = vpop.f32.mrf.mxu0
    %v979 = vadd.f32 0.0, %v978
    %v980 = vpop.f32.mrf.mxu0
    %981 = vmatprep.mubr.bf16.mxu0 %v891
    %982 = vmatmul.mubr.bf16.gmra.mxu0 %v813
    %v983 = vpop.f32.mrf.mxu0
    %v984 = vadd.f32 0.0, %v983
    %v985 = vpop.f32.mrf.mxu0
    %v986 = vpop.f32.mrf.mxu0
    %v987 = vadd.f32 0.0, %v986
    %v988 = vpop.f32.mrf.mxu0
    %989 = vdwg.mxu0
    %v990 = vsel %vm698, %v928, 0.0
    %v991 = vsel %vm698, %v931, 0.0
    %v992 = vadd.f32 %v990, %v991
    %v993 = vsel %vm698, %v936, 0.0
    %v994 = vadd.f32 %v992, %v993
    %v995 = vsel %vm698, %v939, 0.0
    %v996 = vadd.f32 %v994, %v995
    %v997 = vsel %vm698, %v944, 0.0
    %v998 = vadd.f32 %v996, %v997
    %v999 = vsel %vm698, %v947, 0.0
    %v1000 = vadd.f32 %v998, %v999
    %v1001 = vsel %vm698, %v952, 0.0
    %v1002 = vadd.f32 %v1000, %v1001
    %v1003 = vsel %vm698, %v955, 0.0
    %v1004 = vadd.f32 %v1002, %v1003
    %v1005 = vsel %vm698, %v960, 0.0
    %v1006 = vadd.f32 %v1004, %v1005
    %v1007 = vsel %vm698, %v963, 0.0
    %v1008 = vadd.f32 %v1006, %v1007
    %v1009 = vsel %vm698, %v968, 0.0
    %v1010 = vadd.f32 %v1008, %v1009
    %v1011 = vsel %vm698, %v971, 0.0
    %v1012 = vadd.f32 %v1010, %v1011
    %v1013 = vsel %vm698, %v976, 0.0
    %v1014 = vadd.f32 %v1012, %v1013
    %v1015 = vsel %vm698, %v979, 0.0
    %v1016 = vadd.f32 %v1014, %v1015
    %v1017 = vsel %vm698, %v984, 0.0
    %v1018 = vadd.f32 %v1016, %v1017
    %v1019 = vsel %vm698, %v987, 0.0
    %v1020 = vadd.f32 %v1018, %v1019
    %v1021 = vrot.slane %v1020, 4
    %v1022 = vadd.f32 %v1020, %v1021
    %v1023 = vrot.slane %v1022, 2
    %v1024 = vadd.f32 %v1022, %v1023
    %v1025 = vrot.slane %v1024, 1
    %v1026 = vadd.f32 %v1024, %v1025
    %v1027 = vrcp.pop 128.0
    %v1028 = vmul.f32 %v1026, %v1027
    %v1029 = vsub.f32 %v928, %v1028
    %v1030 = vsub.f32 %v931, %v1028
    %v1031 = vsub.f32 %v936, %v1028
    %v1032 = vsub.f32 %v939, %v1028
    %v1033 = vsub.f32 %v944, %v1028
    %v1034 = vsub.f32 %v947, %v1028
    %v1035 = vsub.f32 %v952, %v1028
    %v1036 = vsub.f32 %v955, %v1028
    %v1037 = vsub.f32 %v960, %v1028
    %v1038 = vsub.f32 %v963, %v1028
    %v1039 = vsub.f32 %v968, %v1028
    %v1040 = vsub.f32 %v971, %v1028
    %v1041 = vsub.f32 %v976, %v1028
    %v1042 = vsub.f32 %v979, %v1028
    %v1043 = vsub.f32 %v984, %v1028
    %v1044 = vsub.f32 %v987, %v1028
    %v1045 = vmul.f32 %v1029, %v1029
    %v1046 = vmul.f32 %v1030, %v1030
    %v1047 = vmul.f32 %v1031, %v1031
    %v1048 = vmul.f32 %v1032, %v1032
    %v1049 = vmul.f32 %v1033, %v1033
    %v1050 = vmul.f32 %v1034, %v1034
    %v1051 = vmul.f32 %v1035, %v1035
    %v1052 = vmul.f32 %v1036, %v1036
    %v1053 = vmul.f32 %v1037, %v1037
    %v1054 = vmul.f32 %v1038, %v1038
    %v1055 = vmul.f32 %v1039, %v1039
    %v1056 = vmul.f32 %v1040, %v1040
    %v1057 = vmul.f32 %v1041, %v1041
    %v1058 = vmul.f32 %v1042, %v1042
    %v1059 = vmul.f32 %v1043, %v1043
    %v1060 = vmul.f32 %v1044, %v1044
    %v1061 = vsel %vm698, %v1045, 0.0
    %v1062 = vsel %vm698, %v1046, 0.0
    %v1063 = vadd.f32 %v1061, %v1062
    %v1064 = vsel %vm698, %v1047, 0.0
    %v1065 = vadd.f32 %v1063, %v1064
    %v1066 = vsel %vm698, %v1048, 0.0
    %v1067 = vadd.f32 %v1065, %v1066
    %v1068 = vsel %vm698, %v1049, 0.0
    %v1069 = vadd.f32 %v1067, %v1068
    %v1070 = vsel %vm698, %v1050, 0.0
    %v1071 = vadd.f32 %v1069, %v1070
    %v1072 = vsel %vm698, %v1051, 0.0
    %v1073 = vadd.f32 %v1071, %v1072
    %v1074 = vsel %vm698, %v1052, 0.0
    %v1075 = vadd.f32 %v1073, %v1074
    %v1076 = vsel %vm698, %v1053, 0.0
    %v1077 = vadd.f32 %v1075, %v1076
    %v1078 = vsel %vm698, %v1054, 0.0
    %v1079 = vadd.f32 %v1077, %v1078
    %v1080 = vsel %vm698, %v1055, 0.0
    %v1081 = vadd.f32 %v1079, %v1080
    %v1082 = vsel %vm698, %v1056, 0.0
    %v1083 = vadd.f32 %v1081, %v1082
    %v1084 = vsel %vm698, %v1057, 0.0
    %v1085 = vadd.f32 %v1083, %v1084
    %v1086 = vsel %vm698, %v1058, 0.0
    %v1087 = vadd.f32 %v1085, %v1086
    %v1088 = vsel %vm698, %v1059, 0.0
    %v1089 = vadd.f32 %v1087, %v1088
    %v1090 = vsel %vm698, %v1060, 0.0
    %v1091 = vadd.f32 %v1089, %v1090
    %v1092 = vrot.slane %v1091, 4
    %v1093 = vadd.f32 %v1091, %v1092
    %v1094 = vrot.slane %v1093, 2
    %v1095 = vadd.f32 %v1093, %v1094
    %v1096 = vrot.slane %v1095, 1
    %v1097 = vadd.f32 %v1095, %v1096
    %v1098 = vmul.f32 %v1097, %v1027
    %v1099 = vadd.f32 %v1098, 1e-05
    %v1100 = vrsqrt.pop %v1099
    %v1101 = vmul.f32 %v80, %v1100
    %v1103 = vlaneseq
    %v1104 = vshrl.u32 %v1103, 7
    %v1105 = vsub.s32 0, %v1104
    %v1106 = vrot.slane %v1101, %v1105
    %v1108 = vmul.f32 %v1029, %v1106
    %v1109 = vmul.f32 %v1030, %v1106
    %v1110 = vmul.f32 %v1031, %v1106
    %v1111 = vmul.f32 %v1032, %v1106
    %v1112 = vmul.f32 %v1033, %v1106
    %v1113 = vmul.f32 %v1034, %v1106
    %v1114 = vmul.f32 %v1035, %v1106
    %v1115 = vmul.f32 %v1036, %v1106
    %v1116 = vmul.f32 %v1037, %v1106
    %v1117 = vmul.f32 %v1038, %v1106
    %v1118 = vmul.f32 %v1039, %v1106
    %v1119 = vmul.f32 %v1040, %v1106
    %v1120 = vmul.f32 %v1041, %v1106
    %v1121 = vmul.f32 %v1042, %v1106
    %v1122 = vmul.f32 %v1043, %v1106
    %v1123 = vmul.f32 %v1044, %v1106
    %v1125 = vlaneseq
    %v1126 = vshrl.u32 %v1125, 7
    %v1127 = vsub.s32 0, %v1126
    %v1128 = vrot.slane %v81, %v1127
    %v1130 = vadd.f32 %v1108, %v1128
    %v1131 = vadd.f32 %v1109, %v1128
    %v1132 = vadd.f32 %v1110, %v1128
    %v1133 = vadd.f32 %v1111, %v1128
    %v1134 = vadd.f32 %v1112, %v1128
    %v1135 = vadd.f32 %v1113, %v1128
    %v1136 = vadd.f32 %v1114, %v1128
    %v1137 = vadd.f32 %v1115, %v1128
    %v1138 = vadd.f32 %v1116, %v1128
    %v1139 = vadd.f32 %v1117, %v1128
    %v1140 = vadd.f32 %v1118, %v1128
    %v1141 = vadd.f32 %v1119, %v1128
    %v1142 = vadd.f32 %v1120, %v1128
    %v1143 = vadd.f32 %v1121, %v1128
    %v1144 = vadd.f32 %v1122, %v1128
    %v1145 = vadd.f32 %v1123, %v1128
    %v1146 = vmax.f32 %v1130, 0.0
    %v1147 = vmax.f32 %v1131, 0.0
    %v1148 = vmax.f32 %v1132, 0.0
    %v1149 = vmax.f32 %v1133, 0.0
    %v1150 = vmax.f32 %v1134, 0.0
    %v1151 = vmax.f32 %v1135, 0.0
    %v1152 = vmax.f32 %v1136, 0.0
    %v1153 = vmax.f32 %v1137, 0.0
    %v1154 = vmax.f32 %v1138, 0.0
    %v1155 = vmax.f32 %v1139, 0.0
    %v1156 = vmax.f32 %v1140, 0.0
    %v1157 = vmax.f32 %v1141, 0.0
    %v1158 = vmax.f32 %v1142, 0.0
    %v1159 = vmax.f32 %v1143, 0.0
    %v1160 = vmax.f32 %v1144, 0.0
    %v1161 = vmax.f32 %v1145, 0.0
    %v1178 = vrot.slane %v1146, 7
    %v1179 = vrot.slane %v1147, 7
    %v1180 = vrot.slane %v1148, 7
    %v1181 = vrot.slane %v1149, 7
    %v1182 = vrot.slane %v1150, 7
    %v1183 = vrot.slane %v1151, 7
    %v1184 = vrot.slane %v1152, 7
    %v1185 = vrot.slane %v1153, 7
    %v1186 = vrot.slane %v1154, 7
    %v1187 = vrot.slane %v1155, 7
    %v1188 = vrot.slane %v1156, 7
    %v1189 = vrot.slane %v1157, 7
    %v1190 = vrot.slane %v1158, 7
    %v1191 = vrot.slane %v1159, 7
    %v1192 = vrot.slane %v1160, 7
    %v1193 = vrot.slane %v1161, 7
    %v1210 = vsel %vm170, 0.0, %v1178
    %v1211 = vsel %vm170, 0.0, %v1179
    %v1212 = vsel %vm170, 0.0, %v1180
    %v1213 = vsel %vm170, 0.0, %v1181
    %v1214 = vsel %vm170, 0.0, %v1182
    %v1215 = vsel %vm170, 0.0, %v1183
    %v1216 = vsel %vm170, 0.0, %v1184
    %v1217 = vsel %vm170, 0.0, %v1185
    %v1218 = vsel %vm170, 0.0, %v1186
    %v1219 = vsel %vm170, 0.0, %v1187
    %v1220 = vsel %vm170, 0.0, %v1188
    %v1221 = vsel %vm170, 0.0, %v1189
    %v1222 = vsel %vm170, 0.0, %v1190
    %v1223 = vsel %vm170, 0.0, %v1191
    %v1224 = vsel %vm170, 0.0, %v1192
    %v1225 = vsel %vm170, 0.0, %v1193
    %v1226 = vsel %vm170, %v1178, 0.0
    %v1227 = vsel %vm170, %v1179, 0.0
    %v1228 = vsel %vm170, %v1180, 0.0
    %v1229 = vsel %vm170, %v1181, 0.0
    %v1230 = vsel %vm170, %v1182, 0.0
    %v1231 = vsel %vm170, %v1183, 0.0
    %v1232 = vsel %vm170, %v1184, 0.0
    %v1233 = vsel %vm170, %v1185, 0.0
    %v1234 = vsel %vm170, %v1186, 0.0
    %v1235 = vsel %vm170, %v1187, 0.0
    %v1236 = vsel %vm170, %v1188, 0.0
    %v1237 = vsel %vm170, %v1189, 0.0
    %v1238 = vsel %vm170, %v1190, 0.0
    %v1239 = vsel %vm170, %v1191, 0.0
    %v1240 = vsel %vm170, %v1192, 0.0
    %v1241 = vsel %vm170, %v1193, 0.0
    %v1270 = vrot.slane %v1210, 1
    %v1271 = vrot.slane %v1226, 1
    %v1272 = vsel %vm235, %v1270, %v1271
    %v1273 = vrot.slane %v1211, 1
    %v1274 = vrot.slane %v1227, 1
    %v1275 = vsel %vm235, %v1273, %v1274
    %v1276 = vrot.slane %v1212, 1
    %v1277 = vrot.slane %v1228, 1
    %v1278 = vsel %vm235, %v1276, %v1277
    %v1279 = vrot.slane %v1213, 1
    %v1280 = vrot.slane %v1229, 1
    %v1281 = vsel %vm235, %v1279, %v1280
    %v1282 = vrot.slane %v1214, 1
    %v1283 = vrot.slane %v1230, 1
    %v1284 = vsel %vm235, %v1282, %v1283
    %v1285 = vrot.slane %v1215, 1
    %v1286 = vrot.slane %v1231, 1
    %v1287 = vsel %vm235, %v1285, %v1286
    %v1288 = vrot.slane %v1216, 1
    %v1289 = vrot.slane %v1232, 1
    %v1290 = vsel %vm235, %v1288, %v1289
    %v1291 = vrot.slane %v1218, 1
    %v1292 = vrot.slane %v1234, 1
    %v1293 = vsel %vm235, %v1291, %v1292
    %v1294 = vrot.slane %v1219, 1
    %v1295 = vrot.slane %v1235, 1
    %v1296 = vsel %vm235, %v1294, %v1295
    %v1297 = vrot.slane %v1220, 1
    %v1298 = vrot.slane %v1236, 1
    %v1299 = vsel %vm235, %v1297, %v1298
    %v1300 = vrot.slane %v1221, 1
    %v1301 = vrot.slane %v1237, 1
    %v1302 = vsel %vm235, %v1300, %v1301
    %v1303 = vrot.slane %v1222, 1
    %v1304 = vrot.slane %v1238, 1
    %v1305 = vsel %vm235, %v1303, %v1304
    %v1306 = vrot.slane %v1223, 1
    %v1307 = vrot.slane %v1239, 1
    %v1308 = vsel %vm235, %v1306, %v1307
    %v1309 = vrot.slane %v1224, 1
    %v1310 = vrot.slane %v1240, 1
    %v1311 = vsel %vm235, %v1309, %v1310
    %v1312 = vrot.slane %v1210, 2
    %v1313 = vrot.slane %v1226, 2
    %v1314 = vsel %vm281, %v1312, %v1313
    %v1315 = vrot.slane %v1211, 2
    %v1316 = vrot.slane %v1227, 2
    %v1317 = vsel %vm281, %v1315, %v1316
    %v1318 = vrot.slane %v1212, 2
    %v1319 = vrot.slane %v1228, 2
    %v1320 = vsel %vm281, %v1318, %v1319
    %v1321 = vrot.slane %v1213, 2
    %v1322 = vrot.slane %v1229, 2
    %v1323 = vsel %vm281, %v1321, %v1322
    %v1324 = vrot.slane %v1214, 2
    %v1325 = vrot.slane %v1230, 2
    %v1326 = vsel %vm281, %v1324, %v1325
    %v1327 = vrot.slane %v1215, 2
    %v1328 = vrot.slane %v1231, 2
    %v1329 = vsel %vm281, %v1327, %v1328
    %v1330 = vrot.slane %v1216, 2
    %v1331 = vrot.slane %v1232, 2
    %v1332 = vsel %vm281, %v1330, %v1331
    %v1333 = vrot.slane %v1218, 2
    %v1334 = vrot.slane %v1234, 2
    %v1335 = vsel %vm281, %v1333, %v1334
    %v1336 = vrot.slane %v1219, 2
    %v1337 = vrot.slane %v1235, 2
    %v1338 = vsel %vm281, %v1336, %v1337
    %v1339 = vrot.slane %v1220, 2
    %v1340 = vrot.slane %v1236, 2
    %v1341 = vsel %vm281, %v1339, %v1340
    %v1342 = vrot.slane %v1221, 2
    %v1343 = vrot.slane %v1237, 2
    %v1344 = vsel %vm281, %v1342, %v1343
    %v1345 = vrot.slane %v1222, 2
    %v1346 = vrot.slane %v1238, 2
    %v1347 = vsel %vm281, %v1345, %v1346
    %v1348 = vrot.slane %v1223, 2
    %v1349 = vrot.slane %v1239, 2
    %v1350 = vsel %vm281, %v1348, %v1349
    %v1351 = vrot.slane %v1224, 2
    %v1352 = vrot.slane %v1240, 2
    %v1353 = vsel %vm281, %v1351, %v1352
    %v1358 = vrot.slane %v1217, 1
    %v1359 = vrot.slane %v1233, 1
    %v1360 = vsel %vm235, %v1358, %v1359
    %v1361 = vrot.slane %v1225, 1
    %v1362 = vrot.slane %v1241, 1
    %v1363 = vsel %vm235, %v1361, %v1362
    %v1380 = vrot.slane %v1217, 2
    %v1381 = vrot.slane %v1233, 2
    %v1382 = vsel %vm281, %v1380, %v1381
    %v1383 = vrot.slane %v1225, 2
    %v1384 = vrot.slane %v1241, 2
    %v1385 = vsel %vm281, %v1383, %v1384
    %1400 = vrot.lane.b32.xlu0 %v238, 32
    %v1401 = vpop.permute.xlu0 %1400
    %1402 = vrot.lane.b32.xlu0 %v1272, 32
    %v1403 = vpop.permute.xlu0 %1402
    %1404 = vrot.lane.b32.xlu0 %v1275, 32
    %v1405 = vpop.permute.xlu0 %1404
    %1406 = vrot.lane.b32.xlu0 %v1278, 32
    %v1407 = vpop.permute.xlu0 %1406
    %1408 = vrot.lane.b32.xlu0 %v1281, 32
    %v1409 = vpop.permute.xlu0 %1408
    %1410 = vrot.lane.b32.xlu0 %v1284, 32
    %v1411 = vpop.permute.xlu0 %1410
    %1412 = vrot.lane.b32.xlu0 %v1287, 32
    %v1413 = vpop.permute.xlu0 %1412
    %1414 = vrot.lane.b32.xlu0 %v1290, 32
    %v1415 = vpop.permute.xlu0 %1414
    %1416 = vrot.lane.b32.xlu0 %v1293, 32
    %v1417 = vpop.permute.xlu0 %1416
    %1418 = vrot.lane.b32.xlu0 %v1296, 32
    %v1419 = vpop.permute.xlu0 %1418
    %1420 = vrot.lane.b32.xlu0 %v1299, 32
    %v1421 = vpop.permute.xlu0 %1420
    %1422 = vrot.lane.b32.xlu0 %v1302, 32
    %v1423 = vpop.permute.xlu0 %1422
    %1424 = vrot.lane.b32.xlu0 %v1305, 32
    %v1425 = vpop.permute.xlu0 %1424
    %1426 = vrot.lane.b32.xlu0 %v1308, 32
    %v1427 = vpop.permute.xlu0 %1426
    %1428 = vrot.lane.b32.xlu0 %v1311, 32
    %v1429 = vpop.permute.xlu0 %1428
    %1445 = vrot.lane.b32.xlu0 %v284, 64
    %v1446 = vpop.permute.xlu0 %1445
    %1447 = vrot.lane.b32.xlu0 %v1314, 64
    %v1448 = vpop.permute.xlu0 %1447
    %1449 = vrot.lane.b32.xlu0 %v1317, 64
    %v1450 = vpop.permute.xlu0 %1449
    %1451 = vrot.lane.b32.xlu0 %v1320, 64
    %v1452 = vpop.permute.xlu0 %1451
    %1453 = vrot.lane.b32.xlu0 %v1323, 64
    %v1454 = vpop.permute.xlu0 %1453
    %1455 = vrot.lane.b32.xlu0 %v1326, 64
    %v1456 = vpop.permute.xlu0 %1455
    %1457 = vrot.lane.b32.xlu0 %v1329, 64
    %v1458 = vpop.permute.xlu0 %1457
    %1459 = vrot.lane.b32.xlu0 %v1332, 64
    %v1460 = vpop.permute.xlu0 %1459
    %1461 = vrot.lane.b32.xlu0 %v1335, 64
    %v1462 = vpop.permute.xlu0 %1461
    %1463 = vrot.lane.b32.xlu0 %v1338, 64
    %v1464 = vpop.permute.xlu0 %1463
    %1465 = vrot.lane.b32.xlu0 %v1341, 64
    %v1466 = vpop.permute.xlu0 %1465
    %1467 = vrot.lane.b32.xlu0 %v1344, 64
    %v1468 = vpop.permute.xlu0 %1467
    %1469 = vrot.lane.b32.xlu0 %v1347, 64
    %v1470 = vpop.permute.xlu0 %1469
    %1471 = vrot.lane.b32.xlu0 %v1350, 64
    %v1472 = vpop.permute.xlu0 %1471
    %1473 = vrot.lane.b32.xlu0 %v1353, 64
    %v1474 = vpop.permute.xlu0 %1473
    %1490 = vrot.lane.b32.xlu0 %v1210, 96
    %v1491 = vpop.permute.xlu0 %1490
    %1492 = vrot.lane.b32.xlu0 %v1211, 96
    %v1493 = vpop.permute.xlu0 %1492
    %1494 = vrot.lane.b32.xlu0 %v1212, 96
    %v1495 = vpop.permute.xlu0 %1494
    %1496 = vrot.lane.b32.xlu0 %v1213, 96
    %v1497 = vpop.permute.xlu0 %1496
    %1498 = vrot.lane.b32.xlu0 %v1214, 96
    %v1499 = vpop.permute.xlu0 %1498
    %1500 = vrot.lane.b32.xlu0 %v1215, 96
    %v1501 = vpop.permute.xlu0 %1500
    %1502 = vrot.lane.b32.xlu0 %v1216, 96
    %v1503 = vpop.permute.xlu0 %1502
    %1504 = vrot.lane.b32.xlu0 %v1217, 96
    %v1505 = vpop.permute.xlu0 %1504
    %1506 = vrot.lane.b32.xlu0 %v1218, 96
    %v1507 = vpop.permute.xlu0 %1506
    %1508 = vrot.lane.b32.xlu0 %v1219, 96
    %v1509 = vpop.permute.xlu0 %1508
    %1510 = vrot.lane.b32.xlu0 %v1220, 96
    %v1511 = vpop.permute.xlu0 %1510
    %1512 = vrot.lane.b32.xlu0 %v1221, 96
    %v1513 = vpop.permute.xlu0 %1512
    %1514 = vrot.lane.b32.xlu0 %v1222, 96
    %v1515 = vpop.permute.xlu0 %1514
    %1516 = vrot.lane.b32.xlu0 %v1223, 96
    %v1517 = vpop.permute.xlu0 %1516
    %1518 = vrot.lane.b32.xlu0 %v1224, 96
    %v1519 = vpop.permute.xlu0 %1518
    %1520 = vrot.lane.b32.xlu0 %v1225, 96
    %v1521 = vpop.permute.xlu0 %1520
    %1538 = vrot.lane.b32.xlu0 %v1314, 32
    %v1539 = vpop.permute.xlu0 %1538
    %1540 = vrot.lane.b32.xlu0 %v1317, 32
    %v1541 = vpop.permute.xlu0 %1540
    %1542 = vrot.lane.b32.xlu0 %v1320, 32
    %v1543 = vpop.permute.xlu0 %1542
    %1544 = vrot.lane.b32.xlu0 %v1323, 32
    %v1545 = vpop.permute.xlu0 %1544
    %1546 = vrot.lane.b32.xlu0 %v1326, 32
    %v1547 = vpop.permute.xlu0 %1546
    %1548 = vrot.lane.b32.xlu0 %v1329, 32
    %v1549 = vpop.permute.xlu0 %1548
    %1550 = vrot.lane.b32.xlu0 %v1332, 32
    %v1551 = vpop.permute.xlu0 %1550
    %1552 = vrot.lane.b32.xlu0 %v1382, 32
    %v1553 = vpop.permute.xlu0 %1552
    %1554 = vrot.lane.b32.xlu0 %v1335, 32
    %v1555 = vpop.permute.xlu0 %1554
    %1556 = vrot.lane.b32.xlu0 %v1338, 32
    %v1557 = vpop.permute.xlu0 %1556
    %1558 = vrot.lane.b32.xlu0 %v1341, 32
    %v1559 = vpop.permute.xlu0 %1558
    %1560 = vrot.lane.b32.xlu0 %v1344, 32
    %v1561 = vpop.permute.xlu0 %1560
    %1562 = vrot.lane.b32.xlu0 %v1347, 32
    %v1563 = vpop.permute.xlu0 %1562
    %1564 = vrot.lane.b32.xlu0 %v1350, 32
    %v1565 = vpop.permute.xlu0 %1564
    %1566 = vrot.lane.b32.xlu0 %v1353, 32
    %v1567 = vpop.permute.xlu0 %1566
    %1568 = vrot.lane.b32.xlu0 %v1385, 32
    %v1569 = vpop.permute.xlu0 %1568
    %1586 = vrot.lane.b32.xlu0 %v1211, 64
    %v1587 = vpop.permute.xlu0 %1586
    %1588 = vrot.lane.b32.xlu0 %v1212, 64
    %v1589 = vpop.permute.xlu0 %1588
    %1590 = vrot.lane.b32.xlu0 %v1213, 64
    %v1591 = vpop.permute.xlu0 %1590
    %1592 = vrot.lane.b32.xlu0 %v1214, 64
    %v1593 = vpop.permute.xlu0 %1592
    %1594 = vrot.lane.b32.xlu0 %v1215, 64
    %v1595 = vpop.permute.xlu0 %1594
    %1596 = vrot.lane.b32.xlu0 %v1216, 64
    %v1597 = vpop.permute.xlu0 %1596
    %1598 = vrot.lane.b32.xlu0 %v1217, 64
    %v1599 = vpop.permute.xlu0 %1598
    %1600 = vrot.lane.b32.xlu0 %v171, 64
    %v1601 = vpop.permute.xlu0 %1600
    %1602 = vrot.lane.b32.xlu0 %v1219, 64
    %v1603 = vpop.permute.xlu0 %1602
    %1604 = vrot.lane.b32.xlu0 %v1220, 64
    %v1605 = vpop.permute.xlu0 %1604
    %1606 = vrot.lane.b32.xlu0 %v1221, 64
    %v1607 = vpop.permute.xlu0 %1606
    %1608 = vrot.lane.b32.xlu0 %v1222, 64
    %v1609 = vpop.permute.xlu0 %1608
    %1610 = vrot.lane.b32.xlu0 %v1223, 64
    %v1611 = vpop.permute.xlu0 %1610
    %1612 = vrot.lane.b32.xlu0 %v1224, 64
    %v1613 = vpop.permute.xlu0 %1612
    %1614 = vrot.lane.b32.xlu0 %v1225, 64
    %v1615 = vpop.permute.xlu0 %1614
    %1631 = vrot.lane.b32.xlu0 %v1275, 96
    %v1632 = vpop.permute.xlu0 %1631
    %1633 = vrot.lane.b32.xlu0 %v1278, 96
    %v1634 = vpop.permute.xlu0 %1633
    %1635 = vrot.lane.b32.xlu0 %v1281, 96
    %v1636 = vpop.permute.xlu0 %1635
    %1637 = vrot.lane.b32.xlu0 %v1284, 96
    %v1638 = vpop.permute.xlu0 %1637
    %1639 = vrot.lane.b32.xlu0 %v1287, 96
    %v1640 = vpop.permute.xlu0 %1639
    %1641 = vrot.lane.b32.xlu0 %v1290, 96
    %v1642 = vpop.permute.xlu0 %1641
    %1643 = vrot.lane.b32.xlu0 %v1360, 96
    %v1644 = vpop.permute.xlu0 %1643
    %1645 = vrot.lane.b32.xlu0 %v238, 96
    %v1646 = vpop.permute.xlu0 %1645
    %1647 = vrot.lane.b32.xlu0 %v1296, 96
    %v1648 = vpop.permute.xlu0 %1647
    %1649 = vrot.lane.b32.xlu0 %v1299, 96
    %v1650 = vpop.permute.xlu0 %1649
    %1651 = vrot.lane.b32.xlu0 %v1302, 96
    %v1652 = vpop.permute.xlu0 %1651
    %1653 = vrot.lane.b32.xlu0 %v1305, 96
    %v1654 = vpop.permute.xlu0 %1653
    %1655 = vrot.lane.b32.xlu0 %v1308, 96
    %v1656 = vpop.permute.xlu0 %1655
    %1657 = vrot.lane.b32.xlu0 %v1311, 96
    %v1658 = vpop.permute.xlu0 %1657
    %1659 = vrot.lane.b32.xlu0 %v1363, 96
    %v1660 = vpop.permute.xlu0 %1659
    %v1676 = vsel %vm698, %v171, %v1401
    %v1677 = vsel %vm698, %v1210, %v1403
    %v1678 = vsel %vm698, %v1211, %v1405
    %v1679 = vsel %vm698, %v1212, %v1407
    %v1680 = vsel %vm698, %v1213, %v1409
    %v1681 = vsel %vm698, %v1214, %v1411
    %v1682 = vsel %vm698, %v1215, %v1413
    %v1683 = vsel %vm698, %v1216, %v1415
    %v1684 = vsel %vm698, %v1218, %v1417
    %v1685 = vsel %vm698, %v1219, %v1419
    %v1686 = vsel %vm698, %v1220, %v1421
    %v1687 = vsel %vm698, %v1221, %v1423
    %v1688 = vsel %vm698, %v1222, %v1425
    %v1689 = vsel %vm698, %v1223, %v1427
    %v1690 = vsel %vm698, %v1224, %v1429
    %v1691 = vsel %vm731, %v1676, %v1446
    %v1692 = vsel %vm731, %v1677, %v1448
    %v1693 = vsel %vm731, %v1678, %v1450
    %v1694 = vsel %vm731, %v1679, %v1452
    %v1695 = vsel %vm731, %v1680, %v1454
    %v1696 = vsel %vm731, %v1681, %v1456
    %v1697 = vsel %vm731, %v1682, %v1458
    %v1698 = vsel %vm731, %v1683, %v1460
    %v1699 = vsel %vm731, %v1684, %v1462
    %v1700 = vsel %vm731, %v1685, %v1464
    %v1701 = vsel %vm731, %v1686, %v1466
    %v1702 = vsel %vm731, %v1687, %v1468
    %v1703 = vsel %vm731, %v1688, %v1470
    %v1704 = vsel %vm731, %v1689, %v1472
    %v1705 = vsel %vm731, %v1690, %v1474
    %v1706 = vsel %vm765, %v1691, %v1491
    %v1707 = vsel %vm765, %v1692, %v1493
    %v1708 = vsel %vm765, %v1693, %v1495
    %v1709 = vsel %vm765, %v1694, %v1497
    %v1710 = vsel %vm765, %v1695, %v1499
    %v1711 = vsel %vm765, %v1696, %v1501
    %v1712 = vsel %vm765, %v1697, %v1503
    %v1713 = vsel %vm765, %v1698, %v1505
    %v1714 = vsel %vm765, %v1691, %v1507
    %v1715 = vsel %vm765, %v1699, %v1509
    %v1716 = vsel %vm765, %v1700, %v1511
    %v1717 = vsel %vm765, %v1701, %v1513
    %v1718 = vsel %vm765, %v1702, %v1515
    %v1719 = vsel %vm765, %v1703, %v1517
    %v1720 = vsel %vm765, %v1704, %v1519
    %v1721 = vsel %vm765, %v1705, %v1521
    %v1722 = vsel %vm698, %v1272, %v1539
    %v1723 = vsel %vm698, %v1275, %v1541
    %v1724 = vsel %vm698, %v1278, %v1543
    %v1725 = vsel %vm698, %v1281, %v1545
    %v1726 = vsel %vm698, %v1284, %v1547
    %v1727 = vsel %vm698, %v1287, %v1549
    %v1728 = vsel %vm698, %v1290, %v1551
    %v1729 = vsel %vm698, %v1360, %v1553
    %v1730 = vsel %vm698, %v1293, %v1555
    %v1731 = vsel %vm698, %v1296, %v1557
    %v1732 = vsel %vm698, %v1299, %v1559
    %v1733 = vsel %vm698, %v1302, %v1561
    %v1734 = vsel %vm698, %v1305, %v1563
    %v1735 = vsel %vm698, %v1308, %v1565
    %v1736 = vsel %vm698, %v1311, %v1567
    %v1737 = vsel %vm698, %v1363, %v1569
    %v1738 = vsel %vm731, %v1722, %v1587
    %v1739 = vsel %vm731, %v1723, %v1589
    %v1740 = vsel %vm731, %v1724, %v1591
    %v1741 = vsel %vm731, %v1725, %v1593
    %v1742 = vsel %vm731, %v1726, %v1595
    %v1743 = vsel %vm731, %v1727, %v1597
    %v1744 = vsel %vm731, %v1728, %v1599
    %v1745 = vsel %vm731, %v1729, %v1601
    %v1746 = vsel %vm731, %v1730, %v1603
    %v1747 = vsel %vm731, %v1731, %v1605
    %v1748 = vsel %vm731, %v1732, %v1607
    %v1749 = vsel %vm731, %v1733, %v1609
    %v1750 = vsel %vm731, %v1734, %v1611
    %v1751 = vsel %vm731, %v1735, %v1613
    %v1752 = vsel %vm731, %v1736, %v1615
    %v1753 = vsel %vm731, %v1737, %v1601
    %v1754 = vsel %vm765, %v1738, %v1632
    %v1755 = vsel %vm765, %v1739, %v1634
    %v1756 = vsel %vm765, %v1740, %v1636
    %v1757 = vsel %vm765, %v1741, %v1638
    %v1758 = vsel %vm765, %v1742, %v1640
    %v1759 = vsel %vm765, %v1743, %v1642
    %v1760 = vsel %vm765, %v1744, %v1644
    %v1761 = vsel %vm765, %v1745, %v1646
    %v1762 = vsel %vm765, %v1746, %v1648
    %v1763 = vsel %vm765, %v1747, %v1650
    %v1764 = vsel %vm765, %v1748, %v1652
    %v1765 = vsel %vm765, %v1749, %v1654
    %v1766 = vsel %vm765, %v1750, %v1656
    %v1767 = vsel %vm765, %v1751, %v1658
    %v1768 = vsel %vm765, %v1752, %v1660
    %v1769 = vsel %vm765, %v1753, %v1646
    %v1770 = vpack.c.bf16 %v1707, %v1706
    %v1771 = vpack.c.bf16 %v1755, %v1754
    %v1772 = vpack.c.bf16 %v1320, %v1317
    %v1773 = vpack.c.bf16 %v1709, %v1708
    %v1774 = vpack.c.bf16 %v1757, %v1756
    %v1775 = vpack.c.bf16 %v1326, %v1323
    %v1776 = vpack.c.bf16 %v1711, %v1710
    %v1777 = vpack.c.bf16 %v1759, %v1758
    %v1778 = vpack.c.bf16 %v1332, %v1329
    %v1779 = vpack.c.bf16 %v1713, %v1712
    %v1780 = vpack.c.bf16 %v1761, %v1760
    %v1781 = vpack.c.bf16 %v284, %v1382
    %v1782 = vpack.c.bf16 %v1715, %v1714
    %v1783 = vpack.c.bf16 %v1763, %v1762
    %v1784 = vpack.c.bf16 %v1341, %v1338
    %v1785 = vpack.c.bf16 %v1717, %v1716
    %v1786 = vpack.c.bf16 %v1765, %v1764
    %v1787 = vpack.c.bf16 %v1347, %v1344
    %v1788 = vpack.c.bf16 %v1719, %v1718
    %v1789 = vpack.c.bf16 %v1767, %v1766
    %v1790 = vpack.c.bf16 %v1353, %v1350
    %v1791 = vpack.c.bf16 %v1721, %v1720
    %v1792 = vpack.c.bf16 %v1769, %v1768
    %v1793 = vpack.c.bf16 %v284, %v1385
    %v1795 = vlaneseq
    %v1796 = vshrl.u32 %v1795, 7
    %v1797 = vsub.s32 0, %v1796
    %v1798 = vrot.slane %v118, %v1797
    %v1836 = vunpack.c.l.b16 %v82
    %v1837 = vunpack.c.l.b16 %v83
    %v1838 = vunpack.c.l.b16 %v84
    %v1839 = vunpack.c.l.b16 %v85
    %v1840 = vunpack.c.l.b16 %v86
    %v1841 = vunpack.c.l.b16 %v87
    %v1842 = vunpack.c.l.b16 %v88
    %v1843 = vunpack.c.l.b16 %v89
    %v1844 = vunpack.c.l.b16 %v90
    %v1845 = vunpack.c.l.b16 %v91
    %v1846 = vunpack.c.l.b16 %v92
    %v1847 = vunpack.c.l.b16 %v93
    %v1848 = vunpack.c.l.b16 %v94
    %v1849 = vunpack.c.l.b16 %v95
    %v1850 = vunpack.c.l.b16 %v96
    %v1851 = vunpack.c.l.b16 %v97
    %v1852 = vunpack.c.l.b16 %v98
    %v1853 = vunpack.c.l.b16 %v99
    %v1854 = vunpack.c.l.b16 %v100
    %v1855 = vunpack.c.l.b16 %v101
    %v1856 = vunpack.c.l.b16 %v102
    %v1857 = vunpack.c.l.b16 %v103
    %v1858 = vunpack.c.l.b16 %v104
    %v1859 = vunpack.c.l.b16 %v105
    %v1860 = vunpack.c.l.b16 %v106
    %v1861 = vunpack.c.l.b16 %v107
    %v1862 = vunpack.c.l.b16 %v108
    %v1863 = vunpack.c.l.b16 %v109
    %v1864 = vunpack.c.l.b16 %v110
    %v1865 = vunpack.c.l.b16 %v111
    %v1866 = vunpack.c.l.b16 %v112
    %v1867 = vunpack.c.l.b16 %v113
    %v1868 = vunpack.c.l.b16 %v114
    %v1869 = vunpack.c.l.b16 %v115
    %v1870 = vunpack.c.l.b16 %v116
    %v1871 = vunpack.c.l.b16 %v117
    %v1872 = vpack.c.b16 %v1837, %v1836
    %v1873 = vpack.c.b16 %v1839, %v1838
    %v1874 = vpack.c.b16 %v1841, %v1840
    %v1875 = vpack.c.b16 %v1843, %v1842
    %v1876 = vpack.c.b16 %v1845, %v1844
    %v1877 = vpack.c.b16 %v1847, %v1846
    %v1878 = vpack.c.b16 %v1849, %v1848
    %v1879 = vpack.c.b16 %v1851, %v1850
    %v1880 = vpack.c.b16 %v1853, %v1852
    %v1881 = vpack.c.b16 %v1855, %v1854
    %v1882 = vpack.c.b16 %v1857, %v1856
    %v1883 = vpack.c.b16 %v1859, %v1858
    %v1884 = vpack.c.b16 %v1861, %v1860
    %v1885 = vpack.c.b16 %v1863, %v1862
    %v1886 = vpack.c.b16 %v1865, %v1864
    %v1887 = vpack.c.b16 %v1867, %v1866
    %v1888 = vpack.c.b16 %v1869, %v1868
    %v1889 = vpack.c.b16 %v1871, %v1870
    %v1909 = vsel %vm698, %v1772, 0
    %v1912 = vsel %vm698, %v1775, 0
    %v1915 = vsel %vm698, %v1778, 0
    %v1918 = vsel %vm698, %v1781, 0
    %v1921 = vsel %vm698, %v1784, 0
    %v1924 = vsel %vm698, %v1787, 0
    %v1927 = vsel %vm698, %v1790, 0
    %v1930 = vsel %vm698, %v1793, 0
    %1932 = vmatprep.subr.bf16.mxu0 0
    %1933 = vmatpush1.bf16.msra.mxu0 %v1879
    %1934 = vmatprep.subr.bf16.mxu0 0
    %1935 = vmatpush1.bf16.msra.mxu0 %v1878
    %1936 = vmatprep.subr.bf16.mxu0 0
    %1937 = vmatpush1.bf16.msra.mxu0 %v1877
    %1938 = vmatprep.subr.bf16.mxu0 0
    %1939 = vmatpush1.bf16.msra.mxu0 %v1876
    %1940 = vmatprep.subr.bf16.mxu0 0
    %1941 = vmatpush1.bf16.msra.mxu0 %v1875
    %1942 = vmatprep.subr.bf16.mxu0 0
    %1943 = vmatpush1.bf16.msra.mxu0 %v1874
    %1944 = vmatprep.subr.bf16.mxu0 0
    %1945 = vmatpush1.bf16.msra.mxu0 %v1873
    %1946 = vmatprep.subr.bf16.mxu0 0
    %1947 = vmatpush1.bf16.msra.mxu0 %v1872
    %1948 = vmatprep.subr.bf16.mxu0 0
    %1949 = vmatpush2.bf16.msra.mxu0 %v1887
    %1950 = vmatprep.subr.bf16.mxu0 0
    %1951 = vmatpush2.bf16.msra.mxu0 %v1886
    %1952 = vmatprep.subr.bf16.mxu0 0
    %1953 = vmatpush2.bf16.msra.mxu0 %v1885
    %1954 = vmatprep.subr.bf16.mxu0 0
    %1955 = vmatpush2.bf16.msra.mxu0 %v1884
    %1956 = vmatprep.subr.bf16.mxu0 0
    %1957 = vmatpush2.bf16.msra.mxu0 %v1883
    %1958 = vmatprep.subr.bf16.mxu0 0
    %1959 = vmatpush2.bf16.msra.mxu0 %v1882
    %1960 = vmatprep.subr.bf16.mxu0 0
    %1961 = vmatpush2.bf16.msra.mxu0 %v1881
    %1962 = vmatprep.subr.bf16.mxu0 0
    %1963 = vmatpush2.bf16.msra.mxu0 %v1880
    %1964 = vmatprep.mubr.bf16.mxu0 %v1771
    %1965 = vmatmul.mubr.bf16.gmra.mxu0 %v1770
    %v1966 = vpop.f32.mrf.mxu0
    %v1967 = vadd.f32 %v1798, %v1966
    %v1968 = vpop.f32.mrf.mxu0
    %v1969 = vpop.f32.mrf.mxu0
    %v1970 = vadd.f32 %v1798, %v1969
    %v1971 = vpop.f32.mrf.mxu0
    %1972 = vmatprep.mubr.bf16.mxu0 %v1774
    %1973 = vmatmul.mubr.bf16.gmra.mxu0 %v1773
    %v1974 = vpop.f32.mrf.mxu0
    %v1975 = vadd.f32 %v1798, %v1974
    %v1976 = vpop.f32.mrf.mxu0
    %v1977 = vpop.f32.mrf.mxu0
    %v1978 = vadd.f32 %v1798, %v1977
    %v1979 = vpop.f32.mrf.mxu0
    %1980 = vmatprep.mubr.bf16.mxu0 %v1777
    %1981 = vmatmul.mubr.bf16.gmra.mxu0 %v1776
    %v1982 = vpop.f32.mrf.mxu0
    %v1983 = vadd.f32 %v1798, %v1982
    %v1984 = vpop.f32.mrf.mxu0
    %v1985 = vpop.f32.mrf.mxu0
    %v1986 = vadd.f32 %v1798, %v1985
    %v1987 = vpop.f32.mrf.mxu0
    %1988 = vmatprep.mubr.bf16.mxu0 %v1780
    %1989 = vmatmul.mubr.bf16.gmra.mxu0 %v1779
    %v1990 = vpop.f32.mrf.mxu0
    %v1991 = vadd.f32 %v1798, %v1990
    %v1992 = vpop.f32.mrf.mxu0
    %v1993 = vpop.f32.mrf.mxu0
    %v1994 = vadd.f32 %v1798, %v1993
    %v1995 = vpop.f32.mrf.mxu0
    %1996 = vmatprep.mubr.bf16.mxu0 %v1783
    %1997 = vmatmul.mubr.bf16.gmra.mxu0 %v1782
    %v1998 = vpop.f32.mrf.mxu0
    %v1999 = vadd.f32 %v1798, %v1998
    %v2000 = vpop.f32.mrf.mxu0
    %v2001 = vpop.f32.mrf.mxu0
    %v2002 = vadd.f32 %v1798, %v2001
    %v2003 = vpop.f32.mrf.mxu0
    %2004 = vmatprep.mubr.bf16.mxu0 %v1786
    %2005 = vmatmul.mubr.bf16.gmra.mxu0 %v1785
    %v2006 = vpop.f32.mrf.mxu0
    %v2007 = vadd.f32 %v1798, %v2006
    %v2008 = vpop.f32.mrf.mxu0
    %v2009 = vpop.f32.mrf.mxu0
    %v2010 = vadd.f32 %v1798, %v2009
    %v2011 = vpop.f32.mrf.mxu0
    %2012 = vmatprep.mubr.bf16.mxu0 %v1789
    %2013 = vmatmul.mubr.bf16.gmra.mxu0 %v1788
    %v2014 = vpop.f32.mrf.mxu0
    %v2015 = vadd.f32 %v1798, %v2014
    %v2016 = vpop.f32.mrf.mxu0
    %v2017 = vpop.f32.mrf.mxu0
    %v2018 = vadd.f32 %v1798, %v2017
    %v2019 = vpop.f32.mrf.mxu0
    %2020 = vmatprep.mubr.bf16.mxu0 %v1792
    %2021 = vmatmul.mubr.bf16.gmra.mxu0 %v1791
    %v2022 = vpop.f32.mrf.mxu0
    %v2023 = vadd.f32 %v1798, %v2022
    %v2024 = vpop.f32.mrf.mxu0
    %v2025 = vpop.f32.mrf.mxu0
    %v2026 = vadd.f32 %v1798, %v2025
    %v2027 = vpop.f32.mrf.mxu0
    %2028 = vdwg.mxu0
    %2029 = vmatprep.subr.bf16.mxu0 0
    %2030 = vmatpush1.bf16.msra.mxu0 0
    %2031 = vmatprep.subr.bf16.mxu0 0
    %2032 = vmatpush1.bf16.msra.mxu0 0
    %2033 = vmatprep.subr.bf16.mxu0 0
    %2034 = vmatpush1.bf16.msra.mxu0 0
    %2035 = vmatprep.subr.bf16.mxu0 0
    %2036 = vmatpush1.bf16.msra.mxu0 0
    %2037 = vmatprep.subr.bf16.mxu0 0
    %2038 = vmatpush1.bf16.msra.mxu0 0
    %2039 = vmatprep.subr.bf16.mxu0 0
    %2040 = vmatpush1.bf16.msra.mxu0 0
    %2041 = vmatprep.subr.bf16.mxu0 0
    %2042 = vmatpush1.bf16.msra.mxu0 %v1889
    %2043 = vmatprep.subr.bf16.mxu0 0
    %2044 = vmatpush1.bf16.msra.mxu0 %v1888
    %2045 = vmatprep.subr.bf16.mxu0 0
    %2046 = vmatpush2.bf16.msra.mxu0 0
    %2047 = vmatprep.subr.bf16.mxu0 0
    %2048 = vmatpush2.bf16.msra.mxu0 0
    %2049 = vmatprep.subr.bf16.mxu0 0
    %2050 = vmatpush2.bf16.msra.mxu0 0
    %2051 = vmatprep.subr.bf16.mxu0 0
    %2052 = vmatpush2.bf16.msra.mxu0 0
    %2053 = vmatprep.subr.bf16.mxu0 0
    %2054 = vmatpush2.bf16.msra.mxu0 0
    %2055 = vmatprep.subr.bf16.mxu0 0
    %2056 = vmatpush2.bf16.msra.mxu0 0
    %2057 = vmatprep.subr.bf16.mxu0 0
    %2058 = vmatpush2.bf16.msra.mxu0 0
    %2059 = vmatprep.subr.bf16.mxu0 0
    %2060 = vmatpush2.bf16.msra.mxu0 0
    %2061 = vmatprep.mubr.bf16.mxu0 0
    %2062 = vmatmul.mubr.bf16.gmra.mxu0 %v1909
    %v2063 = vpop.f32.mrf.mxu0
    %v2064 = vadd.f32 %v1967, %v2063
    %v2065 = vpop.f32.mrf.mxu0
    %v2066 = vpop.f32.mrf.mxu0
    %v2067 = vadd.f32 %v1970, %v2066
    %v2068 = vpop.f32.mrf.mxu0
    %2069 = vmatprep.mubr.bf16.mxu0 0
    %2070 = vmatmul.mubr.bf16.gmra.mxu0 %v1912
    %v2071 = vpop.f32.mrf.mxu0
    %v2072 = vadd.f32 %v1975, %v2071
    %v2073 = vpop.f32.mrf.mxu0
    %v2074 = vpop.f32.mrf.mxu0
    %v2075 = vadd.f32 %v1978, %v2074
    %v2076 = vpop.f32.mrf.mxu0
    %2077 = vmatprep.mubr.bf16.mxu0 0
    %2078 = vmatmul.mubr.bf16.gmra.mxu0 %v1915
    %v2079 = vpop.f32.mrf.mxu0
    %v2080 = vadd.f32 %v1983, %v2079
    %v2081 = vpop.f32.mrf.mxu0
    %v2082 = vpop.f32.mrf.mxu0
    %v2083 = vadd.f32 %v1986, %v2082
    %v2084 = vpop.f32.mrf.mxu0
    %2085 = vmatprep.mubr.bf16.mxu0 0
    %2086 = vmatmul.mubr.bf16.gmra.mxu0 %v1918
    %v2087 = vpop.f32.mrf.mxu0
    %v2088 = vadd.f32 %v1991, %v2087
    %v2089 = vpop.f32.mrf.mxu0
    %v2090 = vpop.f32.mrf.mxu0
    %v2091 = vadd.f32 %v1994, %v2090
    %v2092 = vpop.f32.mrf.mxu0
    %2093 = vmatprep.mubr.bf16.mxu0 0
    %2094 = vmatmul.mubr.bf16.gmra.mxu0 %v1921
    %v2095 = vpop.f32.mrf.mxu0
    %v2096 = vadd.f32 %v1999, %v2095
    %v2097 = vpop.f32.mrf.mxu0
    %v2098 = vpop.f32.mrf.mxu0
    %v2099 = vadd.f32 %v2002, %v2098
    %v2100 = vpop.f32.mrf.mxu0
    %2101 = vmatprep.mubr.bf16.mxu0 0
    %2102 = vmatmul.mubr.bf16.gmra.mxu0 %v1924
    %v2103 = vpop.f32.mrf.mxu0
    %v2104 = vadd.f32 %v2007, %v2103
    %v2105 = vpop.f32.mrf.mxu0
    %v2106 = vpop.f32.mrf.mxu0
    %v2107 = vadd.f32 %v2010, %v2106
    %v2108 = vpop.f32.mrf.mxu0
    %2109 = vmatprep.mubr.bf16.mxu0 0
    %2110 = vmatmul.mubr.bf16.gmra.mxu0 %v1927
    %v2111 = vpop.f32.mrf.mxu0
    %v2112 = vadd.f32 %v2015, %v2111
    %v2113 = vpop.f32.mrf.mxu0
    %v2114 = vpop.f32.mrf.mxu0
    %v2115 = vadd.f32 %v2018, %v2114
    %v2116 = vpop.f32.mrf.mxu0
    %2117 = vmatprep.mubr.bf16.mxu0 0
    %2118 = vmatmul.mubr.bf16.gmra.mxu0 %v1930
    %v2119 = vpop.f32.mrf.mxu0
    %v2120 = vadd.f32 %v2023, %v2119
    %v2121 = vpop.f32.mrf.mxu0
    %v2122 = vpop.f32.mrf.mxu0
    %v2123 = vadd.f32 %v2026, %v2122
    %v2124 = vpop.f32.mrf.mxu0
    %2125 = vdwg.mxu0
    %2126 = vxpose.xlu0.b32.start [1/16] %v2064, 128
    %2127 = vxpose.xlu0.b32.cont [2/16] %v2067, 128
    %2128 = vxpose.xlu0.b32.cont [3/16] %v2072, 128
    %2129 = vxpose.xlu0.b32.cont [4/16] %v2075, 128
    %2130 = vxpose.xlu0.b32.cont [5/16] %v2080, 128
    %2131 = vxpose.xlu0.b32.cont [6/16] %v2083, 128
    %2132 = vxpose.xlu0.b32.cont [7/16] %v2088, 128
    %2133 = vxpose.xlu0.b32.cont [8/16] %v2091, 128
    %2134 = vxpose.xlu0.b32.cont [9/16] %v2096, 128
    %2135 = vxpose.xlu0.b32.cont [10/16] %v2099, 128
    %2136 = vxpose.xlu0.b32.cont [11/16] %v2104, 128
    %2137 = vxpose.xlu0.b32.cont [12/16] %v2107, 128
    %2138 = vxpose.xlu0.b32.cont [13/16] %v2112, 128
    %2139 = vxpose.xlu0.b32.cont [14/16] %v2115, 128
    %2140 = vxpose.xlu0.b32.cont [15/16] %v2120, 128
    %2141 = vxpose.xlu0.b32.end [16/16] %v2123, 128
    %v2142 = vpop.trf.xlu0
    %v2143 = vpop.trf.xlu0
    %v2144 = vpop.trf.xlu0
    %v2145 = vpop.trf.xlu0
    %v2146 = vpop.trf.xlu0
    %v2147 = vpop.trf.xlu0
    %v2148 = vpop.trf.xlu0
    %v2149 = vpop.trf.xlu0
    %v2150 = vpop.trf.xlu0
    %v2151 = vpop.trf.xlu0
    %v2152 = vpop.trf.xlu0
    %v2153 = vpop.trf.xlu0
    %v2154 = vpop.trf.xlu0
    %v2155 = vpop.trf.xlu0
    %v2156 = vpop.trf.xlu0
    %v2157 = vpop.trf.xlu0
    %2158 = vst [vmem:[#allocation2] sm:$0xff] %v2142
    %2159 = vst [vmem:[#allocation2 + $0x8] sm:$0xff] %v2143
    %2160 = vst [vmem:[#allocation2 + $0x10] sm:$0xff] %v2144
    %2161 = vst [vmem:[#allocation2 + $0x18] sm:$0xff] %v2145
    %v2162 = vld [vmem:[%s1] sm:$0xff]
    %v2163 = vld [vmem:[%s1 + $0x8] sm:$0xff]
    %v2164 = vld [vmem:[%s1 + $0x10] sm:$0xff]
    %v2165 = vld [vmem:[%s1 + $0x18] sm:$0xff]
    %v2166 = vld [vmem:[%s1 + $0x20] sm:$0xff]
    %v2167 = vld [vmem:[%s1 + $0x28] sm:$0xff]
    %v2168 = vld [vmem:[%s1 + $0x30] sm:$0xff]
    %v2169 = vld [vmem:[%s1 + $0x38] sm:$0xff]
    %v2170 = vld [vmem:[%s1 + $0x40] sm:$0xff]
    %v2171 = vld [vmem:[%s1 + $0x48] sm:$0xff]
    %v2172 = vld [vmem:[%s1 + $0x50] sm:$0xff]
    %v2173 = vld [vmem:[%s1 + $0x58] sm:$0xff]
    %v2174 = vld [vmem:[%s1 + $0x60] sm:$0xff]
    %v2175 = vld [vmem:[%s1 + $0x68] sm:$0xff]
    %v2176 = vld [vmem:[%s1 + $0x70] sm:$0xff]
    %v2177 = vld [vmem:[%s1 + $0x78] sm:$0xff]
    %v2178 = vld [vmem:[%s7] sm:$0xf]
    %v2179 = vld [vmem:[%s7 + $0x4] sm:$0xf]
    %v2180 = vld [vmem:[%s7 + $0x8] sm:$0xf]
    %v2181 = vld [vmem:[%s7 + $0xc] sm:$0xf]
    %v2182 = vld [vmem:[%s7 + $0x10] sm:$0xf]
    %v2183 = vld [vmem:[%s7 + $0x14] sm:$0xf]
    %v2184 = vld [vmem:[%s7 + $0x18] sm:$0xf]
    %v2185 = vld [vmem:[%s7 + $0x1c] sm:$0xf]
    %v2186 = vld [vmem:[%s7 + $0x20] sm:$0xf]
    %v2187 = vld [vmem:[%s7 + $0x24] sm:$0xf]
    %v2188 = vld [vmem:[%s7 + $0x28] sm:$0xf]
    %v2189 = vld [vmem:[%s7 + $0x2c] sm:$0xf]
    %v2190 = vld [vmem:[%s7 + $0x30] sm:$0xf]
    %v2191 = vld [vmem:[%s7 + $0x34] sm:$0xf]
    %v2192 = vld [vmem:[%s7 + $0x38] sm:$0xf]
    %v2193 = vld [vmem:[%s7 + $0x3c] sm:$0xf]
    %v2194 = vld [vmem:[%s7 + $0x40] sm:$0xf]
    %v2195 = vld [vmem:[%s7 + $0x44] sm:$0xf]
    %v2196 = vld [vmem:[%s7 + $0x48] sm:$0xf]
    %v2197 = vld [vmem:[%s7 + $0x4c] sm:$0xf]
    %v2198 = vld [vmem:[%s7 + $0x50] sm:$0xf]
    %v2199 = vld [vmem:[%s7 + $0x54] sm:$0xf]
    %v2200 = vld [vmem:[%s7 + $0x58] sm:$0xf]
    %v2201 = vld [vmem:[%s7 + $0x5c] sm:$0xf]
    %v2202 = vld [vmem:[%s7 + $0x60] sm:$0xf]
    %v2203 = vld [vmem:[%s7 + $0x64] sm:$0xf]
    %v2204 = vld [vmem:[%s7 + $0x68] sm:$0xf]
    %v2205 = vld [vmem:[%s7 + $0x6c] sm:$0xf]
    %v2206 = vld [vmem:[%s7 + $0x70] sm:$0xf]
    %v2207 = vld [vmem:[%s7 + $0x74] sm:$0xf]
    %v2208 = vld [vmem:[%s7 + $0x78] sm:$0xf]
    %v2209 = vld [vmem:[%s7 + $0x7c] sm:$0xf]
    %v2210 = vld [vmem:[%s7 + $0x80] sm:$0xf]
    %v2211 = vld [vmem:[%s7 + $0x84] sm:$0xf]
    %v2212 = vld [vmem:[%s7 + $0x88] sm:$0xf]
    %v2213 = vld [vmem:[%s7 + $0x8c] sm:$0xf]
    %v2214 = vld [vmem:[%s8] sm:$0x1]
    %v2215 = vld [vmem:[%s9] sm:$0x1]
    %v2216 = vld [vmem:[%s10] sm:$0xf]
    %v2217 = vld [vmem:[%s10 + $0x4] sm:$0xf]
    %v2218 = vld [vmem:[%s10 + $0x8] sm:$0xf]
    %v2219 = vld [vmem:[%s10 + $0xc] sm:$0xf]
    %v2220 = vld [vmem:[%s10 + $0x10] sm:$0xf]
    %v2221 = vld [vmem:[%s10 + $0x14] sm:$0xf]
    %v2222 = vld [vmem:[%s10 + $0x18] sm:$0xf]
    %v2223 = vld [vmem:[%s10 + $0x1c] sm:$0xf]
    %v2224 = vld [vmem:[%s10 + $0x20] sm:$0xf]
    %v2225 = vld [vmem:[%s10 + $0x24] sm:$0xf]
    %v2226 = vld [vmem:[%s10 + $0x28] sm:$0xf]
    %v2227 = vld [vmem:[%s10 + $0x2c] sm:$0xf]
    %v2228 = vld [vmem:[%s10 + $0x30] sm:$0xf]
    %v2229 = vld [vmem:[%s10 + $0x34] sm:$0xf]
    %v2230 = vld [vmem:[%s10 + $0x38] sm:$0xf]
    %v2231 = vld [vmem:[%s10 + $0x3c] sm:$0xf]
    %v2232 = vld [vmem:[%s10 + $0x40] sm:$0xf]
    %v2233 = vld [vmem:[%s10 + $0x44] sm:$0xf]
    %v2234 = vld [vmem:[%s11] sm:$0x1]
    %v2251 = vrot.slane %v2162, 7
    %v2252 = vrot.slane %v2163, 7
    %v2253 = vrot.slane %v2164, 7
    %v2254 = vrot.slane %v2165, 7
    %v2255 = vrot.slane %v2166, 7
    %v2256 = vrot.slane %v2167, 7
    %v2257 = vrot.slane %v2168, 7
    %v2258 = vrot.slane %v2169, 7
    %v2259 = vrot.slane %v2170, 7
    %v2260 = vrot.slane %v2171, 7
    %v2261 = vrot.slane %v2172, 7
    %v2262 = vrot.slane %v2173, 7
    %v2263 = vrot.slane %v2174, 7
    %v2264 = vrot.slane %v2175, 7
    %v2265 = vrot.slane %v2176, 7
    %v2266 = vrot.slane %v2177, 7
    %v2283 = vsel %vm170, 0.0, %v2251
    %v2284 = vsel %vm170, 0.0, %v2252
    %v2285 = vsel %vm170, 0.0, %v2253
    %v2286 = vsel %vm170, 0.0, %v2254
    %v2287 = vsel %vm170, 0.0, %v2255
    %v2288 = vsel %vm170, 0.0, %v2256
    %v2289 = vsel %vm170, 0.0, %v2257
    %v2290 = vsel %vm170, 0.0, %v2258
    %v2291 = vsel %vm170, 0.0, %v2259
    %v2292 = vsel %vm170, 0.0, %v2260
    %v2293 = vsel %vm170, 0.0, %v2261
    %v2294 = vsel %vm170, 0.0, %v2262
    %v2295 = vsel %vm170, 0.0, %v2263
    %v2296 = vsel %vm170, 0.0, %v2264
    %v2297 = vsel %vm170, 0.0, %v2265
    %v2298 = vsel %vm170, 0.0, %v2266
    %v2299 = vsel %vm170, %v2251, 0.0
    %v2300 = vsel %vm170, %v2252, 0.0
    %v2301 = vsel %vm170, %v2253, 0.0
    %v2302 = vsel %vm170, %v2254, 0.0
    %v2303 = vsel %vm170, %v2255, 0.0
    %v2304 = vsel %vm170, %v2256, 0.0
    %v2305 = vsel %vm170, %v2257, 0.0
    %v2306 = vsel %vm170, %v2258, 0.0
    %v2307 = vsel %vm170, %v2259, 0.0
    %v2308 = vsel %vm170, %v2260, 0.0
    %v2309 = vsel %vm170, %v2261, 0.0
    %v2310 = vsel %vm170, %v2262, 0.0
    %v2311 = vsel %vm170, %v2263, 0.0
    %v2312 = vsel %vm170, %v2264, 0.0
    %v2313 = vsel %vm170, %v2265, 0.0
    %v2314 = vsel %vm170, %v2266, 0.0
    %v2343 = vrot.slane %v2283, 1
    %v2344 = vrot.slane %v2299, 1
    %v2345 = vsel %vm235, %v2343, %v2344
    %v2346 = vrot.slane %v2284, 1
    %v2347 = vrot.slane %v2300, 1
    %v2348 = vsel %vm235, %v2346, %v2347
    %v2349 = vrot.slane %v2285, 1
    %v2350 = vrot.slane %v2301, 1
    %v2351 = vsel %vm235, %v2349, %v2350
    %v2352 = vrot.slane %v2286, 1
    %v2353 = vrot.slane %v2302, 1
    %v2354 = vsel %vm235, %v2352, %v2353
    %v2355 = vrot.slane %v2287, 1
    %v2356 = vrot.slane %v2303, 1
    %v2357 = vsel %vm235, %v2355, %v2356
    %v2358 = vrot.slane %v2288, 1
    %v2359 = vrot.slane %v2304, 1
    %v2360 = vsel %vm235, %v2358, %v2359
    %v2361 = vrot.slane %v2289, 1
    %v2362 = vrot.slane %v2305, 1
    %v2363 = vsel %vm235, %v2361, %v2362
    %v2364 = vrot.slane %v2291, 1
    %v2365 = vrot.slane %v2307, 1
    %v2366 = vsel %vm235, %v2364, %v2365
    %v2367 = vrot.slane %v2292, 1
    %v2368 = vrot.slane %v2308, 1
    %v2369 = vsel %vm235, %v2367, %v2368
    %v2370 = vrot.slane %v2293, 1
    %v2371 = vrot.slane %v2309, 1
    %v2372 = vsel %vm235, %v2370, %v2371
    %v2373 = vrot.slane %v2294, 1
    %v2374 = vrot.slane %v2310, 1
    %v2375 = vsel %vm235, %v2373, %v2374
    %v2376 = vrot.slane %v2295, 1
    %v2377 = vrot.slane %v2311, 1
    %v2378 = vsel %vm235, %v2376, %v2377
    %v2379 = vrot.slane %v2296, 1
    %v2380 = vrot.slane %v2312, 1
    %v2381 = vsel %vm235, %v2379, %v2380
    %v2382 = vrot.slane %v2297, 1
    %v2383 = vrot.slane %v2313, 1
    %v2384 = vsel %vm235, %v2382, %v2383
    %v2385 = vrot.slane %v2283, 2
    %v2386 = vrot.slane %v2299, 2
    %v2387 = vsel %vm281, %v2385, %v2386
    %v2388 = vrot.slane %v2284, 2
    %v2389 = vrot.slane %v2300, 2
    %v2390 = vsel %vm281, %v2388, %v2389
    %v2391 = vrot.slane %v2285, 2
    %v2392 = vrot.slane %v2301, 2
    %v2393 = vsel %vm281, %v2391, %v2392
    %v2394 = vrot.slane %v2286, 2
    %v2395 = vrot.slane %v2302, 2
    %v2396 = vsel %vm281, %v2394, %v2395
    %v2397 = vrot.slane %v2287, 2
    %v2398 = vrot.slane %v2303, 2
    %v2399 = vsel %vm281, %v2397, %v2398
    %v2400 = vrot.slane %v2288, 2
    %v2401 = vrot.slane %v2304, 2
    %v2402 = vsel %vm281, %v2400, %v2401
    %v2403 = vrot.slane %v2289, 2
    %v2404 = vrot.slane %v2305, 2
    %v2405 = vsel %vm281, %v2403, %v2404
    %v2406 = vrot.slane %v2291, 2
    %v2407 = vrot.slane %v2307, 2
    %v2408 = vsel %vm281, %v2406, %v2407
    %v2409 = vrot.slane %v2292, 2
    %v2410 = vrot.slane %v2308, 2
    %v2411 = vsel %vm281, %v2409, %v2410
    %v2412 = vrot.slane %v2293, 2
    %v2413 = vrot.slane %v2309, 2
    %v2414 = vsel %vm281, %v2412, %v2413
    %v2415 = vrot.slane %v2294, 2
    %v2416 = vrot.slane %v2310, 2
    %v2417 = vsel %vm281, %v2415, %v2416
    %v2418 = vrot.slane %v2295, 2
    %v2419 = vrot.slane %v2311, 2
    %v2420 = vsel %vm281, %v2418, %v2419
    %v2421 = vrot.slane %v2296, 2
    %v2422 = vrot.slane %v2312, 2
    %v2423 = vsel %vm281, %v2421, %v2422
    %v2424 = vrot.slane %v2297, 2
    %v2425 = vrot.slane %v2313, 2
    %v2426 = vsel %vm281, %v2424, %v2425
    %v2431 = vrot.slane %v2290, 1
    %v2432 = vrot.slane %v2306, 1
    %v2433 = vsel %vm235, %v2431, %v2432
    %v2434 = vrot.slane %v2298, 1
    %v2435 = vrot.slane %v2314, 1
    %v2436 = vsel %vm235, %v2434, %v2435
    %v2453 = vrot.slane %v2290, 2
    %v2454 = vrot.slane %v2306, 2
    %v2455 = vsel %vm281, %v2453, %v2454
    %v2456 = vrot.slane %v2298, 2
    %v2457 = vrot.slane %v2314, 2
    %v2458 = vsel %vm281, %v2456, %v2457
    %2473 = vrot.lane.b32.xlu0 %v2345, 32
    %v2474 = vpop.permute.xlu0 %2473
    %2475 = vrot.lane.b32.xlu0 %v2348, 32
    %v2476 = vpop.permute.xlu0 %2475
    %2477 = vrot.lane.b32.xlu0 %v2351, 32
    %v2478 = vpop.permute.xlu0 %2477
    %2479 = vrot.lane.b32.xlu0 %v2354, 32
    %v2480 = vpop.permute.xlu0 %2479
    %2481 = vrot.lane.b32.xlu0 %v2357, 32
    %v2482 = vpop.permute.xlu0 %2481
    %2483 = vrot.lane.b32.xlu0 %v2360, 32
    %v2484 = vpop.permute.xlu0 %2483
    %2485 = vrot.lane.b32.xlu0 %v2363, 32
    %v2486 = vpop.permute.xlu0 %2485
    %2487 = vrot.lane.b32.xlu0 %v2366, 32
    %v2488 = vpop.permute.xlu0 %2487
    %2489 = vrot.lane.b32.xlu0 %v2369, 32
    %v2490 = vpop.permute.xlu0 %2489
    %2491 = vrot.lane.b32.xlu0 %v2372, 32
    %v2492 = vpop.permute.xlu0 %2491
    %2493 = vrot.lane.b32.xlu0 %v2375, 32
    %v2494 = vpop.permute.xlu0 %2493
    %2495 = vrot.lane.b32.xlu0 %v2378, 32
    %v2496 = vpop.permute.xlu0 %2495
    %2497 = vrot.lane.b32.xlu0 %v2381, 32
    %v2498 = vpop.permute.xlu0 %2497
    %2499 = vrot.lane.b32.xlu0 %v2384, 32
    %v2500 = vpop.permute.xlu0 %2499
    %2515 = vrot.lane.b32.xlu0 %v2387, 64
    %v2516 = vpop.permute.xlu0 %2515
    %2517 = vrot.lane.b32.xlu0 %v2390, 64
    %v2518 = vpop.permute.xlu0 %2517
    %2519 = vrot.lane.b32.xlu0 %v2393, 64
    %v2520 = vpop.permute.xlu0 %2519
    %2521 = vrot.lane.b32.xlu0 %v2396, 64
    %v2522 = vpop.permute.xlu0 %2521
    %2523 = vrot.lane.b32.xlu0 %v2399, 64
    %v2524 = vpop.permute.xlu0 %2523
    %2525 = vrot.lane.b32.xlu0 %v2402, 64
    %v2526 = vpop.permute.xlu0 %2525
    %2527 = vrot.lane.b32.xlu0 %v2405, 64
    %v2528 = vpop.permute.xlu0 %2527
    %2529 = vrot.lane.b32.xlu0 %v2408, 64
    %v2530 = vpop.permute.xlu0 %2529
    %2531 = vrot.lane.b32.xlu0 %v2411, 64
    %v2532 = vpop.permute.xlu0 %2531
    %2533 = vrot.lane.b32.xlu0 %v2414, 64
    %v2534 = vpop.permute.xlu0 %2533
    %2535 = vrot.lane.b32.xlu0 %v2417, 64
    %v2536 = vpop.permute.xlu0 %2535
    %2537 = vrot.lane.b32.xlu0 %v2420, 64
    %v2538 = vpop.permute.xlu0 %2537
    %2539 = vrot.lane.b32.xlu0 %v2423, 64
    %v2540 = vpop.permute.xlu0 %2539
    %2541 = vrot.lane.b32.xlu0 %v2426, 64
    %v2542 = vpop.permute.xlu0 %2541
    %2557 = vrot.lane.b32.xlu0 %v2283, 96
    %v2558 = vpop.permute.xlu0 %2557
    %2559 = vrot.lane.b32.xlu0 %v2284, 96
    %v2560 = vpop.permute.xlu0 %2559
    %2561 = vrot.lane.b32.xlu0 %v2285, 96
    %v2562 = vpop.permute.xlu0 %2561
    %2563 = vrot.lane.b32.xlu0 %v2286, 96
    %v2564 = vpop.permute.xlu0 %2563
    %2565 = vrot.lane.b32.xlu0 %v2287, 96
    %v2566 = vpop.permute.xlu0 %2565
    %2567 = vrot.lane.b32.xlu0 %v2288, 96
    %v2568 = vpop.permute.xlu0 %2567
    %2569 = vrot.lane.b32.xlu0 %v2289, 96
    %v2570 = vpop.permute.xlu0 %2569
    %2571 = vrot.lane.b32.xlu0 %v2290, 96
    %v2572 = vpop.permute.xlu0 %2571
    %2573 = vrot.lane.b32.xlu0 %v2291, 96
    %v2574 = vpop.permute.xlu0 %2573
    %2575 = vrot.lane.b32.xlu0 %v2292, 96
    %v2576 = vpop.permute.xlu0 %2575
    %2577 = vrot.lane.b32.xlu0 %v2293, 96
    %v2578 = vpop.permute.xlu0 %2577
    %2579 = vrot.lane.b32.xlu0 %v2294, 96
    %v2580 = vpop.permute.xlu0 %2579
    %2581 = vrot.lane.b32.xlu0 %v2295, 96
    %v2582 = vpop.permute.xlu0 %2581
    %2583 = vrot.lane.b32.xlu0 %v2296, 96
    %v2584 = vpop.permute.xlu0 %2583
    %2585 = vrot.lane.b32.xlu0 %v2297, 96
    %v2586 = vpop.permute.xlu0 %2585
    %2587 = vrot.lane.b32.xlu0 %v2298, 96
    %v2588 = vpop.permute.xlu0 %2587
    %2605 = vrot.lane.b32.xlu0 %v2387, 32
    %v2606 = vpop.permute.xlu0 %2605
    %2607 = vrot.lane.b32.xlu0 %v2390, 32
    %v2608 = vpop.permute.xlu0 %2607
    %2609 = vrot.lane.b32.xlu0 %v2393, 32
    %v2610 = vpop.permute.xlu0 %2609
    %2611 = vrot.lane.b32.xlu0 %v2396, 32
    %v2612 = vpop.permute.xlu0 %2611
    %2613 = vrot.lane.b32.xlu0 %v2399, 32
    %v2614 = vpop.permute.xlu0 %2613
    %2615 = vrot.lane.b32.xlu0 %v2402, 32
    %v2616 = vpop.permute.xlu0 %2615
    %2617 = vrot.lane.b32.xlu0 %v2405, 32
    %v2618 = vpop.permute.xlu0 %2617
    %2619 = vrot.lane.b32.xlu0 %v2455, 32
    %v2620 = vpop.permute.xlu0 %2619
    %2621 = vrot.lane.b32.xlu0 %v2408, 32
    %v2622 = vpop.permute.xlu0 %2621
    %2623 = vrot.lane.b32.xlu0 %v2411, 32
    %v2624 = vpop.permute.xlu0 %2623
    %2625 = vrot.lane.b32.xlu0 %v2414, 32
    %v2626 = vpop.permute.xlu0 %2625
    %2627 = vrot.lane.b32.xlu0 %v2417, 32
    %v2628 = vpop.permute.xlu0 %2627
    %2629 = vrot.lane.b32.xlu0 %v2420, 32
    %v2630 = vpop.permute.xlu0 %2629
    %2631 = vrot.lane.b32.xlu0 %v2423, 32
    %v2632 = vpop.permute.xlu0 %2631
    %2633 = vrot.lane.b32.xlu0 %v2426, 32
    %v2634 = vpop.permute.xlu0 %2633
    %2635 = vrot.lane.b32.xlu0 %v2458, 32
    %v2636 = vpop.permute.xlu0 %2635
    %2653 = vrot.lane.b32.xlu0 %v2284, 64
    %v2654 = vpop.permute.xlu0 %2653
    %2655 = vrot.lane.b32.xlu0 %v2285, 64
    %v2656 = vpop.permute.xlu0 %2655
    %2657 = vrot.lane.b32.xlu0 %v2286, 64
    %v2658 = vpop.permute.xlu0 %2657
    %2659 = vrot.lane.b32.xlu0 %v2287, 64
    %v2660 = vpop.permute.xlu0 %2659
    %2661 = vrot.lane.b32.xlu0 %v2288, 64
    %v2662 = vpop.permute.xlu0 %2661
    %2663 = vrot.lane.b32.xlu0 %v2289, 64
    %v2664 = vpop.permute.xlu0 %2663
    %2665 = vrot.lane.b32.xlu0 %v2290, 64
    %v2666 = vpop.permute.xlu0 %2665
    %2667 = vrot.lane.b32.xlu0 %v2292, 64
    %v2668 = vpop.permute.xlu0 %2667
    %2669 = vrot.lane.b32.xlu0 %v2293, 64
    %v2670 = vpop.permute.xlu0 %2669
    %2671 = vrot.lane.b32.xlu0 %v2294, 64
    %v2672 = vpop.permute.xlu0 %2671
    %2673 = vrot.lane.b32.xlu0 %v2295, 64
    %v2674 = vpop.permute.xlu0 %2673
    %2675 = vrot.lane.b32.xlu0 %v2296, 64
    %v2676 = vpop.permute.xlu0 %2675
    %2677 = vrot.lane.b32.xlu0 %v2297, 64
    %v2678 = vpop.permute.xlu0 %2677
    %2679 = vrot.lane.b32.xlu0 %v2298, 64
    %v2680 = vpop.permute.xlu0 %2679
    %2695 = vrot.lane.b32.xlu0 %v2348, 96
    %v2696 = vpop.permute.xlu0 %2695
    %2697 = vrot.lane.b32.xlu0 %v2351, 96
    %v2698 = vpop.permute.xlu0 %2697
    %2699 = vrot.lane.b32.xlu0 %v2354, 96
    %v2700 = vpop.permute.xlu0 %2699
    %2701 = vrot.lane.b32.xlu0 %v2357, 96
    %v2702 = vpop.permute.xlu0 %2701
    %2703 = vrot.lane.b32.xlu0 %v2360, 96
    %v2704 = vpop.permute.xlu0 %2703
    %2705 = vrot.lane.b32.xlu0 %v2363, 96
    %v2706 = vpop.permute.xlu0 %2705
    %2707 = vrot.lane.b32.xlu0 %v2433, 96
    %v2708 = vpop.permute.xlu0 %2707
    %2709 = vrot.lane.b32.xlu0 %v2369, 96
    %v2710 = vpop.permute.xlu0 %2709
    %2711 = vrot.lane.b32.xlu0 %v2372, 96
    %v2712 = vpop.permute.xlu0 %2711
    %2713 = vrot.lane.b32.xlu0 %v2375, 96
    %v2714 = vpop.permute.xlu0 %2713
    %2715 = vrot.lane.b32.xlu0 %v2378, 96
    %v2716 = vpop.permute.xlu0 %2715
    %2717 = vrot.lane.b32.xlu0 %v2381, 96
    %v2718 = vpop.permute.xlu0 %2717
    %2719 = vrot.lane.b32.xlu0 %v2384, 96
    %v2720 = vpop.permute.xlu0 %2719
    %2721 = vrot.lane.b32.xlu0 %v2436, 96
    %v2722 = vpop.permute.xlu0 %2721
    %v2737 = vsel %vm698, %v2283, %v2474
    %v2738 = vsel %vm698, %v2284, %v2476
    %v2739 = vsel %vm698, %v2285, %v2478
    %v2740 = vsel %vm698, %v2286, %v2480
    %v2741 = vsel %vm698, %v2287, %v2482
    %v2742 = vsel %vm698, %v2288, %v2484
    %v2743 = vsel %vm698, %v2289, %v2486
    %v2744 = vsel %vm698, %v2291, %v2488
    %v2745 = vsel %vm698, %v2292, %v2490
    %v2746 = vsel %vm698, %v2293, %v2492
    %v2747 = vsel %vm698, %v2294, %v2494
    %v2748 = vsel %vm698, %v2295, %v2496
    %v2749 = vsel %vm698, %v2296, %v2498
    %v2750 = vsel %vm698, %v2297, %v2500
    %v2751 = vsel %vm731, %v2737, %v2516
    %v2752 = vsel %vm731, %v2738, %v2518
    %v2753 = vsel %vm731, %v2739, %v2520
    %v2754 = vsel %vm731, %v2740, %v2522
    %v2755 = vsel %vm731, %v2741, %v2524
    %v2756 = vsel %vm731, %v2742, %v2526
    %v2757 = vsel %vm731, %v2743, %v2528
    %v2758 = vsel %vm731, %v2744, %v2530
    %v2759 = vsel %vm731, %v2745, %v2532
    %v2760 = vsel %vm731, %v2746, %v2534
    %v2761 = vsel %vm731, %v2747, %v2536
    %v2762 = vsel %vm731, %v2748, %v2538
    %v2763 = vsel %vm731, %v2749, %v2540
    %v2764 = vsel %vm731, %v2750, %v2542
    %v2765 = vsel %vm765, %v1691, %v2558
    %v2766 = vsel %vm765, %v2751, %v2560
    %v2767 = vsel %vm765, %v2752, %v2562
    %v2768 = vsel %vm765, %v2753, %v2564
    %v2769 = vsel %vm765, %v2754, %v2566
    %v2770 = vsel %vm765, %v2755, %v2568
    %v2771 = vsel %vm765, %v2756, %v2570
    %v2772 = vsel %vm765, %v2757, %v2572
    %v2773 = vsel %vm765, %v1691, %v2574
    %v2774 = vsel %vm765, %v2758, %v2576
    %v2775 = vsel %vm765, %v2759, %v2578
    %v2776 = vsel %vm765, %v2760, %v2580
    %v2777 = vsel %vm765, %v2761, %v2582
    %v2778 = vsel %vm765, %v2762, %v2584
    %v2779 = vsel %vm765, %v2763, %v2586
    %v2780 = vsel %vm765, %v2764, %v2588
    %v2781 = vsel %vm698, %v2345, %v2606
    %v2782 = vsel %vm698, %v2348, %v2608
    %v2783 = vsel %vm698, %v2351, %v2610
    %v2784 = vsel %vm698, %v2354, %v2612
    %v2785 = vsel %vm698, %v2357, %v2614
    %v2786 = vsel %vm698, %v2360, %v2616
    %v2787 = vsel %vm698, %v2363, %v2618
    %v2788 = vsel %vm698, %v2433, %v2620
    %v2789 = vsel %vm698, %v2366, %v2622
    %v2790 = vsel %vm698, %v2369, %v2624
    %v2791 = vsel %vm698, %v2372, %v2626
    %v2792 = vsel %vm698, %v2375, %v2628
    %v2793 = vsel %vm698, %v2378, %v2630
    %v2794 = vsel %vm698, %v2381, %v2632
    %v2795 = vsel %vm698, %v2384, %v2634
    %v2796 = vsel %vm698, %v2436, %v2636
    %v2797 = vsel %vm731, %v2781, %v2654
    %v2798 = vsel %vm731, %v2782, %v2656
    %v2799 = vsel %vm731, %v2783, %v2658
    %v2800 = vsel %vm731, %v2784, %v2660
    %v2801 = vsel %vm731, %v2785, %v2662
    %v2802 = vsel %vm731, %v2786, %v2664
    %v2803 = vsel %vm731, %v2787, %v2666
    %v2804 = vsel %vm731, %v2788, %v1601
    %v2805 = vsel %vm731, %v2789, %v2668
    %v2806 = vsel %vm731, %v2790, %v2670
    %v2807 = vsel %vm731, %v2791, %v2672
    %v2808 = vsel %vm731, %v2792, %v2674
    %v2809 = vsel %vm731, %v2793, %v2676
    %v2810 = vsel %vm731, %v2794, %v2678
    %v2811 = vsel %vm731, %v2795, %v2680
    %v2812 = vsel %vm731, %v2796, %v1601
    %v2813 = vsel %vm765, %v2797, %v2696
    %v2814 = vsel %vm765, %v2798, %v2698
    %v2815 = vsel %vm765, %v2799, %v2700
    %v2816 = vsel %vm765, %v2800, %v2702
    %v2817 = vsel %vm765, %v2801, %v2704
    %v2818 = vsel %vm765, %v2802, %v2706
    %v2819 = vsel %vm765, %v2803, %v2708
    %v2820 = vsel %vm765, %v2804, %v1646
    %v2821 = vsel %vm765, %v2805, %v2710
    %v2822 = vsel %vm765, %v2806, %v2712
    %v2823 = vsel %vm765, %v2807, %v2714
    %v2824 = vsel %vm765, %v2808, %v2716
    %v2825 = vsel %vm765, %v2809, %v2718
    %v2826 = vsel %vm765, %v2810, %v2720
    %v2827 = vsel %vm765, %v2811, %v2722
    %v2828 = vsel %vm765, %v2812, %v1646
    %v2829 = vpack.c.bf16 %v2766, %v2765
    %v2830 = vpack.c.bf16 %v2814, %v2813
    %v2831 = vpack.c.bf16 %v2393, %v2390
    %v2832 = vpack.c.bf16 %v2768, %v2767
    %v2833 = vpack.c.bf16 %v2816, %v2815
    %v2834 = vpack.c.bf16 %v2399, %v2396
    %v2835 = vpack.c.bf16 %v2770, %v2769
    %v2836 = vpack.c.bf16 %v2818, %v2817
    %v2837 = vpack.c.bf16 %v2405, %v2402
    %v2838 = vpack.c.bf16 %v2772, %v2771
    %v2839 = vpack.c.bf16 %v2820, %v2819
    %v2840 = vpack.c.bf16 %v284, %v2455
    %v2841 = vpack.c.bf16 %v2774, %v2773
    %v2842 = vpack.c.bf16 %v2822, %v2821
    %v2843 = vpack.c.bf16 %v2414, %v2411
    %v2844 = vpack.c.bf16 %v2776, %v2775
    %v2845 = vpack.c.bf16 %v2824, %v2823
    %v2846 = vpack.c.bf16 %v2420, %v2417
    %v2847 = vpack.c.bf16 %v2778, %v2777
    %v2848 = vpack.c.bf16 %v2826, %v2825
    %v2849 = vpack.c.bf16 %v2426, %v2423
    %v2850 = vpack.c.bf16 %v2780, %v2779
    %v2851 = vpack.c.bf16 %v2828, %v2827
    %v2852 = vpack.c.bf16 %v284, %v2458
    %v2889 = vunpack.c.l.b16 %v2178
    %v2890 = vunpack.c.l.b16 %v2179
    %v2891 = vunpack.c.l.b16 %v2180
    %v2892 = vunpack.c.l.b16 %v2181
    %v2893 = vunpack.c.l.b16 %v2182
    %v2894 = vunpack.c.l.b16 %v2183
    %v2895 = vunpack.c.l.b16 %v2184
    %v2896 = vunpack.c.l.b16 %v2185
    %v2897 = vunpack.c.l.b16 %v2186
    %v2898 = vunpack.c.l.b16 %v2187
    %v2899 = vunpack.c.l.b16 %v2188
    %v2900 = vunpack.c.l.b16 %v2189
    %v2901 = vunpack.c.l.b16 %v2190
    %v2902 = vunpack.c.l.b16 %v2191
    %v2903 = vunpack.c.l.b16 %v2192
    %v2904 = vunpack.c.l.b16 %v2193
    %v2905 = vunpack.c.l.b16 %v2194
    %v2906 = vunpack.c.l.b16 %v2195
    %v2907 = vunpack.c.l.b16 %v2196
    %v2908 = vunpack.c.l.b16 %v2197
    %v2909 = vunpack.c.l.b16 %v2198
    %v2910 = vunpack.c.l.b16 %v2199
    %v2911 = vunpack.c.l.b16 %v2200
    %v2912 = vunpack.c.l.b16 %v2201
    %v2913 = vunpack.c.l.b16 %v2202
    %v2914 = vunpack.c.l.b16 %v2203
    %v2915 = vunpack.c.l.b16 %v2204
    %v2916 = vunpack.c.l.b16 %v2205
    %v2917 = vunpack.c.l.b16 %v2206
    %v2918 = vunpack.c.l.b16 %v2207
    %v2919 = vunpack.c.l.b16 %v2208
    %v2920 = vunpack.c.l.b16 %v2209
    %v2921 = vunpack.c.l.b16 %v2210
    %v2922 = vunpack.c.l.b16 %v2211
    %v2923 = vunpack.c.l.b16 %v2212
    %v2924 = vunpack.c.l.b16 %v2213
    %v2925 = vpack.c.b16 %v2890, %v2889
    %v2926 = vpack.c.b16 %v2892, %v2891
    %v2927 = vpack.c.b16 %v2894, %v2893
    %v2928 = vpack.c.b16 %v2896, %v2895
    %v2929 = vpack.c.b16 %v2898, %v2897
    %v2930 = vpack.c.b16 %v2900, %v2899
    %v2931 = vpack.c.b16 %v2902, %v2901
    %v2932 = vpack.c.b16 %v2904, %v2903
    %v2933 = vpack.c.b16 %v2906, %v2905
    %v2934 = vpack.c.b16 %v2908, %v2907
    %v2935 = vpack.c.b16 %v2910, %v2909
    %v2936 = vpack.c.b16 %v2912, %v2911
    %v2937 = vpack.c.b16 %v2914, %v2913
    %v2938 = vpack.c.b16 %v2916, %v2915
    %v2939 = vpack.c.b16 %v2918, %v2917
    %v2940 = vpack.c.b16 %v2920, %v2919
    %v2941 = vpack.c.b16 %v2922, %v2921
    %v2942 = vpack.c.b16 %v2924, %v2923
    %v2962 = vsel %vm698, %v2831, 0
    %v2965 = vsel %vm698, %v2834, 0
    %v2968 = vsel %vm698, %v2837, 0
    %v2971 = vsel %vm698, %v2840, 0
    %v2974 = vsel %vm698, %v2843, 0
    %v2977 = vsel %vm698, %v2846, 0
    %v2980 = vsel %vm698, %v2849, 0
    %v2983 = vsel %vm698, %v2852, 0
    %2985 = vmatprep.subr.bf16.mxu0 0
    %2986 = vmatpush1.bf16.msra.mxu0 %v2932
    %2987 = vmatprep.subr.bf16.mxu0 0
    %2988 = vmatpush1.bf16.msra.mxu0 %v2931
    %2989 = vmatprep.subr.bf16.mxu0 0
    %2990 = vmatpush1.bf16.msra.mxu0 %v2930
    %2991 = vmatprep.subr.bf16.mxu0 0
    %2992 = vmatpush1.bf16.msra.mxu0 %v2929
    %2993 = vmatprep.subr.bf16.mxu0 0
    %2994 = vmatpush1.bf16.msra.mxu0 %v2928
    %2995 = vmatprep.subr.bf16.mxu0 0
    %2996 = vmatpush1.bf16.msra.mxu0 %v2927
    %2997 = vmatprep.subr.bf16.mxu0 0
    %2998 = vmatpush1.bf16.msra.mxu0 %v2926
    %2999 = vmatprep.subr.bf16.mxu0 0
    %3000 = vmatpush1.bf16.msra.mxu0 %v2925
    %3001 = vmatprep.subr.bf16.mxu0 0
    %3002 = vmatpush2.bf16.msra.mxu0 %v2940
    %3003 = vmatprep.subr.bf16.mxu0 0
    %3004 = vmatpush2.bf16.msra.mxu0 %v2939
    %3005 = vmatprep.subr.bf16.mxu0 0
    %3006 = vmatpush2.bf16.msra.mxu0 %v2938
    %3007 = vmatprep.subr.bf16.mxu0 0
    %3008 = vmatpush2.bf16.msra.mxu0 %v2937
    %3009 = vmatprep.subr.bf16.mxu0 0
    %3010 = vmatpush2.bf16.msra.mxu0 %v2936
    %3011 = vmatprep.subr.bf16.mxu0 0
    %3012 = vmatpush2.bf16.msra.mxu0 %v2935
    %3013 = vmatprep.subr.bf16.mxu0 0
    %3014 = vmatpush2.bf16.msra.mxu0 %v2934
    %3015 = vmatprep.subr.bf16.mxu0 0
    %3016 = vmatpush2.bf16.msra.mxu0 %v2933
    %3017 = vmatprep.mubr.bf16.mxu0 %v2830
    %3018 = vmatmul.mubr.bf16.gmra.mxu0 %v2829
    %v3019 = vpop.f32.mrf.mxu0
    %v3020 = vadd.f32 0.0, %v3019
    %v3021 = vpop.f32.mrf.mxu0
    %v3022 = vpop.f32.mrf.mxu0
    %v3023 = vadd.f32 0.0, %v3022
    %v3024 = vpop.f32.mrf.mxu0
    %3025 = vmatprep.mubr.bf16.mxu0 %v2833
    %3026 = vmatmul.mubr.bf16.gmra.mxu0 %v2832
    %v3027 = vpop.f32.mrf.mxu0
    %v3028 = vadd.f32 0.0, %v3027
    %v3029 = vpop.f32.mrf.mxu0
    %v3030 = vpop.f32.mrf.mxu0
    %v3031 = vadd.f32 0.0, %v3030
    %v3032 = vpop.f32.mrf.mxu0
    %3033 = vmatprep.mubr.bf16.mxu0 %v2836
    %3034 = vmatmul.mubr.bf16.gmra.mxu0 %v2835
    %v3035 = vpop.f32.mrf.mxu0
    %v3036 = vadd.f32 0.0, %v3035
    %v3037 = vpop.f32.mrf.mxu0
    %v3038 = vpop.f32.mrf.mxu0
    %v3039 = vadd.f32 0.0, %v3038
    %v3040 = vpop.f32.mrf.mxu0
    %3041 = vmatprep.mubr.bf16.mxu0 %v2839
    %3042 = vmatmul.mubr.bf16.gmra.mxu0 %v2838
    %v3043 = vpop.f32.mrf.mxu0
    %v3044 = vadd.f32 0.0, %v3043
    %v3045 = vpop.f32.mrf.mxu0
    %v3046 = vpop.f32.mrf.mxu0
    %v3047 = vadd.f32 0.0, %v3046
    %v3048 = vpop.f32.mrf.mxu0
    %3049 = vmatprep.mubr.bf16.mxu0 %v2842
    %3050 = vmatmul.mubr.bf16.gmra.mxu0 %v2841
    %v3051 = vpop.f32.mrf.mxu0
    %v3052 = vadd.f32 0.0, %v3051
    %v3053 = vpop.f32.mrf.mxu0
    %v3054 = vpop.f32.mrf.mxu0
    %v3055 = vadd.f32 0.0, %v3054
    %v3056 = vpop.f32.mrf.mxu0
    %3057 = vmatprep.mubr.bf16.mxu0 %v2845
    %3058 = vmatmul.mubr.bf16.gmra.mxu0 %v2844
    %v3059 = vpop.f32.mrf.mxu0
    %v3060 = vadd.f32 0.0, %v3059
    %v3061 = vpop.f32.mrf.mxu0
    %v3062 = vpop.f32.mrf.mxu0
    %v3063 = vadd.f32 0.0, %v3062
    %v3064 = vpop.f32.mrf.mxu0
    %3065 = vmatprep.mubr.bf16.mxu0 %v2848
    %3066 = vmatmul.mubr.bf16.gmra.mxu0 %v2847
    %v3067 = vpop.f32.mrf.mxu0
    %v3068 = vadd.f32 0.0, %v3067
    %v3069 = vpop.f32.mrf.mxu0
    %v3070 = vpop.f32.mrf.mxu0
    %v3071 = vadd.f32 0.0, %v3070
    %v3072 = vpop.f32.mrf.mxu0
    %3073 = vmatprep.mubr.bf16.mxu0 %v2851
    %3074 = vmatmul.mubr.bf16.gmra.mxu0 %v2850
    %v3075 = vpop.f32.mrf.mxu0
    %v3076 = vadd.f32 0.0, %v3075
    %v3077 = vpop.f32.mrf.mxu0
    %v3078 = vpop.f32.mrf.mxu0
    %v3079 = vadd.f32 0.0, %v3078
    %v3080 = vpop.f32.mrf.mxu0
    %3081 = vdwg.mxu0
    %3082 = vmatprep.subr.bf16.mxu0 0
    %3083 = vmatpush1.bf16.msra.mxu0 0
    %3084 = vmatprep.subr.bf16.mxu0 0
    %3085 = vmatpush1.bf16.msra.mxu0 0
    %3086 = vmatprep.subr.bf16.mxu0 0
    %3087 = vmatpush1.bf16.msra.mxu0 0
    %3088 = vmatprep.subr.bf16.mxu0 0
    %3089 = vmatpush1.bf16.msra.mxu0 0
    %3090 = vmatprep.subr.bf16.mxu0 0
    %3091 = vmatpush1.bf16.msra.mxu0 0
    %3092 = vmatprep.subr.bf16.mxu0 0
    %3093 = vmatpush1.bf16.msra.mxu0 0
    %3094 = vmatprep.subr.bf16.mxu0 0
    %3095 = vmatpush1.bf16.msra.mxu0 %v2942
    %3096 = vmatprep.subr.bf16.mxu0 0
    %3097 = vmatpush1.bf16.msra.mxu0 %v2941
    %3098 = vmatprep.subr.bf16.mxu0 0
    %3099 = vmatpush2.bf16.msra.mxu0 0
    %3100 = vmatprep.subr.bf16.mxu0 0
    %3101 = vmatpush2.bf16.msra.mxu0 0
    %3102 = vmatprep.subr.bf16.mxu0 0
    %3103 = vmatpush2.bf16.msra.mxu0 0
    %3104 = vmatprep.subr.bf16.mxu0 0
    %3105 = vmatpush2.bf16.msra.mxu0 0
    %3106 = vmatprep.subr.bf16.mxu0 0
    %3107 = vmatpush2.bf16.msra.mxu0 0
    %3108 = vmatprep.subr.bf16.mxu0 0
    %3109 = vmatpush2.bf16.msra.mxu0 0
    %3110 = vmatprep.subr.bf16.mxu0 0
    %3111 = vmatpush2.bf16.msra.mxu0 0
    %3112 = vmatprep.subr.bf16.mxu0 0
    %3113 = vmatpush2.bf16.msra.mxu0 0
    %3114 = vmatprep.mubr.bf16.mxu0 0
    %3115 = vmatmul.mubr.bf16.gmra.mxu0 %v2962
    %v3116 = vpop.f32.mrf.mxu0
    %v3117 = vadd.f32 %v3020, %v3116
    %v3118 = vpop.f32.mrf.mxu0
    %v3119 = vpop.f32.mrf.mxu0
    %v3120 = vadd.f32 %v3023, %v3119
    %v3121 = vpop.f32.mrf.mxu0
    %3122 = vmatprep.mubr.bf16.mxu0 0
    %3123 = vmatmul.mubr.bf16.gmra.mxu0 %v2965
    %v3124 = vpop.f32.mrf.mxu0
    %v3125 = vadd.f32 %v3028, %v3124
    %v3126 = vpop.f32.mrf.mxu0
    %v3127 = vpop.f32.mrf.mxu0
    %v3128 = vadd.f32 %v3031, %v3127
    %v3129 = vpop.f32.mrf.mxu0
    %3130 = vmatprep.mubr.bf16.mxu0 0
    %3131 = vmatmul.mubr.bf16.gmra.mxu0 %v2968
    %v3132 = vpop.f32.mrf.mxu0
    %v3133 = vadd.f32 %v3036, %v3132
    %v3134 = vpop.f32.mrf.mxu0
    %v3135 = vpop.f32.mrf.mxu0
    %v3136 = vadd.f32 %v3039, %v3135
    %v3137 = vpop.f32.mrf.mxu0
    %3138 = vmatprep.mubr.bf16.mxu0 0
    %3139 = vmatmul.mubr.bf16.gmra.mxu0 %v2971
    %v3140 = vpop.f32.mrf.mxu0
    %v3141 = vadd.f32 %v3044, %v3140
    %v3142 = vpop.f32.mrf.mxu0
    %v3143 = vpop.f32.mrf.mxu0
    %v3144 = vadd.f32 %v3047, %v3143
    %v3145 = vpop.f32.mrf.mxu0
    %3146 = vmatprep.mubr.bf16.mxu0 0
    %3147 = vmatmul.mubr.bf16.gmra.mxu0 %v2974
    %v3148 = vpop.f32.mrf.mxu0
    %v3149 = vadd.f32 %v3052, %v3148
    %v3150 = vpop.f32.mrf.mxu0
    %v3151 = vpop.f32.mrf.mxu0
    %v3152 = vadd.f32 %v3055, %v3151
    %v3153 = vpop.f32.mrf.mxu0
    %3154 = vmatprep.mubr.bf16.mxu0 0
    %3155 = vmatmul.mubr.bf16.gmra.mxu0 %v2977
    %v3156 = vpop.f32.mrf.mxu0
    %v3157 = vadd.f32 %v3060, %v3156
    %v3158 = vpop.f32.mrf.mxu0
    %v3159 = vpop.f32.mrf.mxu0
    %v3160 = vadd.f32 %v3063, %v3159
    %v3161 = vpop.f32.mrf.mxu0
    %3162 = vmatprep.mubr.bf16.mxu0 0
    %3163 = vmatmul.mubr.bf16.gmra.mxu0 %v2980
    %v3164 = vpop.f32.mrf.mxu0
    %v3165 = vadd.f32 %v3068, %v3164
    %v3166 = vpop.f32.mrf.mxu0
    %v3167 = vpop.f32.mrf.mxu0
    %v3168 = vadd.f32 %v3071, %v3167
    %v3169 = vpop.f32.mrf.mxu0
    %3170 = vmatprep.mubr.bf16.mxu0 0
    %3171 = vmatmul.mubr.bf16.gmra.mxu0 %v2983
    %v3172 = vpop.f32.mrf.mxu0
    %v3173 = vadd.f32 %v3076, %v3172
    %v3174 = vpop.f32.mrf.mxu0
    %v3175 = vpop.f32.mrf.mxu0
    %v3176 = vadd.f32 %v3079, %v3175
    %v3177 = vpop.f32.mrf.mxu0
    %3178 = vdwg.mxu0
    %v3179 = vsel %vm682, %v3117, 0.0
    %v3180 = vsel %vm682, %v3120, 0.0
    %v3181 = vadd.f32 %v3179, %v3180
    %v3182 = vsel %vm682, %v3125, 0.0
    %v3183 = vadd.f32 %v3181, %v3182
    %v3184 = vsel %vm682, %v3128, 0.0
    %v3185 = vadd.f32 %v3183, %v3184
    %v3186 = vsel %vm682, %v3133, 0.0
    %v3187 = vadd.f32 %v3185, %v3186
    %v3188 = vsel %vm682, %v3136, 0.0
    %v3189 = vadd.f32 %v3187, %v3188
    %v3190 = vsel %vm682, %v3141, 0.0
    %v3191 = vadd.f32 %v3189, %v3190
    %v3192 = vsel %vm682, %v3144, 0.0
    %v3193 = vadd.f32 %v3191, %v3192
    %v3194 = vsel %vm682, %v3149, 0.0
    %v3195 = vadd.f32 %v3193, %v3194
    %v3196 = vsel %vm682, %v3152, 0.0
    %v3197 = vadd.f32 %v3195, %v3196
    %v3198 = vsel %vm682, %v3157, 0.0
    %v3199 = vadd.f32 %v3197, %v3198
    %v3200 = vsel %vm682, %v3160, 0.0
    %v3201 = vadd.f32 %v3199, %v3200
    %v3202 = vsel %vm682, %v3165, 0.0
    %v3203 = vadd.f32 %v3201, %v3202
    %v3204 = vsel %vm682, %v3168, 0.0
    %v3205 = vadd.f32 %v3203, %v3204
    %v3206 = vsel %vm682, %v3173, 0.0
    %v3207 = vadd.f32 %v3205, %v3206
    %v3208 = vsel %vm682, %v3176, 0.0
    %v3209 = vadd.f32 %v3207, %v3208
    %v3210 = vrot.slane %v3209, 4
    %v3211 = vadd.f32 %v3209, %v3210
    %v3212 = vrot.slane %v3211, 2
    %v3213 = vadd.f32 %v3211, %v3212
    %v3214 = vrot.slane %v3213, 1
    %v3215 = vadd.f32 %v3213, %v3214
    %v3216 = vmul.f32 %v3215, %v1027
    %v3217 = vsub.f32 %v3117, %v3216
    %v3218 = vsub.f32 %v3120, %v3216
    %v3219 = vsub.f32 %v3125, %v3216
    %v3220 = vsub.f32 %v3128, %v3216
    %v3221 = vsub.f32 %v3133, %v3216
    %v3222 = vsub.f32 %v3136, %v3216
    %v3223 = vsub.f32 %v3141, %v3216
    %v3224 = vsub.f32 %v3144, %v3216
    %v3225 = vsub.f32 %v3149, %v3216
    %v3226 = vsub.f32 %v3152, %v3216
    %v3227 = vsub.f32 %v3157, %v3216
    %v3228 = vsub.f32 %v3160, %v3216
    %v3229 = vsub.f32 %v3165, %v3216
    %v3230 = vsub.f32 %v3168, %v3216
    %v3231 = vsub.f32 %v3173, %v3216
    %v3232 = vsub.f32 %v3176, %v3216
    %v3233 = vmul.f32 %v3217, %v3217
    %v3234 = vmul.f32 %v3218, %v3218
    %v3235 = vmul.f32 %v3219, %v3219
    %v3236 = vmul.f32 %v3220, %v3220
    %v3237 = vmul.f32 %v3221, %v3221
    %v3238 = vmul.f32 %v3222, %v3222
    %v3239 = vmul.f32 %v3223, %v3223
    %v3240 = vmul.f32 %v3224, %v3224
    %v3241 = vmul.f32 %v3225, %v3225
    %v3242 = vmul.f32 %v3226, %v3226
    %v3243 = vmul.f32 %v3227, %v3227
    %v3244 = vmul.f32 %v3228, %v3228
    %v3245 = vmul.f32 %v3229, %v3229
    %v3246 = vmul.f32 %v3230, %v3230
    %v3247 = vmul.f32 %v3231, %v3231
    %v3248 = vmul.f32 %v3232, %v3232
    %v3249 = vsel %vm682, %v3233, 0.0
    %v3250 = vsel %vm682, %v3234, 0.0
    %v3251 = vadd.f32 %v3249, %v3250
    %v3252 = vsel %vm682, %v3235, 0.0
    %v3253 = vadd.f32 %v3251, %v3252
    %v3254 = vsel %vm682, %v3236, 0.0
    %v3255 = vadd.f32 %v3253, %v3254
    %v3256 = vsel %vm682, %v3237, 0.0
    %v3257 = vadd.f32 %v3255, %v3256
    %v3258 = vsel %vm682, %v3238, 0.0
    %v3259 = vadd.f32 %v3257, %v3258
    %v3260 = vsel %vm682, %v3239, 0.0
    %v3261 = vadd.f32 %v3259, %v3260
    %v3262 = vsel %vm682, %v3240, 0.0
    %v3263 = vadd.f32 %v3261, %v3262
    %v3264 = vsel %vm682, %v3241, 0.0
    %v3265 = vadd.f32 %v3263, %v3264
    %v3266 = vsel %vm682, %v3242, 0.0
    %v3267 = vadd.f32 %v3265, %v3266
    %v3268 = vsel %vm682, %v3243, 0.0
    %v3269 = vadd.f32 %v3267, %v3268
    %v3270 = vsel %vm682, %v3244, 0.0
    %v3271 = vadd.f32 %v3269, %v3270
    %v3272 = vsel %vm682, %v3245, 0.0
    %v3273 = vadd.f32 %v3271, %v3272
    %v3274 = vsel %vm682, %v3246, 0.0
    %v3275 = vadd.f32 %v3273, %v3274
    %v3276 = vsel %vm682, %v3247, 0.0
    %v3277 = vadd.f32 %v3275, %v3276
    %v3278 = vsel %vm682, %v3248, 0.0
    %v3279 = vadd.f32 %v3277, %v3278
    %v3280 = vrot.slane %v3279, 4
    %v3281 = vadd.f32 %v3279, %v3280
    %v3282 = vrot.slane %v3281, 2
    %v3283 = vadd.f32 %v3281, %v3282
    %v3284 = vrot.slane %v3283, 1
    %v3285 = vadd.f32 %v3283, %v3284
    %v3286 = vmul.f32 %v3285, %v1027
    %v3287 = vadd.f32 %v3286, 1e-05
    %v3288 = vrsqrt.pop %v3287
    %v3289 = vmul.f32 %v2214, %v3288
    %v3291 = vlaneseq
    %v3292 = vshrl.u32 %v3291, 7
    %v3293 = vsub.s32 0, %v3292
    %v3294 = vrot.slane %v3289, %v3293
    %v3296 = vmul.f32 %v3217, %v3294
    %v3297 = vmul.f32 %v3218, %v3294
    %v3298 = vmul.f32 %v3219, %v3294
    %v3299 = vmul.f32 %v3220, %v3294
    %v3300 = vmul.f32 %v3221, %v3294
    %v3301 = vmul.f32 %v3222, %v3294
    %v3302 = vmul.f32 %v3223, %v3294
    %v3303 = vmul.f32 %v3224, %v3294
    %v3304 = vmul.f32 %v3225, %v3294
    %v3305 = vmul.f32 %v3226, %v3294
    %v3306 = vmul.f32 %v3227, %v3294
    %v3307 = vmul.f32 %v3228, %v3294
    %v3308 = vmul.f32 %v3229, %v3294
    %v3309 = vmul.f32 %v3230, %v3294
    %v3310 = vmul.f32 %v3231, %v3294
    %v3311 = vmul.f32 %v3232, %v3294
    %v3313 = vlaneseq
    %v3314 = vshrl.u32 %v3313, 7
    %v3315 = vsub.s32 0, %v3314
    %v3316 = vrot.slane %v2215, %v3315
    %v3318 = vadd.f32 %v3296, %v3316
    %v3319 = vadd.f32 %v3297, %v3316
    %v3320 = vadd.f32 %v3298, %v3316
    %v3321 = vadd.f32 %v3299, %v3316
    %v3322 = vadd.f32 %v3300, %v3316
    %v3323 = vadd.f32 %v3301, %v3316
    %v3324 = vadd.f32 %v3302, %v3316
    %v3325 = vadd.f32 %v3303, %v3316
    %v3326 = vadd.f32 %v3304, %v3316
    %v3327 = vadd.f32 %v3305, %v3316
    %v3328 = vadd.f32 %v3306, %v3316
    %v3329 = vadd.f32 %v3307, %v3316
    %v3330 = vadd.f32 %v3308, %v3316
    %v3331 = vadd.f32 %v3309, %v3316
    %v3332 = vadd.f32 %v3310, %v3316
    %v3333 = vadd.f32 %v3311, %v3316
    %v3334 = vmax.f32 %v3318, 0.0
    %v3335 = vmax.f32 %v3319, 0.0
    %v3336 = vmax.f32 %v3320, 0.0
    %v3337 = vmax.f32 %v3321, 0.0
    %v3338 = vmax.f32 %v3322, 0.0
    %v3339 = vmax.f32 %v3323, 0.0
    %v3340 = vmax.f32 %v3324, 0.0
    %v3341 = vmax.f32 %v3325, 0.0
    %v3342 = vmax.f32 %v3326, 0.0
    %v3343 = vmax.f32 %v3327, 0.0
    %v3344 = vmax.f32 %v3328, 0.0
    %v3345 = vmax.f32 %v3329, 0.0
    %v3346 = vmax.f32 %v3330, 0.0
    %v3347 = vmax.f32 %v3331, 0.0
    %v3348 = vmax.f32 %v3332, 0.0
    %v3349 = vmax.f32 %v3333, 0.0
    %v3366 = vrot.slane %v3334, 7
    %v3367 = vrot.slane %v3335, 7
    %v3368 = vrot.slane %v3336, 7
    %v3369 = vrot.slane %v3337, 7
    %v3370 = vrot.slane %v3338, 7
    %v3371 = vrot.slane %v3339, 7
    %v3372 = vrot.slane %v3340, 7
    %v3373 = vrot.slane %v3341, 7
    %v3374 = vrot.slane %v3342, 7
    %v3375 = vrot.slane %v3343, 7
    %v3376 = vrot.slane %v3344, 7
    %v3377 = vrot.slane %v3345, 7
    %v3378 = vrot.slane %v3346, 7
    %v3379 = vrot.slane %v3347, 7
    %v3380 = vrot.slane %v3348, 7
    %v3381 = vrot.slane %v3349, 7
    %v3398 = vsel %vm170, 0.0, %v3366
    %v3399 = vsel %vm170, 0.0, %v3367
    %v3400 = vsel %vm170, 0.0, %v3368
    %v3401 = vsel %vm170, 0.0, %v3369
    %v3402 = vsel %vm170, 0.0, %v3370
    %v3403 = vsel %vm170, 0.0, %v3371
    %v3404 = vsel %vm170, 0.0, %v3372
    %v3405 = vsel %vm170, 0.0, %v3373
    %v3406 = vsel %vm170, 0.0, %v3374
    %v3407 = vsel %vm170, 0.0, %v3375
    %v3408 = vsel %vm170, 0.0, %v3376
    %v3409 = vsel %vm170, 0.0, %v3377
    %v3410 = vsel %vm170, 0.0, %v3378
    %v3411 = vsel %vm170, 0.0, %v3379
    %v3412 = vsel %vm170, 0.0, %v3380
    %v3413 = vsel %vm170, 0.0, %v3381
    %v3414 = vsel %vm170, %v3366, 0.0
    %v3415 = vsel %vm170, %v3367, 0.0
    %v3416 = vsel %vm170, %v3368, 0.0
    %v3417 = vsel %vm170, %v3369, 0.0
    %v3418 = vsel %vm170, %v3370, 0.0
    %v3419 = vsel %vm170, %v3371, 0.0
    %v3420 = vsel %vm170, %v3372, 0.0
    %v3421 = vsel %vm170, %v3373, 0.0
    %v3422 = vsel %vm170, %v3374, 0.0
    %v3423 = vsel %vm170, %v3375, 0.0
    %v3424 = vsel %vm170, %v3376, 0.0
    %v3425 = vsel %vm170, %v3377, 0.0
    %v3426 = vsel %vm170, %v3378, 0.0
    %v3427 = vsel %vm170, %v3379, 0.0
    %v3428 = vsel %vm170, %v3380, 0.0
    %v3429 = vsel %vm170, %v3381, 0.0
    %v3458 = vrot.slane %v3398, 1
    %v3459 = vrot.slane %v3414, 1
    %v3460 = vsel %vm235, %v3458, %v3459
    %v3461 = vrot.slane %v3399, 1
    %v3462 = vrot.slane %v3415, 1
    %v3463 = vsel %vm235, %v3461, %v3462
    %v3464 = vrot.slane %v3400, 1
    %v3465 = vrot.slane %v3416, 1
    %v3466 = vsel %vm235, %v3464, %v3465
    %v3467 = vrot.slane %v3401, 1
    %v3468 = vrot.slane %v3417, 1
    %v3469 = vsel %vm235, %v3467, %v3468
    %v3470 = vrot.slane %v3402, 1
    %v3471 = vrot.slane %v3418, 1
    %v3472 = vsel %vm235, %v3470, %v3471
    %v3473 = vrot.slane %v3403, 1
    %v3474 = vrot.slane %v3419, 1
    %v3475 = vsel %vm235, %v3473, %v3474
    %v3476 = vrot.slane %v3404, 1
    %v3477 = vrot.slane %v3420, 1
    %v3478 = vsel %vm235, %v3476, %v3477
    %v3479 = vrot.slane %v3406, 1
    %v3480 = vrot.slane %v3422, 1
    %v3481 = vsel %vm235, %v3479, %v3480
    %v3482 = vrot.slane %v3407, 1
    %v3483 = vrot.slane %v3423, 1
    %v3484 = vsel %vm235, %v3482, %v3483
    %v3485 = vrot.slane %v3408, 1
    %v3486 = vrot.slane %v3424, 1
    %v3487 = vsel %vm235, %v3485, %v3486
    %v3488 = vrot.slane %v3409, 1
    %v3489 = vrot.slane %v3425, 1
    %v3490 = vsel %vm235, %v3488, %v3489
    %v3491 = vrot.slane %v3410, 1
    %v3492 = vrot.slane %v3426, 1
    %v3493 = vsel %vm235, %v3491, %v3492
    %v3494 = vrot.slane %v3411, 1
    %v3495 = vrot.slane %v3427, 1
    %v3496 = vsel %vm235, %v3494, %v3495
    %v3497 = vrot.slane %v3412, 1
    %v3498 = vrot.slane %v3428, 1
    %v3499 = vsel %vm235, %v3497, %v3498
    %v3500 = vrot.slane %v3398, 2
    %v3501 = vrot.slane %v3414, 2
    %v3502 = vsel %vm281, %v3500, %v3501
    %v3503 = vrot.slane %v3399, 2
    %v3504 = vrot.slane %v3415, 2
    %v3505 = vsel %vm281, %v3503, %v3504
    %v3506 = vrot.slane %v3400, 2
    %v3507 = vrot.slane %v3416, 2
    %v3508 = vsel %vm281, %v3506, %v3507
    %v3509 = vrot.slane %v3401, 2
    %v3510 = vrot.slane %v3417, 2
    %v3511 = vsel %vm281, %v3509, %v3510
    %v3512 = vrot.slane %v3402, 2
    %v3513 = vrot.slane %v3418, 2
    %v3514 = vsel %vm281, %v3512, %v3513
    %v3515 = vrot.slane %v3403, 2
    %v3516 = vrot.slane %v3419, 2
    %v3517 = vsel %vm281, %v3515, %v3516
    %v3518 = vrot.slane %v3404, 2
    %v3519 = vrot.slane %v3420, 2
    %v3520 = vsel %vm281, %v3518, %v3519
    %v3521 = vrot.slane %v3406, 2
    %v3522 = vrot.slane %v3422, 2
    %v3523 = vsel %vm281, %v3521, %v3522
    %v3524 = vrot.slane %v3407, 2
    %v3525 = vrot.slane %v3423, 2
    %v3526 = vsel %vm281, %v3524, %v3525
    %v3527 = vrot.slane %v3408, 2
    %v3528 = vrot.slane %v3424, 2
    %v3529 = vsel %vm281, %v3527, %v3528
    %v3530 = vrot.slane %v3409, 2
    %v3531 = vrot.slane %v3425, 2
    %v3532 = vsel %vm281, %v3530, %v3531
    %v3533 = vrot.slane %v3410, 2
    %v3534 = vrot.slane %v3426, 2
    %v3535 = vsel %vm281, %v3533, %v3534
    %v3536 = vrot.slane %v3411, 2
    %v3537 = vrot.slane %v3427, 2
    %v3538 = vsel %vm281, %v3536, %v3537
    %v3539 = vrot.slane %v3412, 2
    %v3540 = vrot.slane %v3428, 2
    %v3541 = vsel %vm281, %v3539, %v3540
    %v3546 = vrot.slane %v3405, 1
    %v3547 = vrot.slane %v3421, 1
    %v3548 = vsel %vm235, %v3546, %v3547
    %v3549 = vrot.slane %v3413, 1
    %v3550 = vrot.slane %v3429, 1
    %v3551 = vsel %vm235, %v3549, %v3550
    %v3552 = vrot.slane %v3405, 2
    %v3553 = vrot.slane %v3421, 2
    %v3554 = vsel %vm281, %v3552, %v3553
    %v3555 = vrot.slane %v3413, 2
    %v3556 = vrot.slane %v3429, 2
    %v3557 = vsel %vm281, %v3555, %v3556
    %3572 = vrot.lane.b32.xlu0 %v3460, 16
    %v3573 = vpop.permute.xlu0 %3572
    %3574 = vrot.lane.b32.xlu0 %v3463, 16
    %v3575 = vpop.permute.xlu0 %3574
    %3576 = vrot.lane.b32.xlu0 %v3466, 16
    %v3577 = vpop.permute.xlu0 %3576
    %3578 = vrot.lane.b32.xlu0 %v3469, 16
    %v3579 = vpop.permute.xlu0 %3578
    %3580 = vrot.lane.b32.xlu0 %v3472, 16
    %v3581 = vpop.permute.xlu0 %3580
    %3582 = vrot.lane.b32.xlu0 %v3475, 16
    %v3583 = vpop.permute.xlu0 %3582
    %3584 = vrot.lane.b32.xlu0 %v3478, 16
    %v3585 = vpop.permute.xlu0 %3584
    %3586 = vrot.lane.b32.xlu0 %v3481, 16
    %v3587 = vpop.permute.xlu0 %3586
    %3588 = vrot.lane.b32.xlu0 %v3484, 16
    %v3589 = vpop.permute.xlu0 %3588
    %3590 = vrot.lane.b32.xlu0 %v3487, 16
    %v3591 = vpop.permute.xlu0 %3590
    %3592 = vrot.lane.b32.xlu0 %v3490, 16
    %v3593 = vpop.permute.xlu0 %3592
    %3594 = vrot.lane.b32.xlu0 %v3493, 16
    %v3595 = vpop.permute.xlu0 %3594
    %3596 = vrot.lane.b32.xlu0 %v3496, 16
    %v3597 = vpop.permute.xlu0 %3596
    %3598 = vrot.lane.b32.xlu0 %v3499, 16
    %v3599 = vpop.permute.xlu0 %3598
    %3614 = vrot.lane.b32.xlu0 %v3502, 32
    %v3615 = vpop.permute.xlu0 %3614
    %3616 = vrot.lane.b32.xlu0 %v3505, 32
    %v3617 = vpop.permute.xlu0 %3616
    %3618 = vrot.lane.b32.xlu0 %v3508, 32
    %v3619 = vpop.permute.xlu0 %3618
    %3620 = vrot.lane.b32.xlu0 %v3511, 32
    %v3621 = vpop.permute.xlu0 %3620
    %3622 = vrot.lane.b32.xlu0 %v3514, 32
    %v3623 = vpop.permute.xlu0 %3622
    %3624 = vrot.lane.b32.xlu0 %v3517, 32
    %v3625 = vpop.permute.xlu0 %3624
    %3626 = vrot.lane.b32.xlu0 %v3520, 32
    %v3627 = vpop.permute.xlu0 %3626
    %3628 = vrot.lane.b32.xlu0 %v3523, 32
    %v3629 = vpop.permute.xlu0 %3628
    %3630 = vrot.lane.b32.xlu0 %v3526, 32
    %v3631 = vpop.permute.xlu0 %3630
    %3632 = vrot.lane.b32.xlu0 %v3529, 32
    %v3633 = vpop.permute.xlu0 %3632
    %3634 = vrot.lane.b32.xlu0 %v3532, 32
    %v3635 = vpop.permute.xlu0 %3634
    %3636 = vrot.lane.b32.xlu0 %v3535, 32
    %v3637 = vpop.permute.xlu0 %3636
    %3638 = vrot.lane.b32.xlu0 %v3538, 32
    %v3639 = vpop.permute.xlu0 %3638
    %3640 = vrot.lane.b32.xlu0 %v3541, 32
    %v3641 = vpop.permute.xlu0 %3640
    %3656 = vrot.lane.b32.xlu0 %v3398, 48
    %v3657 = vpop.permute.xlu0 %3656
    %3658 = vrot.lane.b32.xlu0 %v3399, 48
    %v3659 = vpop.permute.xlu0 %3658
    %3660 = vrot.lane.b32.xlu0 %v3400, 48
    %v3661 = vpop.permute.xlu0 %3660
    %3662 = vrot.lane.b32.xlu0 %v3401, 48
    %v3663 = vpop.permute.xlu0 %3662
    %3664 = vrot.lane.b32.xlu0 %v3402, 48
    %v3665 = vpop.permute.xlu0 %3664
    %3666 = vrot.lane.b32.xlu0 %v3403, 48
    %v3667 = vpop.permute.xlu0 %3666
    %3668 = vrot.lane.b32.xlu0 %v3404, 48
    %v3669 = vpop.permute.xlu0 %3668
    %3670 = vrot.lane.b32.xlu0 %v3405, 48
    %v3671 = vpop.permute.xlu0 %3670
    %3672 = vrot.lane.b32.xlu0 %v3406, 48
    %v3673 = vpop.permute.xlu0 %3672
    %3674 = vrot.lane.b32.xlu0 %v3407, 48
    %v3675 = vpop.permute.xlu0 %3674
    %3676 = vrot.lane.b32.xlu0 %v3408, 48
    %v3677 = vpop.permute.xlu0 %3676
    %3678 = vrot.lane.b32.xlu0 %v3409, 48
    %v3679 = vpop.permute.xlu0 %3678
    %3680 = vrot.lane.b32.xlu0 %v3410, 48
    %v3681 = vpop.permute.xlu0 %3680
    %3682 = vrot.lane.b32.xlu0 %v3411, 48
    %v3683 = vpop.permute.xlu0 %3682
    %3684 = vrot.lane.b32.xlu0 %v3412, 48
    %v3685 = vpop.permute.xlu0 %3684
    %3686 = vrot.lane.b32.xlu0 %v3413, 48
    %v3687 = vpop.permute.xlu0 %3686
    %3704 = vrot.lane.b32.xlu0 %v3460, 64
    %v3705 = vpop.permute.xlu0 %3704
    %3706 = vrot.lane.b32.xlu0 %v3463, 64
    %v3707 = vpop.permute.xlu0 %3706
    %3708 = vrot.lane.b32.xlu0 %v3466, 64
    %v3709 = vpop.permute.xlu0 %3708
    %3710 = vrot.lane.b32.xlu0 %v3469, 64
    %v3711 = vpop.permute.xlu0 %3710
    %3712 = vrot.lane.b32.xlu0 %v3472, 64
    %v3713 = vpop.permute.xlu0 %3712
    %3714 = vrot.lane.b32.xlu0 %v3475, 64
    %v3715 = vpop.permute.xlu0 %3714
    %3716 = vrot.lane.b32.xlu0 %v3478, 64
    %v3717 = vpop.permute.xlu0 %3716
    %3718 = vrot.lane.b32.xlu0 %v3548, 64
    %v3719 = vpop.permute.xlu0 %3718
    %3720 = vrot.lane.b32.xlu0 %v3481, 64
    %v3721 = vpop.permute.xlu0 %3720
    %3722 = vrot.lane.b32.xlu0 %v3484, 64
    %v3723 = vpop.permute.xlu0 %3722
    %3724 = vrot.lane.b32.xlu0 %v3487, 64
    %v3725 = vpop.permute.xlu0 %3724
    %3726 = vrot.lane.b32.xlu0 %v3490, 64
    %v3727 = vpop.permute.xlu0 %3726
    %3728 = vrot.lane.b32.xlu0 %v3493, 64
    %v3729 = vpop.permute.xlu0 %3728
    %3730 = vrot.lane.b32.xlu0 %v3496, 64
    %v3731 = vpop.permute.xlu0 %3730
    %3732 = vrot.lane.b32.xlu0 %v3499, 64
    %v3733 = vpop.permute.xlu0 %3732
    %3734 = vrot.lane.b32.xlu0 %v3551, 64
    %v3735 = vpop.permute.xlu0 %3734
    %3752 = vrot.lane.b32.xlu0 %v3502, 80
    %v3753 = vpop.permute.xlu0 %3752
    %3754 = vrot.lane.b32.xlu0 %v3505, 80
    %v3755 = vpop.permute.xlu0 %3754
    %3756 = vrot.lane.b32.xlu0 %v3508, 80
    %v3757 = vpop.permute.xlu0 %3756
    %3758 = vrot.lane.b32.xlu0 %v3511, 80
    %v3759 = vpop.permute.xlu0 %3758
    %3760 = vrot.lane.b32.xlu0 %v3514, 80
    %v3761 = vpop.permute.xlu0 %3760
    %3762 = vrot.lane.b32.xlu0 %v3517, 80
    %v3763 = vpop.permute.xlu0 %3762
    %3764 = vrot.lane.b32.xlu0 %v3520, 80
    %v3765 = vpop.permute.xlu0 %3764
    %3766 = vrot.lane.b32.xlu0 %v3554, 80
    %v3767 = vpop.permute.xlu0 %3766
    %3768 = vrot.lane.b32.xlu0 %v3523, 80
    %v3769 = vpop.permute.xlu0 %3768
    %3770 = vrot.lane.b32.xlu0 %v3526, 80
    %v3771 = vpop.permute.xlu0 %3770
    %3772 = vrot.lane.b32.xlu0 %v3529, 80
    %v3773 = vpop.permute.xlu0 %3772
    %3774 = vrot.lane.b32.xlu0 %v3532, 80
    %v3775 = vpop.permute.xlu0 %3774
    %3776 = vrot.lane.b32.xlu0 %v3535, 80
    %v3777 = vpop.permute.xlu0 %3776
    %3778 = vrot.lane.b32.xlu0 %v3538, 80
    %v3779 = vpop.permute.xlu0 %3778
    %3780 = vrot.lane.b32.xlu0 %v3541, 80
    %v3781 = vpop.permute.xlu0 %3780
    %3782 = vrot.lane.b32.xlu0 %v3557, 80
    %v3783 = vpop.permute.xlu0 %3782
    %3800 = vrot.lane.b32.xlu0 %v3399, 96
    %v3801 = vpop.permute.xlu0 %3800
    %3802 = vrot.lane.b32.xlu0 %v3400, 96
    %v3803 = vpop.permute.xlu0 %3802
    %3804 = vrot.lane.b32.xlu0 %v3401, 96
    %v3805 = vpop.permute.xlu0 %3804
    %3806 = vrot.lane.b32.xlu0 %v3402, 96
    %v3807 = vpop.permute.xlu0 %3806
    %3808 = vrot.lane.b32.xlu0 %v3403, 96
    %v3809 = vpop.permute.xlu0 %3808
    %3810 = vrot.lane.b32.xlu0 %v3404, 96
    %v3811 = vpop.permute.xlu0 %3810
    %3812 = vrot.lane.b32.xlu0 %v3405, 96
    %v3813 = vpop.permute.xlu0 %3812
    %3814 = vrot.lane.b32.xlu0 %v3407, 96
    %v3815 = vpop.permute.xlu0 %3814
    %3816 = vrot.lane.b32.xlu0 %v3408, 96
    %v3817 = vpop.permute.xlu0 %3816
    %3818 = vrot.lane.b32.xlu0 %v3409, 96
    %v3819 = vpop.permute.xlu0 %3818
    %3820 = vrot.lane.b32.xlu0 %v3410, 96
    %v3821 = vpop.permute.xlu0 %3820
    %3822 = vrot.lane.b32.xlu0 %v3411, 96
    %v3823 = vpop.permute.xlu0 %3822
    %3824 = vrot.lane.b32.xlu0 %v3412, 96
    %v3825 = vpop.permute.xlu0 %3824
    %3826 = vrot.lane.b32.xlu0 %v3413, 96
    %v3827 = vpop.permute.xlu0 %3826
    %3842 = vrot.lane.b32.xlu0 %v3463, 112
    %v3843 = vpop.permute.xlu0 %3842
    %3844 = vrot.lane.b32.xlu0 %v3466, 112
    %v3845 = vpop.permute.xlu0 %3844
    %3846 = vrot.lane.b32.xlu0 %v3469, 112
    %v3847 = vpop.permute.xlu0 %3846
    %3848 = vrot.lane.b32.xlu0 %v3472, 112
    %v3849 = vpop.permute.xlu0 %3848
    %3850 = vrot.lane.b32.xlu0 %v3475, 112
    %v3851 = vpop.permute.xlu0 %3850
    %3852 = vrot.lane.b32.xlu0 %v3478, 112
    %v3853 = vpop.permute.xlu0 %3852
    %3854 = vrot.lane.b32.xlu0 %v3548, 112
    %v3855 = vpop.permute.xlu0 %3854
    %3856 = vrot.lane.b32.xlu0 %v3484, 112
    %v3857 = vpop.permute.xlu0 %3856
    %3858 = vrot.lane.b32.xlu0 %v3487, 112
    %v3859 = vpop.permute.xlu0 %3858
    %3860 = vrot.lane.b32.xlu0 %v3490, 112
    %v3861 = vpop.permute.xlu0 %3860
    %3862 = vrot.lane.b32.xlu0 %v3493, 112
    %v3863 = vpop.permute.xlu0 %3862
    %3864 = vrot.lane.b32.xlu0 %v3496, 112
    %v3865 = vpop.permute.xlu0 %3864
    %3866 = vrot.lane.b32.xlu0 %v3499, 112
    %v3867 = vpop.permute.xlu0 %3866
    %3868 = vrot.lane.b32.xlu0 %v3551, 112
    %v3869 = vpop.permute.xlu0 %3868
    %v3884 = vsel %vm682, %v3398, %v3573
    %v3885 = vsel %vm682, %v3399, %v3575
    %v3886 = vsel %vm682, %v3400, %v3577
    %v3887 = vsel %vm682, %v3401, %v3579
    %v3888 = vsel %vm682, %v3402, %v3581
    %v3889 = vsel %vm682, %v3403, %v3583
    %v3890 = vsel %vm682, %v3404, %v3585
    %v3891 = vsel %vm682, %v3406, %v3587
    %v3892 = vsel %vm682, %v3407, %v3589
    %v3893 = vsel %vm682, %v3408, %v3591
    %v3894 = vsel %vm682, %v3409, %v3593
    %v3895 = vsel %vm682, %v3410, %v3595
    %v3896 = vsel %vm682, %v3411, %v3597
    %v3897 = vsel %vm682, %v3412, %v3599
    %v3898 = vsel %vm698, %v3884, %v3615
    %v3899 = vsel %vm698, %v3885, %v3617
    %v3900 = vsel %vm698, %v3886, %v3619
    %v3901 = vsel %vm698, %v3887, %v3621
    %v3902 = vsel %vm698, %v3888, %v3623
    %v3903 = vsel %vm698, %v3889, %v3625
    %v3904 = vsel %vm698, %v3890, %v3627
    %v3905 = vsel %vm698, %v3891, %v3629
    %v3906 = vsel %vm698, %v3892, %v3631
    %v3907 = vsel %vm698, %v3893, %v3633
    %v3908 = vsel %vm698, %v3894, %v3635
    %v3909 = vsel %vm698, %v3895, %v3637
    %v3910 = vsel %vm698, %v3896, %v3639
    %v3911 = vsel %vm698, %v3897, %v3641
    %v3912 = vsel %vm714, %v699, %v3657
    %v3913 = vsel %vm714, %v3898, %v3659
    %v3914 = vsel %vm714, %v3899, %v3661
    %v3915 = vsel %vm714, %v3900, %v3663
    %v3916 = vsel %vm714, %v3901, %v3665
    %v3917 = vsel %vm714, %v3902, %v3667
    %v3918 = vsel %vm714, %v3903, %v3669
    %v3919 = vsel %vm714, %v3904, %v3671
    %v3920 = vsel %vm714, %v699, %v3673
    %v3921 = vsel %vm714, %v3905, %v3675
    %v3922 = vsel %vm714, %v3906, %v3677
    %v3923 = vsel %vm714, %v3907, %v3679
    %v3924 = vsel %vm714, %v3908, %v3681
    %v3925 = vsel %vm714, %v3909, %v3683
    %v3926 = vsel %vm714, %v3910, %v3685
    %v3927 = vsel %vm714, %v3911, %v3687
    %v3928 = vsel %vm731, %v3912, %v3705
    %v3929 = vsel %vm731, %v3913, %v3707
    %v3930 = vsel %vm731, %v3914, %v3709
    %v3931 = vsel %vm731, %v3915, %v3711
    %v3932 = vsel %vm731, %v3916, %v3713
    %v3933 = vsel %vm731, %v3917, %v3715
    %v3934 = vsel %vm731, %v3918, %v3717
    %v3935 = vsel %vm731, %v3919, %v3719
    %v3936 = vsel %vm731, %v3920, %v3721
    %v3937 = vsel %vm731, %v3921, %v3723
    %v3938 = vsel %vm731, %v3922, %v3725
    %v3939 = vsel %vm731, %v3923, %v3727
    %v3940 = vsel %vm731, %v3924, %v3729
    %v3941 = vsel %vm731, %v3925, %v3731
    %v3942 = vsel %vm731, %v3926, %v3733
    %v3943 = vsel %vm731, %v3927, %v3735
    %v3944 = vsel %vm748, %v3928, %v3753
    %v3945 = vsel %vm748, %v3929, %v3755
    %v3946 = vsel %vm748, %v3930, %v3757
    %v3947 = vsel %vm748, %v3931, %v3759
    %v3948 = vsel %vm748, %v3932, %v3761
    %v3949 = vsel %vm748, %v3933, %v3763
    %v3950 = vsel %vm748, %v3934, %v3765
    %v3951 = vsel %vm748, %v3935, %v3767
    %v3952 = vsel %vm748, %v3936, %v3769
    %v3953 = vsel %vm748, %v3937, %v3771
    %v3954 = vsel %vm748, %v3938, %v3773
    %v3955 = vsel %vm748, %v3939, %v3775
    %v3956 = vsel %vm748, %v3940, %v3777
    %v3957 = vsel %vm748, %v3941, %v3779
    %v3958 = vsel %vm748, %v3942, %v3781
    %v3959 = vsel %vm748, %v3943, %v3783
    %v3960 = vsel %vm765, %v3944, %v3801
    %v3961 = vsel %vm765, %v3945, %v3803
    %v3962 = vsel %vm765, %v3946, %v3805
    %v3963 = vsel %vm765, %v3947, %v3807
    %v3964 = vsel %vm765, %v3948, %v3809
    %v3965 = vsel %vm765, %v3949, %v3811
    %v3966 = vsel %vm765, %v3950, %v3813
    %v3967 = vsel %vm765, %v3951, %v607
    %v3968 = vsel %vm765, %v3952, %v3815
    %v3969 = vsel %vm765, %v3953, %v3817
    %v3970 = vsel %vm765, %v3954, %v3819
    %v3971 = vsel %vm765, %v3955, %v3821
    %v3972 = vsel %vm765, %v3956, %v3823
    %v3973 = vsel %vm765, %v3957, %v3825
    %v3974 = vsel %vm765, %v3958, %v3827
    %v3975 = vsel %vm765, %v3959, %v607
    %v3976 = vsel %vm782, %v3960, %v3843
    %v3977 = vsel %vm782, %v3961, %v3845
    %v3978 = vsel %vm782, %v3962, %v3847
    %v3979 = vsel %vm782, %v3963, %v3849
    %v3980 = vsel %vm782, %v3964, %v3851
    %v3981 = vsel %vm782, %v3965, %v3853
    %v3982 = vsel %vm782, %v3966, %v3855
    %v3983 = vsel %vm782, %v3967, %v652
    %v3984 = vsel %vm782, %v3968, %v3857
    %v3985 = vsel %vm782, %v3969, %v3859
    %v3986 = vsel %vm782, %v3970, %v3861
    %v3987 = vsel %vm782, %v3971, %v3863
    %v3988 = vsel %vm782, %v3972, %v3865
    %v3989 = vsel %vm782, %v3973, %v3867
    %v3990 = vsel %vm782, %v3974, %v3869
    %v3991 = vsel %vm782, %v3975, %v652
    %v3992 = vpack.c.bf16 %v3977, %v3976
    %v3993 = vpack.c.bf16 %v3508, %v3505
    %v3994 = vpack.c.bf16 %v3979, %v3978
    %v3995 = vpack.c.bf16 %v3514, %v3511
    %v3996 = vpack.c.bf16 %v3981, %v3980
    %v3997 = vpack.c.bf16 %v3520, %v3517
    %v3998 = vpack.c.bf16 %v3983, %v3982
    %v3999 = vpack.c.bf16 %v284, %v3554
    %v4000 = vpack.c.bf16 %v3985, %v3984
    %v4001 = vpack.c.bf16 %v3529, %v3526
    %v4002 = vpack.c.bf16 %v3987, %v3986
    %v4003 = vpack.c.bf16 %v3535, %v3532
    %v4004 = vpack.c.bf16 %v3989, %v3988
    %v4005 = vpack.c.bf16 %v3541, %v3538
    %v4006 = vpack.c.bf16 %v3991, %v3990
    %v4007 = vpack.c.bf16 %v284, %v3557
    %v4009 = vlaneseq
    %v4010 = vshrl.u32 %v4009, 7
    %v4011 = vsub.s32 0, %v4010
    %v4012 = vrot.slane %v2234, %v4011
    %v4032 = vunpack.c.l.b16 %v2216
    %v4033 = vunpack.c.l.b16 %v2217
    %v4034 = vunpack.c.l.b16 %v2218
    %v4035 = vunpack.c.l.b16 %v2219
    %v4036 = vunpack.c.l.b16 %v2220
    %v4037 = vunpack.c.l.b16 %v2221
    %v4038 = vunpack.c.l.b16 %v2222
    %v4039 = vunpack.c.l.b16 %v2223
    %v4040 = vunpack.c.l.b16 %v2224
    %v4041 = vunpack.c.l.b16 %v2225
    %v4042 = vunpack.c.l.b16 %v2226
    %v4043 = vunpack.c.l.b16 %v2227
    %v4044 = vunpack.c.l.b16 %v2228
    %v4045 = vunpack.c.l.b16 %v2229
    %v4046 = vunpack.c.l.b16 %v2230
    %v4047 = vunpack.c.l.b16 %v2231
    %v4048 = vunpack.c.l.b16 %v2232
    %v4049 = vunpack.c.l.b16 %v2233
    %v4050 = vpack.c.b16 %v4033, %v4032
    %v4051 = vpack.c.b16 %v4035, %v4034
    %v4052 = vpack.c.b16 %v4037, %v4036
    %v4053 = vpack.c.b16 %v4039, %v4038
    %v4054 = vpack.c.b16 %v4041, %v4040
    %v4055 = vpack.c.b16 %v4043, %v4042
    %v4056 = vpack.c.b16 %v4045, %v4044
    %v4057 = vpack.c.b16 %v4047, %v4046
    %v4058 = vpack.c.b16 %v4049, %v4048
    %v4069 = vsel %vm682, %v3993, 0
    %v4072 = vsel %vm682, %v3995, 0
    %v4075 = vsel %vm682, %v3997, 0
    %v4078 = vsel %vm682, %v3999, 0
    %v4081 = vsel %vm682, %v4001, 0
    %v4084 = vsel %vm682, %v4003, 0
    %v4087 = vsel %vm682, %v4005, 0
    %v4090 = vsel %vm682, %v4007, 0
    %4092 = vmatprep.subr.bf16.mxu0 0
    %4093 = vmatpush1.bf16.msra.mxu0 %v4057
    %4094 = vmatprep.subr.bf16.mxu0 0
    %4095 = vmatpush1.bf16.msra.mxu0 %v4056
    %4096 = vmatprep.subr.bf16.mxu0 0
    %4097 = vmatpush1.bf16.msra.mxu0 %v4055
    %4098 = vmatprep.subr.bf16.mxu0 0
    %4099 = vmatpush1.bf16.msra.mxu0 %v4054
    %4100 = vmatprep.subr.bf16.mxu0 0
    %4101 = vmatpush1.bf16.msra.mxu0 %v4053
    %4102 = vmatprep.subr.bf16.mxu0 0
    %4103 = vmatpush1.bf16.msra.mxu0 %v4052
    %4104 = vmatprep.subr.bf16.mxu0 0
    %4105 = vmatpush1.bf16.msra.mxu0 %v4051
    %4106 = vmatprep.subr.bf16.mxu0 0
    %4107 = vmatpush1.bf16.msra.mxu0 %v4050
    %4108 = vmatprep.subr.bf16.mxu0 0
    %4109 = vmatpush2.bf16.msra.mxu0 0
    %4110 = vmatprep.subr.bf16.mxu0 0
    %4111 = vmatpush2.bf16.msra.mxu0 0
    %4112 = vmatprep.subr.bf16.mxu0 0
    %4113 = vmatpush2.bf16.msra.mxu0 0
    %4114 = vmatprep.subr.bf16.mxu0 0
    %4115 = vmatpush2.bf16.msra.mxu0 0
    %4116 = vmatprep.subr.bf16.mxu0 0
    %4117 = vmatpush2.bf16.msra.mxu0 0
    %4118 = vmatprep.subr.bf16.mxu0 0
    %4119 = vmatpush2.bf16.msra.mxu0 0
    %4120 = vmatprep.subr.bf16.mxu0 0
    %4121 = vmatpush2.bf16.msra.mxu0 0
    %4122 = vmatprep.subr.bf16.mxu0 0
    %4123 = vmatpush2.bf16.msra.mxu0 %v4058
    %4124 = vmatprep.mubr.bf16.mxu0 %v4069
    %4125 = vmatmul.mubr.bf16.gmra.mxu0 %v3992
    %v4126 = vpop.f32.mrf.mxu0
    %v4127 = vadd.f32 %v4012, %v4126
    %v4128 = vpop.f32.mrf.mxu0
    %v4129 = vpop.f32.mrf.mxu0
    %v4130 = vadd.f32 %v4012, %v4129
    %v4131 = vpop.f32.mrf.mxu0
    %4132 = vmatprep.mubr.bf16.mxu0 %v4072
    %4133 = vmatmul.mubr.bf16.gmra.mxu0 %v3994
    %v4134 = vpop.f32.mrf.mxu0
    %v4135 = vadd.f32 %v4012, %v4134
    %v4136 = vpop.f32.mrf.mxu0
    %v4137 = vpop.f32.mrf.mxu0
    %v4138 = vadd.f32 %v4012, %v4137
    %v4139 = vpop.f32.mrf.mxu0
    %4140 = vmatprep.mubr.bf16.mxu0 %v4075
    %4141 = vmatmul.mubr.bf16.gmra.mxu0 %v3996
    %v4142 = vpop.f32.mrf.mxu0
    %v4143 = vadd.f32 %v4012, %v4142
    %v4144 = vpop.f32.mrf.mxu0
    %v4145 = vpop.f32.mrf.mxu0
    %v4146 = vadd.f32 %v4012, %v4145
    %v4147 = vpop.f32.mrf.mxu0
    %4148 = vmatprep.mubr.bf16.mxu0 %v4078
    %4149 = vmatmul.mubr.bf16.gmra.mxu0 %v3998
    %v4150 = vpop.f32.mrf.mxu0
    %v4151 = vadd.f32 %v4012, %v4150
    %v4152 = vpop.f32.mrf.mxu0
    %v4153 = vpop.f32.mrf.mxu0
    %v4154 = vadd.f32 %v4012, %v4153
    %v4155 = vpop.f32.mrf.mxu0
    %4156 = vmatprep.mubr.bf16.mxu0 %v4081
    %4157 = vmatmul.mubr.bf16.gmra.mxu0 %v4000
    %v4158 = vpop.f32.mrf.mxu0
    %v4159 = vadd.f32 %v4012, %v4158
    %v4160 = vpop.f32.mrf.mxu0
    %v4161 = vpop.f32.mrf.mxu0
    %v4162 = vadd.f32 %v4012, %v4161
    %v4163 = vpop.f32.mrf.mxu0
    %4164 = vmatprep.mubr.bf16.mxu0 %v4084
    %4165 = vmatmul.mubr.bf16.gmra.mxu0 %v4002
    %v4166 = vpop.f32.mrf.mxu0
    %v4167 = vadd.f32 %v4012, %v4166
    %v4168 = vpop.f32.mrf.mxu0
    %v4169 = vpop.f32.mrf.mxu0
    %v4170 = vadd.f32 %v4012, %v4169
    %v4171 = vpop.f32.mrf.mxu0
    %4172 = vmatprep.mubr.bf16.mxu0 %v4087
    %4173 = vmatmul.mubr.bf16.gmra.mxu0 %v4004
    %v4174 = vpop.f32.mrf.mxu0
    %v4175 = vadd.f32 %v4012, %v4174
    %v4176 = vpop.f32.mrf.mxu0
    %v4177 = vpop.f32.mrf.mxu0
    %v4178 = vadd.f32 %v4012, %v4177
    %v4179 = vpop.f32.mrf.mxu0
    %4180 = vmatprep.mubr.bf16.mxu0 %v4090
    %4181 = vmatmul.mubr.bf16.gmra.mxu0 %v4006
    %v4182 = vpop.f32.mrf.mxu0
    %v4183 = vadd.f32 %v4012, %v4182
    %v4184 = vpop.f32.mrf.mxu0
    %v4185 = vpop.f32.mrf.mxu0
    %v4186 = vadd.f32 %v4012, %v4185
    %v4187 = vpop.f32.mrf.mxu0
    %4188 = vdwg.mxu0
    %4189 = vxpose.xlu0.b32.start [1/16] %v4127, 128
    %4190 = vxpose.xlu0.b32.cont [2/16] %v4130, 128
    %4191 = vxpose.xlu0.b32.cont [3/16] %v4135, 128
    %4192 = vxpose.xlu0.b32.cont [4/16] %v4138, 128
    %4193 = vxpose.xlu0.b32.cont [5/16] %v4143, 128
    %4194 = vxpose.xlu0.b32.cont [6/16] %v4146, 128
    %4195 = vxpose.xlu0.b32.cont [7/16] %v4151, 128
    %4196 = vxpose.xlu0.b32.cont [8/16] %v4154, 128
    %4197 = vxpose.xlu0.b32.cont [9/16] %v4159, 128
    %4198 = vxpose.xlu0.b32.cont [10/16] %v4162, 128
    %4199 = vxpose.xlu0.b32.cont [11/16] %v4167, 128
    %4200 = vxpose.xlu0.b32.cont [12/16] %v4170, 128
    %4201 = vxpose.xlu0.b32.cont [13/16] %v4175, 128
    %4202 = vxpose.xlu0.b32.cont [14/16] %v4178, 128
    %4203 = vxpose.xlu0.b32.cont [15/16] %v4183, 128
    %4204 = vxpose.xlu0.b32.end [16/16] %v4186, 128
    %v4205 = vpop.trf.xlu0
    %v4206 = vpop.trf.xlu0
    %v4207 = vpop.trf.xlu0
    %v4208 = vpop.trf.xlu0
    %v4209 = vpop.trf.xlu0
    %v4210 = vpop.trf.xlu0
    %v4211 = vpop.trf.xlu0
    %v4212 = vpop.trf.xlu0
    %v4213 = vpop.trf.xlu0
    %v4214 = vpop.trf.xlu0
    %v4215 = vpop.trf.xlu0
    %v4216 = vpop.trf.xlu0
    %v4217 = vpop.trf.xlu0
    %v4218 = vpop.trf.xlu0
    %v4219 = vpop.trf.xlu0
    %v4220 = vpop.trf.xlu0
    %4221 = vst [vmem:[#allocation4] sm:$0xff] %v4205
    %4222 = vst [vmem:[#allocation4 + $0x8] sm:$0xff] %v4206
    // Predicated region
    $region50: #{tpu_custom_call.1} parent=1 // pred_check
      _
    $region51: #{tpu_custom_call.1} parent=1 // pred_check_branch
      %4224 = sbr.rel (0) target = $region53
    $region52: #{tpu_custom_call.1} parent=1 // pred_region
      %s4226 = ssub.s32 512, 512
      %4227 = vsyncadd [#allocation3], %s4226
      %s4228 = sshll.u32 [#allocation2], 4
      %s4229 = int_to_ptr.vmem [resolvable:$true] %s4228
      %4234 = dma.vmem_to_hbm [thread:$0]  %s4229, 512, %s12, [#allocation3], 128, 128, 8
    $region53: #{tpu_custom_call.1} parent=1 // pred_fallthru
      _
    // Predicated region
    $region54: #{tpu_custom_call.1} parent=1 // pred_check
      _
    $region55: #{tpu_custom_call.1} parent=1 // pred_check_branch
      %4236 = sbr.rel (0) target = $region57
    $region56: #{tpu_custom_call.1} parent=1 // pred_region
      %s4238 = ssub.s32 256, 256
      %4239 = vsyncadd [#allocation5], %s4238
      %s4240 = sshll.u32 [#allocation4], 4
      %s4241 = int_to_ptr.vmem [resolvable:$true] %s4240
      %4246 = dma.vmem_to_hbm [thread:$0]  %s4241, 256, %s13, [#allocation5], 128, 128, 8
    $region57: #{tpu_custom_call.1} parent=1 // pred_fallthru
      _
    // Predicated region
    $region58: #{tpu_custom_call.1} parent=1 // pred_check
      _
    $region59: #{tpu_custom_call.1} parent=1 // pred_check_branch
      %4248 = sbr.rel (0) target = $region61
    $region60: #{tpu_custom_call.1} parent=1 // pred_region
      %4249 = dma.done [#allocation3], 512
    $region61: #{tpu_custom_call.1} parent=1 // pred_fallthru
      _
    // Predicated region
    $region62: #{tpu_custom_call.1} parent=1 // pred_check
      _
    $region63: #{tpu_custom_call.1} parent=1 // pred_check_branch
      %4251 = sbr.rel (0) target = $region65
    $region64: #{tpu_custom_call.1} parent=1 // pred_region
      %4252 = dma.done [#allocation5], 256
    $region65: #{tpu_custom_call.1} parent=1 // pred_fallthru
      _
    %4253 = vsyncpa [#allocation3], 1
    %4254 = vsyncpa [#allocation5], 1

</llo_original>
